<compile_context>
chip_gen: v5e
topology: v5e:2x2
jax: 0.10.0
libtpu: 0.0.40
codegen_flags: <defaults>
</compile_context>

<pallas_src>
import functools

import jax
import jax.numpy as jnp
import numpy as np
from jax import lax
from jax.experimental import pallas as pl
from jax.experimental.pallas import tpu as pltpu

EMBED_DIMENSION = 300
EMBED_MAX_NORM = 1.0


def _round_up(x, m):
    return ((x + m - 1) // m) * m


def _pick_tile_n(v_pad):
    # Prefer 1-2K column tiles: double-buffered bf16 weight tiles (2 * TN * 384 * 2B)
    # stay far below v5e's 16 MiB / v7x's 32 MiB scoped-VMEM defaults. For tiny
    # vocabs still split into >=2 tiles so the weight stream actually pipelines.
    for tn in (2048, 1024, 512, 256, 128):
        if v_pad % tn == 0 and v_pad // tn >= 2:
            return tn
    return v_pad


# ---------------------------------------------------------------------------
# Kernel 1: gather needed rows from HBM, max_norm renorm, mean over context.
# ---------------------------------------------------------------------------
def _gather_mean_kernel(idx_ref, emb_ref, mean_ref, rows_ref, sems):
    """
    idx_ref  : SMEM (C*B_pad,) int32   flattened indices, row r = c*B_pad + b
    emb_ref  : HBM  (V, D_pad) f32     embedding table (memory_space=pl.ANY)
    mean_ref : VMEM (B_pad, D_pad) f32 output: mean of renormed context embeddings
    rows_ref : VMEM (C*B_pad, D_pad) f32 scratch: gathered rows
    sems     : DMA semaphores, one per gathered row
    """
    b_pad, _ = mean_ref.shape
    n_rows = rows_ref.shape[0]
    n_ctx = n_rows // b_pad

    # Issue all row-gather DMAs (HBM -> VMEM), then wait for all of them.
    copies = []
    for r in range(n_rows):
        cp = pltpu.make_async_copy(
            emb_ref.at[pl.ds(idx_ref[r], 1)],   # (1, D_pad) source row
            rows_ref.at[pl.ds(r, 1)],           # (1, D_pad) destination slot
            sems.at[r],
        )
        cp.start()
        copies.append(cp)
    for cp in copies:
        cp.wait()

    # Vectorized max_norm (L2) renorm over all gathered rows at once
    # (matches torch.embedding_renorm_: scale = max_norm / (norm + 1e-7) if norm > max_norm).
    rows = rows_ref[...]
    norm = jnp.sqrt(jnp.sum(rows * rows, axis=-1, keepdims=True))
    scale = jnp.where(norm > EMBED_MAX_NORM,
                      EMBED_MAX_NORM / (norm + 1e-7),
                      jnp.float32(1.0))
    scaled = rows * scale

    # Mean over context positions; row (c, b) lives at index c*B_pad + b, so the
    # per-context slabs are contiguous, sublane-aligned static slices.
    acc = scaled[0:b_pad]
    for c in range(1, n_ctx):
        acc = acc + scaled[c * b_pad:(c + 1) * b_pad]
    mean_ref[...] = acc * (1.0 / n_ctx)


# ---------------------------------------------------------------------------
# Kernel 2: tiled linear layer over the vocab dimension.
# ---------------------------------------------------------------------------
def _linear_kernel(mean_ref, w_ref, b_ref, out_ref):
    """
    mean_ref : VMEM (B_pad, D_pad) f32   context-mean embeddings
    w_ref    : VMEM (TN, D_pad)    bf16  weight tile (native (V, D) layout)
    b_ref    : VMEM (1, TN)        f32   bias tile
    out_ref  : VMEM (B_pad, TN)    f32   logits tile
    """
    m = mean_ref[...].astype(jnp.bfloat16)
    # Contract D against the weight's last dim -> no transpose needed anywhere.
    acc = lax.dot_general(
        m, w_ref[...],
        dimension_numbers=(((1,), (1,)), ((), ())),
        preferred_element_type=jnp.float32,
    )
    out_ref[...] = acc + b_ref[...]


# ---------------------------------------------------------------------------
# One-time parameter preparation (outside the per-call hot path).
# ---------------------------------------------------------------------------
def prepare_cbow_params(emb_table, lin_weight, lin_bias):
    """Pad D to a lane multiple (zeros, so L2 norms stay correct), pad V to a
    tile multiple, and cast the linear weight to bf16 for HBM-bandwidth-bound
    weight streaming. Do this once at model-creation time."""
    V, D = emb_table.shape
    d_pad = _round_up(D, 128)
    v_pad = _round_up(V, 256)

    emb_pad = jnp.zeros((V, d_pad), jnp.float32).at[:, :D].set(
        emb_table.astype(jnp.float32))
    w_pad = jnp.zeros((v_pad, d_pad), jnp.bfloat16).at[:V, :D].set(
        lin_weight.astype(jnp.bfloat16))
    bias_pad = jnp.zeros((1, v_pad), jnp.float32).at[0, :V].set(
        lin_bias.astype(jnp.float32))
    return emb_pad, w_pad, bias_pad


# ---------------------------------------------------------------------------
# Forward pass.
# ---------------------------------------------------------------------------
def cbow_forward(indices, emb_pad, w_pad, bias_pad, *, tile_n=None):
    """indices: (B, C) int32; emb_pad: (V, D_pad) f32; w_pad: (V_pad, D_pad) bf16;
    bias_pad: (1, V_pad) f32. Returns (B, V) f32 logits."""
    B, C = indices.shape
    V, d_pad = emb_pad.shape
    v_pad = w_pad.shape[0]
    b_pad = _round_up(max(B, 8), 8)

    if tile_n is None:
        tile_n = _pick_tile_n(v_pad)
    assert v_pad % tile_n == 0 and tile_n % 128 == 0

    # Flatten indices with layout r = c*B_pad + b; padding rows gather word 0
    # (they are sliced off at the end, so their value never matters).
    idx_cb = jnp.zeros((C, b_pad), jnp.int32).at[:, :B].set(
        indices.T.astype(jnp.int32))
    idx_flat = idx_cb.reshape(C * b_pad)

    # --- kernel 1: gather + renorm + mean (embedding table stays in HBM) ---
    mean = pl.pallas_call(
        _gather_mean_kernel,
        out_shape=jax.ShapeDtypeStruct((b_pad, d_pad), jnp.float32),
        grid_spec=pltpu.PrefetchScalarGridSpec(
            num_scalar_prefetch=1,                       # indices -> SMEM
            grid=(1,),
            in_specs=[pl.BlockSpec(memory_space=pl.ANY)],  # emb table, no auto-DMA
            out_specs=pl.BlockSpec((b_pad, d_pad), lambda i, idx: (0, 0)),
            scratch_shapes=[
                pltpu.VMEM((C * b_pad, d_pad), jnp.float32),
                pltpu.SemaphoreType.DMA((C * b_pad,)),
            ],
        ),
        compiler_params=pltpu.CompilerParams(
            dimension_semantics=("arbitrary",)),
    )(idx_flat, emb_pad)

    # --- kernel 2: vocab-tiled linear (double-buffered bf16 weight stream) ---
    out = pl.pallas_call(
        _linear_kernel,
        out_shape=jax.ShapeDtypeStruct((b_pad, v_pad), jnp.float32),
        grid=(v_pad // tile_n,),
        in_specs=[
            pl.BlockSpec((b_pad, d_pad), lambda j: (0, 0)),   # mean (resident)
            pl.BlockSpec((tile_n, d_pad), lambda j: (j, 0)),  # weight tile
            pl.BlockSpec((1, tile_n), lambda j: (0, j)),      # bias tile
        ],
        out_specs=pl.BlockSpec((b_pad, tile_n), lambda j: (0, j)),
        compiler_params=pltpu.CompilerParams(
            dimension_semantics=("parallel",)),               # shards V tiles on v7x
    )(mean, w_pad, bias_pad)

    return out[:B, :V]


# ---------------------------------------------------------------------------
# Pure-JAX reference mirroring the PyTorch forward (f32 throughout).
# ---------------------------------------------------------------------------
def cbow_reference(indices, emb_table, lin_weight, lin_bias):
    rows = emb_table[indices]                                        # (B, C, D)
    norms = jnp.sqrt(jnp.sum(rows * rows, axis=-1, keepdims=True))
    scale = jnp.where(norms > EMBED_MAX_NORM,
                      EMBED_MAX_NORM / (norms + 1e-7), 1.0)
    x = (rows * scale).mean(axis=1)                                  # (B, D)
    return x @ lin_weight.T + lin_bias                               # (B, V)


if __name__ == "__main__":
    VOCAB = 512          # small synthetic vocab
    B, C, D = 8, 6, EMBED_DIMENSION

    key = jax.random.PRNGKey(0)
    k_emb, k_w, k_b, k_idx = jax.random.split(key, 4)

    # nn.Embedding init: N(0, 1);  nn.Linear init: U(-1/sqrt(D), 1/sqrt(D))
    emb_table = jax.random.normal(k_emb, (VOCAB, D), dtype=jnp.float32)
    bound = 1.0 / np.sqrt(D)
    lin_weight = jax.random.uniform(k_w, (VOCAB, D), jnp.float32, -bound, bound)
    lin_bias = jax.random.uniform(k_b, (VOCAB,), jnp.float32, -bound, bound)

    indices = jax.random.randint(k_idx, (B, C), 0, VOCAB, dtype=jnp.int32)

    # One-time param prep (D padded to 384 lanes, weight cast to bf16).
    emb_pad, w_pad, bias_pad = prepare_cbow_params(emb_table, lin_weight, lin_bias)

    out = cbow_forward(indices, emb_pad, w_pad, bias_pad)
    out = jax.block_until_ready(out)

    ref = cbow_reference(indices, emb_table, lin_weight, lin_bias)
    # Tolerance accounts for bf16 weight/activation streaming with f32 MXU accumulation.
    np.testing.assert_allclose(np.asarray(out), np.asarray(ref),
                               rtol=5e-2, atol=5e-3)

    # TODO(synk): PyTorch's max_norm renormalizes the embedding weight in place
    # (a training-time side effect); only the forward output is reproduced here.
    print("KERNEL_OK")
</pallas_src>

<mosaic_0001>
module attributes {stable_mosaic.version = 11 : i64} {
  func.func @_gather_mean_kernel(%arg0: i32, %arg1: memref<48xi32, #tpu.memory_space<smem>>, %arg2: memref<512x384xf32, #tpu.memory_space<any>>, %arg3: memref<8x384xf32, #tpu.memory_space<vmem>>, %arg4: memref<48x384xf32, #tpu.memory_space<vmem>>, %arg5: memref<48x!tpu.dma_semaphore, #tpu.memory_space<semaphore_mem>>) attributes {dimension_semantics = [#tpu.dimension_semantics<arbitrary>], iteration_bounds = array<i64: 1>, scalar_prefetch = 1 : i64, scratch_operands = 2 : i64, tpu.core_type = #tpu.core_type<tc>, window_params = [{}, {pipeline_mode = #tpu.pipeline_mode<synchronous>, transform_indices = @transform_1, window_bounds = array<i64: 8, 384>}]} {
    %c0 = arith.constant 0 : index
    %0 = memref.load %arg1[%c0] : memref<48xi32, #tpu.memory_space<smem>>
    %c0_i32 = arith.constant 0 : i32
    %c0_i32_0 = arith.constant 0 : i32
    %1 = tpu.memref_slice %arg2[%0, %c0_i32_0] : memref<512x384xf32, #tpu.memory_space<any>> -> memref<1x384xf32, #tpu.memory_space<any>>
    %c0_i32_1 = arith.constant 0 : i32
    %c0_i32_2 = arith.constant 0 : i32
    %2 = tpu.memref_slice %arg4[%c0_i32_1, %c0_i32_2] : memref<48x384xf32, #tpu.memory_space<vmem>> -> memref<1x384xf32, #tpu.memory_space<vmem>>
    %3 = tpu.memref_slice %arg5[%c0_i32] : memref<48x!tpu.dma_semaphore, #tpu.memory_space<semaphore_mem>> -> memref<1x!tpu.dma_semaphore, #tpu.memory_space<semaphore_mem>>
    %4 = tpu.memref_squeeze %3 : memref<1x!tpu.dma_semaphore, #tpu.memory_space<semaphore_mem>> -> memref<!tpu.dma_semaphore, #tpu.memory_space<semaphore_mem>>
    tpu.enqueue_dma source(%1 : memref<1x384xf32, #tpu.memory_space<any>>) target(%2 : memref<1x384xf32, #tpu.memory_space<vmem>>) target_semaphore(%4 : memref<!tpu.dma_semaphore, #tpu.memory_space<semaphore_mem>>)
    %c1 = arith.constant 1 : index
    %5 = memref.load %arg1[%c1] : memref<48xi32, #tpu.memory_space<smem>>
    %c1_i32 = arith.constant 1 : i32
    %c0_i32_3 = arith.constant 0 : i32
    %6 = tpu.memref_slice %arg2[%5, %c0_i32_3] : memref<512x384xf32, #tpu.memory_space<any>> -> memref<1x384xf32, #tpu.memory_space<any>>
    %c1_i32_4 = arith.constant 1 : i32
    %c0_i32_5 = arith.constant 0 : i32
    %7 = tpu.memref_slice %arg4[%c1_i32_4, %c0_i32_5] : memref<48x384xf32, #tpu.memory_space<vmem>> -> memref<1x384xf32, #tpu.memory_space<vmem>>
    %8 = tpu.memref_slice %arg5[%c1_i32] : memref<48x!tpu.dma_semaphore, #tpu.memory_space<semaphore_mem>> -> memref<1x!tpu.dma_semaphore, #tpu.memory_space<semaphore_mem>>
    %9 = tpu.memref_squeeze %8 : memref<1x!tpu.dma_semaphore, #tpu.memory_space<semaphore_mem>> -> memref<!tpu.dma_semaphore, #tpu.memory_space<semaphore_mem>>
    tpu.enqueue_dma source(%6 : memref<1x384xf32, #tpu.memory_space<any>>) target(%7 : memref<1x384xf32, #tpu.memory_space<vmem>>) target_semaphore(%9 : memref<!tpu.dma_semaphore, #tpu.memory_space<semaphore_mem>>)
    %c2 = arith.constant 2 : index
    %10 = memref.load %arg1[%c2] : memref<48xi32, #tpu.memory_space<smem>>
    %c2_i32 = arith.constant 2 : i32
    %c0_i32_6 = arith.constant 0 : i32
    %11 = tpu.memref_slice %arg2[%10, %c0_i32_6] : memref<512x384xf32, #tpu.memory_space<any>> -> memref<1x384xf32, #tpu.memory_space<any>>
    %c2_i32_7 = arith.constant 2 : i32
    %c0_i32_8 = arith.constant 0 : i32
    %12 = tpu.memref_slice %arg4[%c2_i32_7, %c0_i32_8] : memref<48x384xf32, #tpu.memory_space<vmem>> -> memref<1x384xf32, #tpu.memory_space<vmem>>
    %13 = tpu.memref_slice %arg5[%c2_i32] : memref<48x!tpu.dma_semaphore, #tpu.memory_space<semaphore_mem>> -> memref<1x!tpu.dma_semaphore, #tpu.memory_space<semaphore_mem>>
    %14 = tpu.memref_squeeze %13 : memref<1x!tpu.dma_semaphore, #tpu.memory_space<semaphore_mem>> -> memref<!tpu.dma_semaphore, #tpu.memory_space<semaphore_mem>>
    tpu.enqueue_dma source(%11 : memref<1x384xf32, #tpu.memory_space<any>>) target(%12 : memref<1x384xf32, #tpu.memory_space<vmem>>) target_semaphore(%14 : memref<!tpu.dma_semaphore, #tpu.memory_space<semaphore_mem>>)
    %c3 = arith.constant 3 : index
    %15 = memref.load %arg1[%c3] : memref<48xi32, #tpu.memory_space<smem>>
    %c3_i32 = arith.constant 3 : i32
    %c0_i32_9 = arith.constant 0 : i32
    %16 = tpu.memref_slice %arg2[%15, %c0_i32_9] : memref<512x384xf32, #tpu.memory_space<any>> -> memref<1x384xf32, #tpu.memory_space<any>>
    %c3_i32_10 = arith.constant 3 : i32
    %c0_i32_11 = arith.constant 0 : i32
    %17 = tpu.memref_slice %arg4[%c3_i32_10, %c0_i32_11] : memref<48x384xf32, #tpu.memory_space<vmem>> -> memref<1x384xf32, #tpu.memory_space<vmem>>
    %18 = tpu.memref_slice %arg5[%c3_i32] : memref<48x!tpu.dma_semaphore, #tpu.memory_space<semaphore_mem>> -> memref<1x!tpu.dma_semaphore, #tpu.memory_space<semaphore_mem>>
    %19 = tpu.memref_squeeze %18 : memref<1x!tpu.dma_semaphore, #tpu.memory_space<semaphore_mem>> -> memref<!tpu.dma_semaphore, #tpu.memory_space<semaphore_mem>>
    tpu.enqueue_dma source(%16 : memref<1x384xf32, #tpu.memory_space<any>>) target(%17 : memref<1x384xf32, #tpu.memory_space<vmem>>) target_semaphore(%19 : memref<!tpu.dma_semaphore, #tpu.memory_space<semaphore_mem>>)
    %c4 = arith.constant 4 : index
    %20 = memref.load %arg1[%c4] : memref<48xi32, #tpu.memory_space<smem>>
    %c4_i32 = arith.constant 4 : i32
    %c0_i32_12 = arith.constant 0 : i32
    %21 = tpu.memref_slice %arg2[%20, %c0_i32_12] : memref<512x384xf32, #tpu.memory_space<any>> -> memref<1x384xf32, #tpu.memory_space<any>>
    %c4_i32_13 = arith.constant 4 : i32
    %c0_i32_14 = arith.constant 0 : i32
    %22 = tpu.memref_slice %arg4[%c4_i32_13, %c0_i32_14] : memref<48x384xf32, #tpu.memory_space<vmem>> -> memref<1x384xf32, #tpu.memory_space<vmem>>
    %23 = tpu.memref_slice %arg5[%c4_i32] : memref<48x!tpu.dma_semaphore, #tpu.memory_space<semaphore_mem>> -> memref<1x!tpu.dma_semaphore, #tpu.memory_space<semaphore_mem>>
    %24 = tpu.memref_squeeze %23 : memref<1x!tpu.dma_semaphore, #tpu.memory_space<semaphore_mem>> -> memref<!tpu.dma_semaphore, #tpu.memory_space<semaphore_mem>>
    tpu.enqueue_dma source(%21 : memref<1x384xf32, #tpu.memory_space<any>>) target(%22 : memref<1x384xf32, #tpu.memory_space<vmem>>) target_semaphore(%24 : memref<!tpu.dma_semaphore, #tpu.memory_space<semaphore_mem>>)
    %c5 = arith.constant 5 : index
    %25 = memref.load %arg1[%c5] : memref<48xi32, #tpu.memory_space<smem>>
    %c5_i32 = arith.constant 5 : i32
    %c0_i32_15 = arith.constant 0 : i32
    %26 = tpu.memref_slice %arg2[%25, %c0_i32_15] : memref<512x384xf32, #tpu.memory_space<any>> -> memref<1x384xf32, #tpu.memory_space<any>>
    %c5_i32_16 = arith.constant 5 : i32
    %c0_i32_17 = arith.constant 0 : i32
    %27 = tpu.memref_slice %arg4[%c5_i32_16, %c0_i32_17] : memref<48x384xf32, #tpu.memory_space<vmem>> -> memref<1x384xf32, #tpu.memory_space<vmem>>
    %28 = tpu.memref_slice %arg5[%c5_i32] : memref<48x!tpu.dma_semaphore, #tpu.memory_space<semaphore_mem>> -> memref<1x!tpu.dma_semaphore, #tpu.memory_space<semaphore_mem>>
    %29 = tpu.memref_squeeze %28 : memref<1x!tpu.dma_semaphore, #tpu.memory_space<semaphore_mem>> -> memref<!tpu.dma_semaphore, #tpu.memory_space<semaphore_mem>>
    tpu.enqueue_dma source(%26 : memref<1x384xf32, #tpu.memory_space<any>>) target(%27 : memref<1x384xf32, #tpu.memory_space<vmem>>) target_semaphore(%29 : memref<!tpu.dma_semaphore, #tpu.memory_space<semaphore_mem>>)
    %c6 = arith.constant 6 : index
    %30 = memref.load %arg1[%c6] : memref<48xi32, #tpu.memory_space<smem>>
    %c6_i32 = arith.constant 6 : i32
    %c0_i32_18 = arith.constant 0 : i32
    %31 = tpu.memref_slice %arg2[%30, %c0_i32_18] : memref<512x384xf32, #tpu.memory_space<any>> -> memref<1x384xf32, #tpu.memory_space<any>>
    %c6_i32_19 = arith.constant 6 : i32
    %c0_i32_20 = arith.constant 0 : i32
    %32 = tpu.memref_slice %arg4[%c6_i32_19, %c0_i32_20] : memref<48x384xf32, #tpu.memory_space<vmem>> -> memref<1x384xf32, #tpu.memory_space<vmem>>
    %33 = tpu.memref_slice %arg5[%c6_i32] : memref<48x!tpu.dma_semaphore, #tpu.memory_space<semaphore_mem>> -> memref<1x!tpu.dma_semaphore, #tpu.memory_space<semaphore_mem>>
    %34 = tpu.memref_squeeze %33 : memref<1x!tpu.dma_semaphore, #tpu.memory_space<semaphore_mem>> -> memref<!tpu.dma_semaphore, #tpu.memory_space<semaphore_mem>>
    tpu.enqueue_dma source(%31 : memref<1x384xf32, #tpu.memory_space<any>>) target(%32 : memref<1x384xf32, #tpu.memory_space<vmem>>) target_semaphore(%34 : memref<!tpu.dma_semaphore, #tpu.memory_space<semaphore_mem>>)
    %c7 = arith.constant 7 : index
    %35 = memref.load %arg1[%c7] : memref<48xi32, #tpu.memory_space<smem>>
    %c7_i32 = arith.constant 7 : i32
    %c0_i32_21 = arith.constant 0 : i32
    %36 = tpu.memref_slice %arg2[%35, %c0_i32_21] : memref<512x384xf32, #tpu.memory_space<any>> -> memref<1x384xf32, #tpu.memory_space<any>>
    %c7_i32_22 = arith.constant 7 : i32
    %c0_i32_23 = arith.constant 0 : i32
    %37 = tpu.memref_slice %arg4[%c7_i32_22, %c0_i32_23] : memref<48x384xf32, #tpu.memory_space<vmem>> -> memref<1x384xf32, #tpu.memory_space<vmem>>
    %38 = tpu.memref_slice %arg5[%c7_i32] : memref<48x!tpu.dma_semaphore, #tpu.memory_space<semaphore_mem>> -> memref<1x!tpu.dma_semaphore, #tpu.memory_space<semaphore_mem>>
    %39 = tpu.memref_squeeze %38 : memref<1x!tpu.dma_semaphore, #tpu.memory_space<semaphore_mem>> -> memref<!tpu.dma_semaphore, #tpu.memory_space<semaphore_mem>>
    tpu.enqueue_dma source(%36 : memref<1x384xf32, #tpu.memory_space<any>>) target(%37 : memref<1x384xf32, #tpu.memory_space<vmem>>) target_semaphore(%39 : memref<!tpu.dma_semaphore, #tpu.memory_space<semaphore_mem>>)
    %c8 = arith.constant 8 : index
    %40 = memref.load %arg1[%c8] : memref<48xi32, #tpu.memory_space<smem>>
    %c8_i32 = arith.constant 8 : i32
    %c0_i32_24 = arith.constant 0 : i32
    %41 = tpu.memref_slice %arg2[%40, %c0_i32_24] : memref<512x384xf32, #tpu.memory_space<any>> -> memref<1x384xf32, #tpu.memory_space<any>>
    %c8_i32_25 = arith.constant 8 : i32
    %c0_i32_26 = arith.constant 0 : i32
    %42 = tpu.memref_slice %arg4[%c8_i32_25, %c0_i32_26] : memref<48x384xf32, #tpu.memory_space<vmem>> -> memref<1x384xf32, #tpu.memory_space<vmem>>
    %43 = tpu.memref_slice %arg5[%c8_i32] : memref<48x!tpu.dma_semaphore, #tpu.memory_space<semaphore_mem>> -> memref<1x!tpu.dma_semaphore, #tpu.memory_space<semaphore_mem>>
    %44 = tpu.memref_squeeze %43 : memref<1x!tpu.dma_semaphore, #tpu.memory_space<semaphore_mem>> -> memref<!tpu.dma_semaphore, #tpu.memory_space<semaphore_mem>>
    tpu.enqueue_dma source(%41 : memref<1x384xf32, #tpu.memory_space<any>>) target(%42 : memref<1x384xf32, #tpu.memory_space<vmem>>) target_semaphore(%44 : memref<!tpu.dma_semaphore, #tpu.memory_space<semaphore_mem>>)
    %c9 = arith.constant 9 : index
    %45 = memref.load %arg1[%c9] : memref<48xi32, #tpu.memory_space<smem>>
    %c9_i32 = arith.constant 9 : i32
    %c0_i32_27 = arith.constant 0 : i32
    %46 = tpu.memref_slice %arg2[%45, %c0_i32_27] : memref<512x384xf32, #tpu.memory_space<any>> -> memref<1x384xf32, #tpu.memory_space<any>>
    %c9_i32_28 = arith.constant 9 : i32
    %c0_i32_29 = arith.constant 0 : i32
    %47 = tpu.memref_slice %arg4[%c9_i32_28, %c0_i32_29] : memref<48x384xf32, #tpu.memory_space<vmem>> -> memref<1x384xf32, #tpu.memory_space<vmem>>
    %48 = tpu.memref_slice %arg5[%c9_i32] : memref<48x!tpu.dma_semaphore, #tpu.memory_space<semaphore_mem>> -> memref<1x!tpu.dma_semaphore, #tpu.memory_space<semaphore_mem>>
    %49 = tpu.memref_squeeze %48 : memref<1x!tpu.dma_semaphore, #tpu.memory_space<semaphore_mem>> -> memref<!tpu.dma_semaphore, #tpu.memory_space<semaphore_mem>>
    tpu.enqueue_dma source(%46 : memref<1x384xf32, #tpu.memory_space<any>>) target(%47 : memref<1x384xf32, #tpu.memory_space<vmem>>) target_semaphore(%49 : memref<!tpu.dma_semaphore, #tpu.memory_space<semaphore_mem>>)
    %c10 = arith.constant 10 : index
    %50 = memref.load %arg1[%c10] : memref<48xi32, #tpu.memory_space<smem>>
    %c10_i32 = arith.constant 10 : i32
    %c0_i32_30 = arith.constant 0 : i32
    %51 = tpu.memref_slice %arg2[%50, %c0_i32_30] : memref<512x384xf32, #tpu.memory_space<any>> -> memref<1x384xf32, #tpu.memory_space<any>>
    %c10_i32_31 = arith.constant 10 : i32
    %c0_i32_32 = arith.constant 0 : i32
    %52 = tpu.memref_slice %arg4[%c10_i32_31, %c0_i32_32] : memref<48x384xf32, #tpu.memory_space<vmem>> -> memref<1x384xf32, #tpu.memory_space<vmem>>
    %53 = tpu.memref_slice %arg5[%c10_i32] : memref<48x!tpu.dma_semaphore, #tpu.memory_space<semaphore_mem>> -> memref<1x!tpu.dma_semaphore, #tpu.memory_space<semaphore_mem>>
    %54 = tpu.memref_squeeze %53 : memref<1x!tpu.dma_semaphore, #tpu.memory_space<semaphore_mem>> -> memref<!tpu.dma_semaphore, #tpu.memory_space<semaphore_mem>>
    tpu.enqueue_dma source(%51 : memref<1x384xf32, #tpu.memory_space<any>>) target(%52 : memref<1x384xf32, #tpu.memory_space<vmem>>) target_semaphore(%54 : memref<!tpu.dma_semaphore, #tpu.memory_space<semaphore_mem>>)
    %c11 = arith.constant 11 : index
    %55 = memref.load %arg1[%c11] : memref<48xi32, #tpu.memory_space<smem>>
    %c11_i32 = arith.constant 11 : i32
    %c0_i32_33 = arith.constant 0 : i32
    %56 = tpu.memref_slice %arg2[%55, %c0_i32_33] : memref<512x384xf32, #tpu.memory_space<any>> -> memref<1x384xf32, #tpu.memory_space<any>>
    %c11_i32_34 = arith.constant 11 : i32
    %c0_i32_35 = arith.constant 0 : i32
    %57 = tpu.memref_slice %arg4[%c11_i32_34, %c0_i32_35] : memref<48x384xf32, #tpu.memory_space<vmem>> -> memref<1x384xf32, #tpu.memory_space<vmem>>
    %58 = tpu.memref_slice %arg5[%c11_i32] : memref<48x!tpu.dma_semaphore, #tpu.memory_space<semaphore_mem>> -> memref<1x!tpu.dma_semaphore, #tpu.memory_space<semaphore_mem>>
    %59 = tpu.memref_squeeze %58 : memref<1x!tpu.dma_semaphore, #tpu.memory_space<semaphore_mem>> -> memref<!tpu.dma_semaphore, #tpu.memory_space<semaphore_mem>>
    tpu.enqueue_dma source(%56 : memref<1x384xf32, #tpu.memory_space<any>>) target(%57 : memref<1x384xf32, #tpu.memory_space<vmem>>) target_semaphore(%59 : memref<!tpu.dma_semaphore, #tpu.memory_space<semaphore_mem>>)
    %c12 = arith.constant 12 : index
    %60 = memref.load %arg1[%c12] : memref<48xi32, #tpu.memory_space<smem>>
    %c12_i32 = arith.constant 12 : i32
    %c0_i32_36 = arith.constant 0 : i32
    %61 = tpu.memref_slice %arg2[%60, %c0_i32_36] : memref<512x384xf32, #tpu.memory_space<any>> -> memref<1x384xf32, #tpu.memory_space<any>>
    %c12_i32_37 = arith.constant 12 : i32
    %c0_i32_38 = arith.constant 0 : i32
    %62 = tpu.memref_slice %arg4[%c12_i32_37, %c0_i32_38] : memref<48x384xf32, #tpu.memory_space<vmem>> -> memref<1x384xf32, #tpu.memory_space<vmem>>
    %63 = tpu.memref_slice %arg5[%c12_i32] : memref<48x!tpu.dma_semaphore, #tpu.memory_space<semaphore_mem>> -> memref<1x!tpu.dma_semaphore, #tpu.memory_space<semaphore_mem>>
    %64 = tpu.memref_squeeze %63 : memref<1x!tpu.dma_semaphore, #tpu.memory_space<semaphore_mem>> -> memref<!tpu.dma_semaphore, #tpu.memory_space<semaphore_mem>>
    tpu.enqueue_dma source(%61 : memref<1x384xf32, #tpu.memory_space<any>>) target(%62 : memref<1x384xf32, #tpu.memory_space<vmem>>) target_semaphore(%64 : memref<!tpu.dma_semaphore, #tpu.memory_space<semaphore_mem>>)
    %c13 = arith.constant 13 : index
    %65 = memref.load %arg1[%c13] : memref<48xi32, #tpu.memory_space<smem>>
    %c13_i32 = arith.constant 13 : i32
    %c0_i32_39 = arith.constant 0 : i32
    %66 = tpu.memref_slice %arg2[%65, %c0_i32_39] : memref<512x384xf32, #tpu.memory_space<any>> -> memref<1x384xf32, #tpu.memory_space<any>>
    %c13_i32_40 = arith.constant 13 : i32
    %c0_i32_41 = arith.constant 0 : i32
    %67 = tpu.memref_slice %arg4[%c13_i32_40, %c0_i32_41] : memref<48x384xf32, #tpu.memory_space<vmem>> -> memref<1x384xf32, #tpu.memory_space<vmem>>
    %68 = tpu.memref_slice %arg5[%c13_i32] : memref<48x!tpu.dma_semaphore, #tpu.memory_space<semaphore_mem>> -> memref<1x!tpu.dma_semaphore, #tpu.memory_space<semaphore_mem>>
    %69 = tpu.memref_squeeze %68 : memref<1x!tpu.dma_semaphore, #tpu.memory_space<semaphore_mem>> -> memref<!tpu.dma_semaphore, #tpu.memory_space<semaphore_mem>>
    tpu.enqueue_dma source(%66 : memref<1x384xf32, #tpu.memory_space<any>>) target(%67 : memref<1x384xf32, #tpu.memory_space<vmem>>) target_semaphore(%69 : memref<!tpu.dma_semaphore, #tpu.memory_space<semaphore_mem>>)
    %c14 = arith.constant 14 : index
    %70 = memref.load %arg1[%c14] : memref<48xi32, #tpu.memory_space<smem>>
    %c14_i32 = arith.constant 14 : i32
    %c0_i32_42 = arith.constant 0 : i32
    %71 = tpu.memref_slice %arg2[%70, %c0_i32_42] : memref<512x384xf32, #tpu.memory_space<any>> -> memref<1x384xf32, #tpu.memory_space<any>>
    %c14_i32_43 = arith.constant 14 : i32
    %c0_i32_44 = arith.constant 0 : i32
    %72 = tpu.memref_slice %arg4[%c14_i32_43, %c0_i32_44] : memref<48x384xf32, #tpu.memory_space<vmem>> -> memref<1x384xf32, #tpu.memory_space<vmem>>
    %73 = tpu.memref_slice %arg5[%c14_i32] : memref<48x!tpu.dma_semaphore, #tpu.memory_space<semaphore_mem>> -> memref<1x!tpu.dma_semaphore, #tpu.memory_space<semaphore_mem>>
    %74 = tpu.memref_squeeze %73 : memref<1x!tpu.dma_semaphore, #tpu.memory_space<semaphore_mem>> -> memref<!tpu.dma_semaphore, #tpu.memory_space<semaphore_mem>>
    tpu.enqueue_dma source(%71 : memref<1x384xf32, #tpu.memory_space<any>>) target(%72 : memref<1x384xf32, #tpu.memory_space<vmem>>) target_semaphore(%74 : memref<!tpu.dma_semaphore, #tpu.memory_space<semaphore_mem>>)
    %c15 = arith.constant 15 : index
    %75 = memref.load %arg1[%c15] : memref<48xi32, #tpu.memory_space<smem>>
    %c15_i32 = arith.constant 15 : i32
    %c0_i32_45 = arith.constant 0 : i32
    %76 = tpu.memref_slice %arg2[%75, %c0_i32_45] : memref<512x384xf32, #tpu.memory_space<any>> -> memref<1x384xf32, #tpu.memory_space<any>>
    %c15_i32_46 = arith.constant 15 : i32
    %c0_i32_47 = arith.constant 0 : i32
    %77 = tpu.memref_slice %arg4[%c15_i32_46, %c0_i32_47] : memref<48x384xf32, #tpu.memory_space<vmem>> -> memref<1x384xf32, #tpu.memory_space<vmem>>
    %78 = tpu.memref_slice %arg5[%c15_i32] : memref<48x!tpu.dma_semaphore, #tpu.memory_space<semaphore_mem>> -> memref<1x!tpu.dma_semaphore, #tpu.memory_space<semaphore_mem>>
    %79 = tpu.memref_squeeze %78 : memref<1x!tpu.dma_semaphore, #tpu.memory_space<semaphore_mem>> -> memref<!tpu.dma_semaphore, #tpu.memory_space<semaphore_mem>>
    tpu.enqueue_dma source(%76 : memref<1x384xf32, #tpu.memory_space<any>>) target(%77 : memref<1x384xf32, #tpu.memory_space<vmem>>) target_semaphore(%79 : memref<!tpu.dma_semaphore, #tpu.memory_space<semaphore_mem>>)
    %c16 = arith.constant 16 : index
    %80 = memref.load %arg1[%c16] : memref<48xi32, #tpu.memory_space<smem>>
    %c16_i32 = arith.constant 16 : i32
    %c0_i32_48 = arith.constant 0 : i32
    %81 = tpu.memref_slice %arg2[%80, %c0_i32_48] : memref<512x384xf32, #tpu.memory_space<any>> -> memref<1x384xf32, #tpu.memory_space<any>>
    %c16_i32_49 = arith.constant 16 : i32
    %c0_i32_50 = arith.constant 0 : i32
    %82 = tpu.memref_slice %arg4[%c16_i32_49, %c0_i32_50] : memref<48x384xf32, #tpu.memory_space<vmem>> -> memref<1x384xf32, #tpu.memory_space<vmem>>
    %83 = tpu.memref_slice %arg5[%c16_i32] : memref<48x!tpu.dma_semaphore, #tpu.memory_space<semaphore_mem>> -> memref<1x!tpu.dma_semaphore, #tpu.memory_space<semaphore_mem>>
    %84 = tpu.memref_squeeze %83 : memref<1x!tpu.dma_semaphore, #tpu.memory_space<semaphore_mem>> -> memref<!tpu.dma_semaphore, #tpu.memory_space<semaphore_mem>>
    tpu.enqueue_dma source(%81 : memref<1x384xf32, #tpu.memory_space<any>>) target(%82 : memref<1x384xf32, #tpu.memory_space<vmem>>) target_semaphore(%84 : memref<!tpu.dma_semaphore, #tpu.memory_space<semaphore_mem>>)
    %c17 = arith.constant 17 : index
    %85 = memref.load %arg1[%c17] : memref<48xi32, #tpu.memory_space<smem>>
    %c17_i32 = arith.constant 17 : i32
    %c0_i32_51 = arith.constant 0 : i32
    %86 = tpu.memref_slice %arg2[%85, %c0_i32_51] : memref<512x384xf32, #tpu.memory_space<any>> -> memref<1x384xf32, #tpu.memory_space<any>>
    %c17_i32_52 = arith.constant 17 : i32
    %c0_i32_53 = arith.constant 0 : i32
    %87 = tpu.memref_slice %arg4[%c17_i32_52, %c0_i32_53] : memref<48x384xf32, #tpu.memory_space<vmem>> -> memref<1x384xf32, #tpu.memory_space<vmem>>
    %88 = tpu.memref_slice %arg5[%c17_i32] : memref<48x!tpu.dma_semaphore, #tpu.memory_space<semaphore_mem>> -> memref<1x!tpu.dma_semaphore, #tpu.memory_space<semaphore_mem>>
    %89 = tpu.memref_squeeze %88 : memref<1x!tpu.dma_semaphore, #tpu.memory_space<semaphore_mem>> -> memref<!tpu.dma_semaphore, #tpu.memory_space<semaphore_mem>>
    tpu.enqueue_dma source(%86 : memref<1x384xf32, #tpu.memory_space<any>>) target(%87 : memref<1x384xf32, #tpu.memory_space<vmem>>) target_semaphore(%89 : memref<!tpu.dma_semaphore, #tpu.memory_space<semaphore_mem>>)
    %c18 = arith.constant 18 : index
    %90 = memref.load %arg1[%c18] : memref<48xi32, #tpu.memory_space<smem>>
    %c18_i32 = arith.constant 18 : i32
    %c0_i32_54 = arith.constant 0 : i32
    %91 = tpu.memref_slice %arg2[%90, %c0_i32_54] : memref<512x384xf32, #tpu.memory_space<any>> -> memref<1x384xf32, #tpu.memory_space<any>>
    %c18_i32_55 = arith.constant 18 : i32
    %c0_i32_56 = arith.constant 0 : i32
    %92 = tpu.memref_slice %arg4[%c18_i32_55, %c0_i32_56] : memref<48x384xf32, #tpu.memory_space<vmem>> -> memref<1x384xf32, #tpu.memory_space<vmem>>
    %93 = tpu.memref_slice %arg5[%c18_i32] : memref<48x!tpu.dma_semaphore, #tpu.memory_space<semaphore_mem>> -> memref<1x!tpu.dma_semaphore, #tpu.memory_space<semaphore_mem>>
    %94 = tpu.memref_squeeze %93 : memref<1x!tpu.dma_semaphore, #tpu.memory_space<semaphore_mem>> -> memref<!tpu.dma_semaphore, #tpu.memory_space<semaphore_mem>>
    tpu.enqueue_dma source(%91 : memref<1x384xf32, #tpu.memory_space<any>>) target(%92 : memref<1x384xf32, #tpu.memory_space<vmem>>) target_semaphore(%94 : memref<!tpu.dma_semaphore, #tpu.memory_space<semaphore_mem>>)
    %c19 = arith.constant 19 : index
    %95 = memref.load %arg1[%c19] : memref<48xi32, #tpu.memory_space<smem>>
    %c19_i32 = arith.constant 19 : i32
    %c0_i32_57 = arith.constant 0 : i32
    %96 = tpu.memref_slice %arg2[%95, %c0_i32_57] : memref<512x384xf32, #tpu.memory_space<any>> -> memref<1x384xf32, #tpu.memory_space<any>>
    %c19_i32_58 = arith.constant 19 : i32
    %c0_i32_59 = arith.constant 0 : i32
    %97 = tpu.memref_slice %arg4[%c19_i32_58, %c0_i32_59] : memref<48x384xf32, #tpu.memory_space<vmem>> -> memref<1x384xf32, #tpu.memory_space<vmem>>
    %98 = tpu.memref_slice %arg5[%c19_i32] : memref<48x!tpu.dma_semaphore, #tpu.memory_space<semaphore_mem>> -> memref<1x!tpu.dma_semaphore, #tpu.memory_space<semaphore_mem>>
    %99 = tpu.memref_squeeze %98 : memref<1x!tpu.dma_semaphore, #tpu.memory_space<semaphore_mem>> -> memref<!tpu.dma_semaphore, #tpu.memory_space<semaphore_mem>>
    tpu.enqueue_dma source(%96 : memref<1x384xf32, #tpu.memory_space<any>>) target(%97 : memref<1x384xf32, #tpu.memory_space<vmem>>) target_semaphore(%99 : memref<!tpu.dma_semaphore, #tpu.memory_space<semaphore_mem>>)
    %c20 = arith.constant 20 : index
    %100 = memref.load %arg1[%c20] : memref<48xi32, #tpu.memory_space<smem>>
    %c20_i32 = arith.constant 20 : i32
    %c0_i32_60 = arith.constant 0 : i32
    %101 = tpu.memref_slice %arg2[%100, %c0_i32_60] : memref<512x384xf32, #tpu.memory_space<any>> -> memref<1x384xf32, #tpu.memory_space<any>>
    %c20_i32_61 = arith.constant 20 : i32
    %c0_i32_62 = arith.constant 0 : i32
    %102 = tpu.memref_slice %arg4[%c20_i32_61, %c0_i32_62] : memref<48x384xf32, #tpu.memory_space<vmem>> -> memref<1x384xf32, #tpu.memory_space<vmem>>
    %103 = tpu.memref_slice %arg5[%c20_i32] : memref<48x!tpu.dma_semaphore, #tpu.memory_space<semaphore_mem>> -> memref<1x!tpu.dma_semaphore, #tpu.memory_space<semaphore_mem>>
    %104 = tpu.memref_squeeze %103 : memref<1x!tpu.dma_semaphore, #tpu.memory_space<semaphore_mem>> -> memref<!tpu.dma_semaphore, #tpu.memory_space<semaphore_mem>>
    tpu.enqueue_dma source(%101 : memref<1x384xf32, #tpu.memory_space<any>>) target(%102 : memref<1x384xf32, #tpu.memory_space<vmem>>) target_semaphore(%104 : memref<!tpu.dma_semaphore, #tpu.memory_space<semaphore_mem>>)
    %c21 = arith.constant 21 : index
    %105 = memref.load %arg1[%c21] : memref<48xi32, #tpu.memory_space<smem>>
    %c21_i32 = arith.constant 21 : i32
    %c0_i32_63 = arith.constant 0 : i32
    %106 = tpu.memref_slice %arg2[%105, %c0_i32_63] : memref<512x384xf32, #tpu.memory_space<any>> -> memref<1x384xf32, #tpu.memory_space<any>>
    %c21_i32_64 = arith.constant 21 : i32
    %c0_i32_65 = arith.constant 0 : i32
    %107 = tpu.memref_slice %arg4[%c21_i32_64, %c0_i32_65] : memref<48x384xf32, #tpu.memory_space<vmem>> -> memref<1x384xf32, #tpu.memory_space<vmem>>
    %108 = tpu.memref_slice %arg5[%c21_i32] : memref<48x!tpu.dma_semaphore, #tpu.memory_space<semaphore_mem>> -> memref<1x!tpu.dma_semaphore, #tpu.memory_space<semaphore_mem>>
    %109 = tpu.memref_squeeze %108 : memref<1x!tpu.dma_semaphore, #tpu.memory_space<semaphore_mem>> -> memref<!tpu.dma_semaphore, #tpu.memory_space<semaphore_mem>>
    tpu.enqueue_dma source(%106 : memref<1x384xf32, #tpu.memory_space<any>>) target(%107 : memref<1x384xf32, #tpu.memory_space<vmem>>) target_semaphore(%109 : memref<!tpu.dma_semaphore, #tpu.memory_space<semaphore_mem>>)
    %c22 = arith.constant 22 : index
    %110 = memref.load %arg1[%c22] : memref<48xi32, #tpu.memory_space<smem>>
    %c22_i32 = arith.constant 22 : i32
    %c0_i32_66 = arith.constant 0 : i32
    %111 = tpu.memref_slice %arg2[%110, %c0_i32_66] : memref<512x384xf32, #tpu.memory_space<any>> -> memref<1x384xf32, #tpu.memory_space<any>>
    %c22_i32_67 = arith.constant 22 : i32
    %c0_i32_68 = arith.constant 0 : i32
    %112 = tpu.memref_slice %arg4[%c22_i32_67, %c0_i32_68] : memref<48x384xf32, #tpu.memory_space<vmem>> -> memref<1x384xf32, #tpu.memory_space<vmem>>
    %113 = tpu.memref_slice %arg5[%c22_i32] : memref<48x!tpu.dma_semaphore, #tpu.memory_space<semaphore_mem>> -> memref<1x!tpu.dma_semaphore, #tpu.memory_space<semaphore_mem>>
    %114 = tpu.memref_squeeze %113 : memref<1x!tpu.dma_semaphore, #tpu.memory_space<semaphore_mem>> -> memref<!tpu.dma_semaphore, #tpu.memory_space<semaphore_mem>>
    tpu.enqueue_dma source(%111 : memref<1x384xf32, #tpu.memory_space<any>>) target(%112 : memref<1x384xf32, #tpu.memory_space<vmem>>) target_semaphore(%114 : memref<!tpu.dma_semaphore, #tpu.memory_space<semaphore_mem>>)
    %c23 = arith.constant 23 : index
    %115 = memref.load %arg1[%c23] : memref<48xi32, #tpu.memory_space<smem>>
    %c23_i32 = arith.constant 23 : i32
    %c0_i32_69 = arith.constant 0 : i32
    %116 = tpu.memref_slice %arg2[%115, %c0_i32_69] : memref<512x384xf32, #tpu.memory_space<any>> -> memref<1x384xf32, #tpu.memory_space<any>>
    %c23_i32_70 = arith.constant 23 : i32
    %c0_i32_71 = arith.constant 0 : i32
    %117 = tpu.memref_slice %arg4[%c23_i32_70, %c0_i32_71] : memref<48x384xf32, #tpu.memory_space<vmem>> -> memref<1x384xf32, #tpu.memory_space<vmem>>
    %118 = tpu.memref_slice %arg5[%c23_i32] : memref<48x!tpu.dma_semaphore, #tpu.memory_space<semaphore_mem>> -> memref<1x!tpu.dma_semaphore, #tpu.memory_space<semaphore_mem>>
    %119 = tpu.memref_squeeze %118 : memref<1x!tpu.dma_semaphore, #tpu.memory_space<semaphore_mem>> -> memref<!tpu.dma_semaphore, #tpu.memory_space<semaphore_mem>>
    tpu.enqueue_dma source(%116 : memref<1x384xf32, #tpu.memory_space<any>>) target(%117 : memref<1x384xf32, #tpu.memory_space<vmem>>) target_semaphore(%119 : memref<!tpu.dma_semaphore, #tpu.memory_space<semaphore_mem>>)
    %c24 = arith.constant 24 : index
    %120 = memref.load %arg1[%c24] : memref<48xi32, #tpu.memory_space<smem>>
    %c24_i32 = arith.constant 24 : i32
    %c0_i32_72 = arith.constant 0 : i32
    %121 = tpu.memref_slice %arg2[%120, %c0_i32_72] : memref<512x384xf32, #tpu.memory_space<any>> -> memref<1x384xf32, #tpu.memory_space<any>>
    %c24_i32_73 = arith.constant 24 : i32
    %c0_i32_74 = arith.constant 0 : i32
    %122 = tpu.memref_slice %arg4[%c24_i32_73, %c0_i32_74] : memref<48x384xf32, #tpu.memory_space<vmem>> -> memref<1x384xf32, #tpu.memory_space<vmem>>
    %123 = tpu.memref_slice %arg5[%c24_i32] : memref<48x!tpu.dma_semaphore, #tpu.memory_space<semaphore_mem>> -> memref<1x!tpu.dma_semaphore, #tpu.memory_space<semaphore_mem>>
    %124 = tpu.memref_squeeze %123 : memref<1x!tpu.dma_semaphore, #tpu.memory_space<semaphore_mem>> -> memref<!tpu.dma_semaphore, #tpu.memory_space<semaphore_mem>>
    tpu.enqueue_dma source(%121 : memref<1x384xf32, #tpu.memory_space<any>>) target(%122 : memref<1x384xf32, #tpu.memory_space<vmem>>) target_semaphore(%124 : memref<!tpu.dma_semaphore, #tpu.memory_space<semaphore_mem>>)
    %c25 = arith.constant 25 : index
    %125 = memref.load %arg1[%c25] : memref<48xi32, #tpu.memory_space<smem>>
    %c25_i32 = arith.constant 25 : i32
    %c0_i32_75 = arith.constant 0 : i32
    %126 = tpu.memref_slice %arg2[%125, %c0_i32_75] : memref<512x384xf32, #tpu.memory_space<any>> -> memref<1x384xf32, #tpu.memory_space<any>>
    %c25_i32_76 = arith.constant 25 : i32
    %c0_i32_77 = arith.constant 0 : i32
    %127 = tpu.memref_slice %arg4[%c25_i32_76, %c0_i32_77] : memref<48x384xf32, #tpu.memory_space<vmem>> -> memref<1x384xf32, #tpu.memory_space<vmem>>
    %128 = tpu.memref_slice %arg5[%c25_i32] : memref<48x!tpu.dma_semaphore, #tpu.memory_space<semaphore_mem>> -> memref<1x!tpu.dma_semaphore, #tpu.memory_space<semaphore_mem>>
    %129 = tpu.memref_squeeze %128 : memref<1x!tpu.dma_semaphore, #tpu.memory_space<semaphore_mem>> -> memref<!tpu.dma_semaphore, #tpu.memory_space<semaphore_mem>>
    tpu.enqueue_dma source(%126 : memref<1x384xf32, #tpu.memory_space<any>>) target(%127 : memref<1x384xf32, #tpu.memory_space<vmem>>) target_semaphore(%129 : memref<!tpu.dma_semaphore, #tpu.memory_space<semaphore_mem>>)
    %c26 = arith.constant 26 : index
    %130 = memref.load %arg1[%c26] : memref<48xi32, #tpu.memory_space<smem>>
    %c26_i32 = arith.constant 26 : i32
    %c0_i32_78 = arith.constant 0 : i32
    %131 = tpu.memref_slice %arg2[%130, %c0_i32_78] : memref<512x384xf32, #tpu.memory_space<any>> -> memref<1x384xf32, #tpu.memory_space<any>>
    %c26_i32_79 = arith.constant 26 : i32
    %c0_i32_80 = arith.constant 0 : i32
    %132 = tpu.memref_slice %arg4[%c26_i32_79, %c0_i32_80] : memref<48x384xf32, #tpu.memory_space<vmem>> -> memref<1x384xf32, #tpu.memory_space<vmem>>
    %133 = tpu.memref_slice %arg5[%c26_i32] : memref<48x!tpu.dma_semaphore, #tpu.memory_space<semaphore_mem>> -> memref<1x!tpu.dma_semaphore, #tpu.memory_space<semaphore_mem>>
    %134 = tpu.memref_squeeze %133 : memref<1x!tpu.dma_semaphore, #tpu.memory_space<semaphore_mem>> -> memref<!tpu.dma_semaphore, #tpu.memory_space<semaphore_mem>>
    tpu.enqueue_dma source(%131 : memref<1x384xf32, #tpu.memory_space<any>>) target(%132 : memref<1x384xf32, #tpu.memory_space<vmem>>) target_semaphore(%134 : memref<!tpu.dma_semaphore, #tpu.memory_space<semaphore_mem>>)
    %c27 = arith.constant 27 : index
    %135 = memref.load %arg1[%c27] : memref<48xi32, #tpu.memory_space<smem>>
    %c27_i32 = arith.constant 27 : i32
    %c0_i32_81 = arith.constant 0 : i32
    %136 = tpu.memref_slice %arg2[%135, %c0_i32_81] : memref<512x384xf32, #tpu.memory_space<any>> -> memref<1x384xf32, #tpu.memory_space<any>>
    %c27_i32_82 = arith.constant 27 : i32
    %c0_i32_83 = arith.constant 0 : i32
    %137 = tpu.memref_slice %arg4[%c27_i32_82, %c0_i32_83] : memref<48x384xf32, #tpu.memory_space<vmem>> -> memref<1x384xf32, #tpu.memory_space<vmem>>
    %138 = tpu.memref_slice %arg5[%c27_i32] : memref<48x!tpu.dma_semaphore, #tpu.memory_space<semaphore_mem>> -> memref<1x!tpu.dma_semaphore, #tpu.memory_space<semaphore_mem>>
    %139 = tpu.memref_squeeze %138 : memref<1x!tpu.dma_semaphore, #tpu.memory_space<semaphore_mem>> -> memref<!tpu.dma_semaphore, #tpu.memory_space<semaphore_mem>>
    tpu.enqueue_dma source(%136 : memref<1x384xf32, #tpu.memory_space<any>>) target(%137 : memref<1x384xf32, #tpu.memory_space<vmem>>) target_semaphore(%139 : memref<!tpu.dma_semaphore, #tpu.memory_space<semaphore_mem>>)
    %c28 = arith.constant 28 : index
    %140 = memref.load %arg1[%c28] : memref<48xi32, #tpu.memory_space<smem>>
    %c28_i32 = arith.constant 28 : i32
    %c0_i32_84 = arith.constant 0 : i32
    %141 = tpu.memref_slice %arg2[%140, %c0_i32_84] : memref<512x384xf32, #tpu.memory_space<any>> -> memref<1x384xf32, #tpu.memory_space<any>>
    %c28_i32_85 = arith.constant 28 : i32
    %c0_i32_86 = arith.constant 0 : i32
    %142 = tpu.memref_slice %arg4[%c28_i32_85, %c0_i32_86] : memref<48x384xf32, #tpu.memory_space<vmem>> -> memref<1x384xf32, #tpu.memory_space<vmem>>
    %143 = tpu.memref_slice %arg5[%c28_i32] : memref<48x!tpu.dma_semaphore, #tpu.memory_space<semaphore_mem>> -> memref<1x!tpu.dma_semaphore, #tpu.memory_space<semaphore_mem>>
    %144 = tpu.memref_squeeze %143 : memref<1x!tpu.dma_semaphore, #tpu.memory_space<semaphore_mem>> -> memref<!tpu.dma_semaphore, #tpu.memory_space<semaphore_mem>>
    tpu.enqueue_dma source(%141 : memref<1x384xf32, #tpu.memory_space<any>>) target(%142 : memref<1x384xf32, #tpu.memory_space<vmem>>) target_semaphore(%144 : memref<!tpu.dma_semaphore, #tpu.memory_space<semaphore_mem>>)
    %c29 = arith.constant 29 : index
    %145 = memref.load %arg1[%c29] : memref<48xi32, #tpu.memory_space<smem>>
    %c29_i32 = arith.constant 29 : i32
    %c0_i32_87 = arith.constant 0 : i32
    %146 = tpu.memref_slice %arg2[%145, %c0_i32_87] : memref<512x384xf32, #tpu.memory_space<any>> -> memref<1x384xf32, #tpu.memory_space<any>>
    %c29_i32_88 = arith.constant 29 : i32
    %c0_i32_89 = arith.constant 0 : i32
    %147 = tpu.memref_slice %arg4[%c29_i32_88, %c0_i32_89] : memref<48x384xf32, #tpu.memory_space<vmem>> -> memref<1x384xf32, #tpu.memory_space<vmem>>
    %148 = tpu.memref_slice %arg5[%c29_i32] : memref<48x!tpu.dma_semaphore, #tpu.memory_space<semaphore_mem>> -> memref<1x!tpu.dma_semaphore, #tpu.memory_space<semaphore_mem>>
    %149 = tpu.memref_squeeze %148 : memref<1x!tpu.dma_semaphore, #tpu.memory_space<semaphore_mem>> -> memref<!tpu.dma_semaphore, #tpu.memory_space<semaphore_mem>>
    tpu.enqueue_dma source(%146 : memref<1x384xf32, #tpu.memory_space<any>>) target(%147 : memref<1x384xf32, #tpu.memory_space<vmem>>) target_semaphore(%149 : memref<!tpu.dma_semaphore, #tpu.memory_space<semaphore_mem>>)
    %c30 = arith.constant 30 : index
    %150 = memref.load %arg1[%c30] : memref<48xi32, #tpu.memory_space<smem>>
    %c30_i32 = arith.constant 30 : i32
    %c0_i32_90 = arith.constant 0 : i32
    %151 = tpu.memref_slice %arg2[%150, %c0_i32_90] : memref<512x384xf32, #tpu.memory_space<any>> -> memref<1x384xf32, #tpu.memory_space<any>>
    %c30_i32_91 = arith.constant 30 : i32
    %c0_i32_92 = arith.constant 0 : i32
    %152 = tpu.memref_slice %arg4[%c30_i32_91, %c0_i32_92] : memref<48x384xf32, #tpu.memory_space<vmem>> -> memref<1x384xf32, #tpu.memory_space<vmem>>
    %153 = tpu.memref_slice %arg5[%c30_i32] : memref<48x!tpu.dma_semaphore, #tpu.memory_space<semaphore_mem>> -> memref<1x!tpu.dma_semaphore, #tpu.memory_space<semaphore_mem>>
    %154 = tpu.memref_squeeze %153 : memref<1x!tpu.dma_semaphore, #tpu.memory_space<semaphore_mem>> -> memref<!tpu.dma_semaphore, #tpu.memory_space<semaphore_mem>>
    tpu.enqueue_dma source(%151 : memref<1x384xf32, #tpu.memory_space<any>>) target(%152 : memref<1x384xf32, #tpu.memory_space<vmem>>) target_semaphore(%154 : memref<!tpu.dma_semaphore, #tpu.memory_space<semaphore_mem>>)
    %c31 = arith.constant 31 : index
    %155 = memref.load %arg1[%c31] : memref<48xi32, #tpu.memory_space<smem>>
    %c31_i32 = arith.constant 31 : i32
    %c0_i32_93 = arith.constant 0 : i32
    %156 = tpu.memref_slice %arg2[%155, %c0_i32_93] : memref<512x384xf32, #tpu.memory_space<any>> -> memref<1x384xf32, #tpu.memory_space<any>>
    %c31_i32_94 = arith.constant 31 : i32
    %c0_i32_95 = arith.constant 0 : i32
    %157 = tpu.memref_slice %arg4[%c31_i32_94, %c0_i32_95] : memref<48x384xf32, #tpu.memory_space<vmem>> -> memref<1x384xf32, #tpu.memory_space<vmem>>
    %158 = tpu.memref_slice %arg5[%c31_i32] : memref<48x!tpu.dma_semaphore, #tpu.memory_space<semaphore_mem>> -> memref<1x!tpu.dma_semaphore, #tpu.memory_space<semaphore_mem>>
    %159 = tpu.memref_squeeze %158 : memref<1x!tpu.dma_semaphore, #tpu.memory_space<semaphore_mem>> -> memref<!tpu.dma_semaphore, #tpu.memory_space<semaphore_mem>>
    tpu.enqueue_dma source(%156 : memref<1x384xf32, #tpu.memory_space<any>>) target(%157 : memref<1x384xf32, #tpu.memory_space<vmem>>) target_semaphore(%159 : memref<!tpu.dma_semaphore, #tpu.memory_space<semaphore_mem>>)
    %c32 = arith.constant 32 : index
    %160 = memref.load %arg1[%c32] : memref<48xi32, #tpu.memory_space<smem>>
    %c32_i32 = arith.constant 32 : i32
    %c0_i32_96 = arith.constant 0 : i32
    %161 = tpu.memref_slice %arg2[%160, %c0_i32_96] : memref<512x384xf32, #tpu.memory_space<any>> -> memref<1x384xf32, #tpu.memory_space<any>>
    %c32_i32_97 = arith.constant 32 : i32
    %c0_i32_98 = arith.constant 0 : i32
    %162 = tpu.memref_slice %arg4[%c32_i32_97, %c0_i32_98] : memref<48x384xf32, #tpu.memory_space<vmem>> -> memref<1x384xf32, #tpu.memory_space<vmem>>
    %163 = tpu.memref_slice %arg5[%c32_i32] : memref<48x!tpu.dma_semaphore, #tpu.memory_space<semaphore_mem>> -> memref<1x!tpu.dma_semaphore, #tpu.memory_space<semaphore_mem>>
    %164 = tpu.memref_squeeze %163 : memref<1x!tpu.dma_semaphore, #tpu.memory_space<semaphore_mem>> -> memref<!tpu.dma_semaphore, #tpu.memory_space<semaphore_mem>>
    tpu.enqueue_dma source(%161 : memref<1x384xf32, #tpu.memory_space<any>>) target(%162 : memref<1x384xf32, #tpu.memory_space<vmem>>) target_semaphore(%164 : memref<!tpu.dma_semaphore, #tpu.memory_space<semaphore_mem>>)
    %c33 = arith.constant 33 : index
    %165 = memref.load %arg1[%c33] : memref<48xi32, #tpu.memory_space<smem>>
    %c33_i32 = arith.constant 33 : i32
    %c0_i32_99 = arith.constant 0 : i32
    %166 = tpu.memref_slice %arg2[%165, %c0_i32_99] : memref<512x384xf32, #tpu.memory_space<any>> -> memref<1x384xf32, #tpu.memory_space<any>>
    %c33_i32_100 = arith.constant 33 : i32
    %c0_i32_101 = arith.constant 0 : i32
    %167 = tpu.memref_slice %arg4[%c33_i32_100, %c0_i32_101] : memref<48x384xf32, #tpu.memory_space<vmem>> -> memref<1x384xf32, #tpu.memory_space<vmem>>
    %168 = tpu.memref_slice %arg5[%c33_i32] : memref<48x!tpu.dma_semaphore, #tpu.memory_space<semaphore_mem>> -> memref<1x!tpu.dma_semaphore, #tpu.memory_space<semaphore_mem>>
    %169 = tpu.memref_squeeze %168 : memref<1x!tpu.dma_semaphore, #tpu.memory_space<semaphore_mem>> -> memref<!tpu.dma_semaphore, #tpu.memory_space<semaphore_mem>>
    tpu.enqueue_dma source(%166 : memref<1x384xf32, #tpu.memory_space<any>>) target(%167 : memref<1x384xf32, #tpu.memory_space<vmem>>) target_semaphore(%169 : memref<!tpu.dma_semaphore, #tpu.memory_space<semaphore_mem>>)
    %c34 = arith.constant 34 : index
    %170 = memref.load %arg1[%c34] : memref<48xi32, #tpu.memory_space<smem>>
    %c34_i32 = arith.constant 34 : i32
    %c0_i32_102 = arith.constant 0 : i32
    %171 = tpu.memref_slice %arg2[%170, %c0_i32_102] : memref<512x384xf32, #tpu.memory_space<any>> -> memref<1x384xf32, #tpu.memory_space<any>>
    %c34_i32_103 = arith.constant 34 : i32
    %c0_i32_104 = arith.constant 0 : i32
    %172 = tpu.memref_slice %arg4[%c34_i32_103, %c0_i32_104] : memref<48x384xf32, #tpu.memory_space<vmem>> -> memref<1x384xf32, #tpu.memory_space<vmem>>
    %173 = tpu.memref_slice %arg5[%c34_i32] : memref<48x!tpu.dma_semaphore, #tpu.memory_space<semaphore_mem>> -> memref<1x!tpu.dma_semaphore, #tpu.memory_space<semaphore_mem>>
    %174 = tpu.memref_squeeze %173 : memref<1x!tpu.dma_semaphore, #tpu.memory_space<semaphore_mem>> -> memref<!tpu.dma_semaphore, #tpu.memory_space<semaphore_mem>>
    tpu.enqueue_dma source(%171 : memref<1x384xf32, #tpu.memory_space<any>>) target(%172 : memref<1x384xf32, #tpu.memory_space<vmem>>) target_semaphore(%174 : memref<!tpu.dma_semaphore, #tpu.memory_space<semaphore_mem>>)
    %c35 = arith.constant 35 : index
    %175 = memref.load %arg1[%c35] : memref<48xi32, #tpu.memory_space<smem>>
    %c35_i32 = arith.constant 35 : i32
    %c0_i32_105 = arith.constant 0 : i32
    %176 = tpu.memref_slice %arg2[%175, %c0_i32_105] : memref<512x384xf32, #tpu.memory_space<any>> -> memref<1x384xf32, #tpu.memory_space<any>>
    %c35_i32_106 = arith.constant 35 : i32
    %c0_i32_107 = arith.constant 0 : i32
    %177 = tpu.memref_slice %arg4[%c35_i32_106, %c0_i32_107] : memref<48x384xf32, #tpu.memory_space<vmem>> -> memref<1x384xf32, #tpu.memory_space<vmem>>
    %178 = tpu.memref_slice %arg5[%c35_i32] : memref<48x!tpu.dma_semaphore, #tpu.memory_space<semaphore_mem>> -> memref<1x!tpu.dma_semaphore, #tpu.memory_space<semaphore_mem>>
    %179 = tpu.memref_squeeze %178 : memref<1x!tpu.dma_semaphore, #tpu.memory_space<semaphore_mem>> -> memref<!tpu.dma_semaphore, #tpu.memory_space<semaphore_mem>>
    tpu.enqueue_dma source(%176 : memref<1x384xf32, #tpu.memory_space<any>>) target(%177 : memref<1x384xf32, #tpu.memory_space<vmem>>) target_semaphore(%179 : memref<!tpu.dma_semaphore, #tpu.memory_space<semaphore_mem>>)
    %c36 = arith.constant 36 : index
    %180 = memref.load %arg1[%c36] : memref<48xi32, #tpu.memory_space<smem>>
    %c36_i32 = arith.constant 36 : i32
    %c0_i32_108 = arith.constant 0 : i32
    %181 = tpu.memref_slice %arg2[%180, %c0_i32_108] : memref<512x384xf32, #tpu.memory_space<any>> -> memref<1x384xf32, #tpu.memory_space<any>>
    %c36_i32_109 = arith.constant 36 : i32
    %c0_i32_110 = arith.constant 0 : i32
    %182 = tpu.memref_slice %arg4[%c36_i32_109, %c0_i32_110] : memref<48x384xf32, #tpu.memory_space<vmem>> -> memref<1x384xf32, #tpu.memory_space<vmem>>
    %183 = tpu.memref_slice %arg5[%c36_i32] : memref<48x!tpu.dma_semaphore, #tpu.memory_space<semaphore_mem>> -> memref<1x!tpu.dma_semaphore, #tpu.memory_space<semaphore_mem>>
    %184 = tpu.memref_squeeze %183 : memref<1x!tpu.dma_semaphore, #tpu.memory_space<semaphore_mem>> -> memref<!tpu.dma_semaphore, #tpu.memory_space<semaphore_mem>>
    tpu.enqueue_dma source(%181 : memref<1x384xf32, #tpu.memory_space<any>>) target(%182 : memref<1x384xf32, #tpu.memory_space<vmem>>) target_semaphore(%184 : memref<!tpu.dma_semaphore, #tpu.memory_space<semaphore_mem>>)
    %c37 = arith.constant 37 : index
    %185 = memref.load %arg1[%c37] : memref<48xi32, #tpu.memory_space<smem>>
    %c37_i32 = arith.constant 37 : i32
    %c0_i32_111 = arith.constant 0 : i32
    %186 = tpu.memref_slice %arg2[%185, %c0_i32_111] : memref<512x384xf32, #tpu.memory_space<any>> -> memref<1x384xf32, #tpu.memory_space<any>>
    %c37_i32_112 = arith.constant 37 : i32
    %c0_i32_113 = arith.constant 0 : i32
    %187 = tpu.memref_slice %arg4[%c37_i32_112, %c0_i32_113] : memref<48x384xf32, #tpu.memory_space<vmem>> -> memref<1x384xf32, #tpu.memory_space<vmem>>
    %188 = tpu.memref_slice %arg5[%c37_i32] : memref<48x!tpu.dma_semaphore, #tpu.memory_space<semaphore_mem>> -> memref<1x!tpu.dma_semaphore, #tpu.memory_space<semaphore_mem>>
    %189 = tpu.memref_squeeze %188 : memref<1x!tpu.dma_semaphore, #tpu.memory_space<semaphore_mem>> -> memref<!tpu.dma_semaphore, #tpu.memory_space<semaphore_mem>>
    tpu.enqueue_dma source(%186 : memref<1x384xf32, #tpu.memory_space<any>>) target(%187 : memref<1x384xf32, #tpu.memory_space<vmem>>) target_semaphore(%189 : memref<!tpu.dma_semaphore, #tpu.memory_space<semaphore_mem>>)
    %c38 = arith.constant 38 : index
    %190 = memref.load %arg1[%c38] : memref<48xi32, #tpu.memory_space<smem>>
    %c38_i32 = arith.constant 38 : i32
    %c0_i32_114 = arith.constant 0 : i32
    %191 = tpu.memref_slice %arg2[%190, %c0_i32_114] : memref<512x384xf32, #tpu.memory_space<any>> -> memref<1x384xf32, #tpu.memory_space<any>>
    %c38_i32_115 = arith.constant 38 : i32
    %c0_i32_116 = arith.constant 0 : i32
    %192 = tpu.memref_slice %arg4[%c38_i32_115, %c0_i32_116] : memref<48x384xf32, #tpu.memory_space<vmem>> -> memref<1x384xf32, #tpu.memory_space<vmem>>
    %193 = tpu.memref_slice %arg5[%c38_i32] : memref<48x!tpu.dma_semaphore, #tpu.memory_space<semaphore_mem>> -> memref<1x!tpu.dma_semaphore, #tpu.memory_space<semaphore_mem>>
    %194 = tpu.memref_squeeze %193 : memref<1x!tpu.dma_semaphore, #tpu.memory_space<semaphore_mem>> -> memref<!tpu.dma_semaphore, #tpu.memory_space<semaphore_mem>>
    tpu.enqueue_dma source(%191 : memref<1x384xf32, #tpu.memory_space<any>>) target(%192 : memref<1x384xf32, #tpu.memory_space<vmem>>) target_semaphore(%194 : memref<!tpu.dma_semaphore, #tpu.memory_space<semaphore_mem>>)
    %c39 = arith.constant 39 : index
    %195 = memref.load %arg1[%c39] : memref<48xi32, #tpu.memory_space<smem>>
    %c39_i32 = arith.constant 39 : i32
    %c0_i32_117 = arith.constant 0 : i32
    %196 = tpu.memref_slice %arg2[%195, %c0_i32_117] : memref<512x384xf32, #tpu.memory_space<any>> -> memref<1x384xf32, #tpu.memory_space<any>>
    %c39_i32_118 = arith.constant 39 : i32
    %c0_i32_119 = arith.constant 0 : i32
    %197 = tpu.memref_slice %arg4[%c39_i32_118, %c0_i32_119] : memref<48x384xf32, #tpu.memory_space<vmem>> -> memref<1x384xf32, #tpu.memory_space<vmem>>
    %198 = tpu.memref_slice %arg5[%c39_i32] : memref<48x!tpu.dma_semaphore, #tpu.memory_space<semaphore_mem>> -> memref<1x!tpu.dma_semaphore, #tpu.memory_space<semaphore_mem>>
    %199 = tpu.memref_squeeze %198 : memref<1x!tpu.dma_semaphore, #tpu.memory_space<semaphore_mem>> -> memref<!tpu.dma_semaphore, #tpu.memory_space<semaphore_mem>>
    tpu.enqueue_dma source(%196 : memref<1x384xf32, #tpu.memory_space<any>>) target(%197 : memref<1x384xf32, #tpu.memory_space<vmem>>) target_semaphore(%199 : memref<!tpu.dma_semaphore, #tpu.memory_space<semaphore_mem>>)
    %c40 = arith.constant 40 : index
    %200 = memref.load %arg1[%c40] : memref<48xi32, #tpu.memory_space<smem>>
    %c40_i32 = arith.constant 40 : i32
    %c0_i32_120 = arith.constant 0 : i32
    %201 = tpu.memref_slice %arg2[%200, %c0_i32_120] : memref<512x384xf32, #tpu.memory_space<any>> -> memref<1x384xf32, #tpu.memory_space<any>>
    %c40_i32_121 = arith.constant 40 : i32
    %c0_i32_122 = arith.constant 0 : i32
    %202 = tpu.memref_slice %arg4[%c40_i32_121, %c0_i32_122] : memref<48x384xf32, #tpu.memory_space<vmem>> -> memref<1x384xf32, #tpu.memory_space<vmem>>
    %203 = tpu.memref_slice %arg5[%c40_i32] : memref<48x!tpu.dma_semaphore, #tpu.memory_space<semaphore_mem>> -> memref<1x!tpu.dma_semaphore, #tpu.memory_space<semaphore_mem>>
    %204 = tpu.memref_squeeze %203 : memref<1x!tpu.dma_semaphore, #tpu.memory_space<semaphore_mem>> -> memref<!tpu.dma_semaphore, #tpu.memory_space<semaphore_mem>>
    tpu.enqueue_dma source(%201 : memref<1x384xf32, #tpu.memory_space<any>>) target(%202 : memref<1x384xf32, #tpu.memory_space<vmem>>) target_semaphore(%204 : memref<!tpu.dma_semaphore, #tpu.memory_space<semaphore_mem>>)
    %c41 = arith.constant 41 : index
    %205 = memref.load %arg1[%c41] : memref<48xi32, #tpu.memory_space<smem>>
    %c41_i32 = arith.constant 41 : i32
    %c0_i32_123 = arith.constant 0 : i32
    %206 = tpu.memref_slice %arg2[%205, %c0_i32_123] : memref<512x384xf32, #tpu.memory_space<any>> -> memref<1x384xf32, #tpu.memory_space<any>>
    %c41_i32_124 = arith.constant 41 : i32
    %c0_i32_125 = arith.constant 0 : i32
    %207 = tpu.memref_slice %arg4[%c41_i32_124, %c0_i32_125] : memref<48x384xf32, #tpu.memory_space<vmem>> -> memref<1x384xf32, #tpu.memory_space<vmem>>
    %208 = tpu.memref_slice %arg5[%c41_i32] : memref<48x!tpu.dma_semaphore, #tpu.memory_space<semaphore_mem>> -> memref<1x!tpu.dma_semaphore, #tpu.memory_space<semaphore_mem>>
    %209 = tpu.memref_squeeze %208 : memref<1x!tpu.dma_semaphore, #tpu.memory_space<semaphore_mem>> -> memref<!tpu.dma_semaphore, #tpu.memory_space<semaphore_mem>>
    tpu.enqueue_dma source(%206 : memref<1x384xf32, #tpu.memory_space<any>>) target(%207 : memref<1x384xf32, #tpu.memory_space<vmem>>) target_semaphore(%209 : memref<!tpu.dma_semaphore, #tpu.memory_space<semaphore_mem>>)
    %c42 = arith.constant 42 : index
    %210 = memref.load %arg1[%c42] : memref<48xi32, #tpu.memory_space<smem>>
    %c42_i32 = arith.constant 42 : i32
    %c0_i32_126 = arith.constant 0 : i32
    %211 = tpu.memref_slice %arg2[%210, %c0_i32_126] : memref<512x384xf32, #tpu.memory_space<any>> -> memref<1x384xf32, #tpu.memory_space<any>>
    %c42_i32_127 = arith.constant 42 : i32
    %c0_i32_128 = arith.constant 0 : i32
    %212 = tpu.memref_slice %arg4[%c42_i32_127, %c0_i32_128] : memref<48x384xf32, #tpu.memory_space<vmem>> -> memref<1x384xf32, #tpu.memory_space<vmem>>
    %213 = tpu.memref_slice %arg5[%c42_i32] : memref<48x!tpu.dma_semaphore, #tpu.memory_space<semaphore_mem>> -> memref<1x!tpu.dma_semaphore, #tpu.memory_space<semaphore_mem>>
    %214 = tpu.memref_squeeze %213 : memref<1x!tpu.dma_semaphore, #tpu.memory_space<semaphore_mem>> -> memref<!tpu.dma_semaphore, #tpu.memory_space<semaphore_mem>>
    tpu.enqueue_dma source(%211 : memref<1x384xf32, #tpu.memory_space<any>>) target(%212 : memref<1x384xf32, #tpu.memory_space<vmem>>) target_semaphore(%214 : memref<!tpu.dma_semaphore, #tpu.memory_space<semaphore_mem>>)
    %c43 = arith.constant 43 : index
    %215 = memref.load %arg1[%c43] : memref<48xi32, #tpu.memory_space<smem>>
    %c43_i32 = arith.constant 43 : i32
    %c0_i32_129 = arith.constant 0 : i32
    %216 = tpu.memref_slice %arg2[%215, %c0_i32_129] : memref<512x384xf32, #tpu.memory_space<any>> -> memref<1x384xf32, #tpu.memory_space<any>>
    %c43_i32_130 = arith.constant 43 : i32
    %c0_i32_131 = arith.constant 0 : i32
    %217 = tpu.memref_slice %arg4[%c43_i32_130, %c0_i32_131] : memref<48x384xf32, #tpu.memory_space<vmem>> -> memref<1x384xf32, #tpu.memory_space<vmem>>
    %218 = tpu.memref_slice %arg5[%c43_i32] : memref<48x!tpu.dma_semaphore, #tpu.memory_space<semaphore_mem>> -> memref<1x!tpu.dma_semaphore, #tpu.memory_space<semaphore_mem>>
    %219 = tpu.memref_squeeze %218 : memref<1x!tpu.dma_semaphore, #tpu.memory_space<semaphore_mem>> -> memref<!tpu.dma_semaphore, #tpu.memory_space<semaphore_mem>>
    tpu.enqueue_dma source(%216 : memref<1x384xf32, #tpu.memory_space<any>>) target(%217 : memref<1x384xf32, #tpu.memory_space<vmem>>) target_semaphore(%219 : memref<!tpu.dma_semaphore, #tpu.memory_space<semaphore_mem>>)
    %c44 = arith.constant 44 : index
    %220 = memref.load %arg1[%c44] : memref<48xi32, #tpu.memory_space<smem>>
    %c44_i32 = arith.constant 44 : i32
    %c0_i32_132 = arith.constant 0 : i32
    %221 = tpu.memref_slice %arg2[%220, %c0_i32_132] : memref<512x384xf32, #tpu.memory_space<any>> -> memref<1x384xf32, #tpu.memory_space<any>>
    %c44_i32_133 = arith.constant 44 : i32
    %c0_i32_134 = arith.constant 0 : i32
    %222 = tpu.memref_slice %arg4[%c44_i32_133, %c0_i32_134] : memref<48x384xf32, #tpu.memory_space<vmem>> -> memref<1x384xf32, #tpu.memory_space<vmem>>
    %223 = tpu.memref_slice %arg5[%c44_i32] : memref<48x!tpu.dma_semaphore, #tpu.memory_space<semaphore_mem>> -> memref<1x!tpu.dma_semaphore, #tpu.memory_space<semaphore_mem>>
    %224 = tpu.memref_squeeze %223 : memref<1x!tpu.dma_semaphore, #tpu.memory_space<semaphore_mem>> -> memref<!tpu.dma_semaphore, #tpu.memory_space<semaphore_mem>>
    tpu.enqueue_dma source(%221 : memref<1x384xf32, #tpu.memory_space<any>>) target(%222 : memref<1x384xf32, #tpu.memory_space<vmem>>) target_semaphore(%224 : memref<!tpu.dma_semaphore, #tpu.memory_space<semaphore_mem>>)
    %c45 = arith.constant 45 : index
    %225 = memref.load %arg1[%c45] : memref<48xi32, #tpu.memory_space<smem>>
    %c45_i32 = arith.constant 45 : i32
    %c0_i32_135 = arith.constant 0 : i32
    %226 = tpu.memref_slice %arg2[%225, %c0_i32_135] : memref<512x384xf32, #tpu.memory_space<any>> -> memref<1x384xf32, #tpu.memory_space<any>>
    %c45_i32_136 = arith.constant 45 : i32
    %c0_i32_137 = arith.constant 0 : i32
    %227 = tpu.memref_slice %arg4[%c45_i32_136, %c0_i32_137] : memref<48x384xf32, #tpu.memory_space<vmem>> -> memref<1x384xf32, #tpu.memory_space<vmem>>
    %228 = tpu.memref_slice %arg5[%c45_i32] : memref<48x!tpu.dma_semaphore, #tpu.memory_space<semaphore_mem>> -> memref<1x!tpu.dma_semaphore, #tpu.memory_space<semaphore_mem>>
    %229 = tpu.memref_squeeze %228 : memref<1x!tpu.dma_semaphore, #tpu.memory_space<semaphore_mem>> -> memref<!tpu.dma_semaphore, #tpu.memory_space<semaphore_mem>>
    tpu.enqueue_dma source(%226 : memref<1x384xf32, #tpu.memory_space<any>>) target(%227 : memref<1x384xf32, #tpu.memory_space<vmem>>) target_semaphore(%229 : memref<!tpu.dma_semaphore, #tpu.memory_space<semaphore_mem>>)
    %c46 = arith.constant 46 : index
    %230 = memref.load %arg1[%c46] : memref<48xi32, #tpu.memory_space<smem>>
    %c46_i32 = arith.constant 46 : i32
    %c0_i32_138 = arith.constant 0 : i32
    %231 = tpu.memref_slice %arg2[%230, %c0_i32_138] : memref<512x384xf32, #tpu.memory_space<any>> -> memref<1x384xf32, #tpu.memory_space<any>>
    %c46_i32_139 = arith.constant 46 : i32
    %c0_i32_140 = arith.constant 0 : i32
    %232 = tpu.memref_slice %arg4[%c46_i32_139, %c0_i32_140] : memref<48x384xf32, #tpu.memory_space<vmem>> -> memref<1x384xf32, #tpu.memory_space<vmem>>
    %233 = tpu.memref_slice %arg5[%c46_i32] : memref<48x!tpu.dma_semaphore, #tpu.memory_space<semaphore_mem>> -> memref<1x!tpu.dma_semaphore, #tpu.memory_space<semaphore_mem>>
    %234 = tpu.memref_squeeze %233 : memref<1x!tpu.dma_semaphore, #tpu.memory_space<semaphore_mem>> -> memref<!tpu.dma_semaphore, #tpu.memory_space<semaphore_mem>>
    tpu.enqueue_dma source(%231 : memref<1x384xf32, #tpu.memory_space<any>>) target(%232 : memref<1x384xf32, #tpu.memory_space<vmem>>) target_semaphore(%234 : memref<!tpu.dma_semaphore, #tpu.memory_space<semaphore_mem>>)
    %c47 = arith.constant 47 : index
    %235 = memref.load %arg1[%c47] : memref<48xi32, #tpu.memory_space<smem>>
    %c47_i32 = arith.constant 47 : i32
    %c0_i32_141 = arith.constant 0 : i32
    %236 = tpu.memref_slice %arg2[%235, %c0_i32_141] : memref<512x384xf32, #tpu.memory_space<any>> -> memref<1x384xf32, #tpu.memory_space<any>>
    %c47_i32_142 = arith.constant 47 : i32
    %c0_i32_143 = arith.constant 0 : i32
    %237 = tpu.memref_slice %arg4[%c47_i32_142, %c0_i32_143] : memref<48x384xf32, #tpu.memory_space<vmem>> -> memref<1x384xf32, #tpu.memory_space<vmem>>
    %238 = tpu.memref_slice %arg5[%c47_i32] : memref<48x!tpu.dma_semaphore, #tpu.memory_space<semaphore_mem>> -> memref<1x!tpu.dma_semaphore, #tpu.memory_space<semaphore_mem>>
    %239 = tpu.memref_squeeze %238 : memref<1x!tpu.dma_semaphore, #tpu.memory_space<semaphore_mem>> -> memref<!tpu.dma_semaphore, #tpu.memory_space<semaphore_mem>>
    tpu.enqueue_dma source(%236 : memref<1x384xf32, #tpu.memory_space<any>>) target(%237 : memref<1x384xf32, #tpu.memory_space<vmem>>) target_semaphore(%239 : memref<!tpu.dma_semaphore, #tpu.memory_space<semaphore_mem>>)
    %c0_i32_144 = arith.constant 0 : i32
    %c0_i32_145 = arith.constant 0 : i32
    %240 = tpu.memref_slice %arg2[%0, %c0_i32_145] : memref<512x384xf32, #tpu.memory_space<any>> -> memref<1x384xf32, #tpu.memory_space<any>>
    %c0_i32_146 = arith.constant 0 : i32
    %c0_i32_147 = arith.constant 0 : i32
    %241 = tpu.memref_slice %arg4[%c0_i32_146, %c0_i32_147] : memref<48x384xf32, #tpu.memory_space<vmem>> -> memref<1x384xf32, #tpu.memory_space<vmem>>
    %242 = tpu.memref_slice %arg5[%c0_i32_144] : memref<48x!tpu.dma_semaphore, #tpu.memory_space<semaphore_mem>> -> memref<1x!tpu.dma_semaphore, #tpu.memory_space<semaphore_mem>>
    %243 = tpu.memref_squeeze %242 : memref<1x!tpu.dma_semaphore, #tpu.memory_space<semaphore_mem>> -> memref<!tpu.dma_semaphore, #tpu.memory_space<semaphore_mem>>
    tpu.wait_dma2 semaphore(%243 : memref<!tpu.dma_semaphore, #tpu.memory_space<semaphore_mem>>) src(%240 : memref<1x384xf32, #tpu.memory_space<any>>) dst(%241 : memref<1x384xf32, #tpu.memory_space<vmem>>)
    %c1_i32_148 = arith.constant 1 : i32
    %c0_i32_149 = arith.constant 0 : i32
    %244 = tpu.memref_slice %arg2[%5, %c0_i32_149] : memref<512x384xf32, #tpu.memory_space<any>> -> memref<1x384xf32, #tpu.memory_space<any>>
    %c1_i32_150 = arith.constant 1 : i32
    %c0_i32_151 = arith.constant 0 : i32
    %245 = tpu.memref_slice %arg4[%c1_i32_150, %c0_i32_151] : memref<48x384xf32, #tpu.memory_space<vmem>> -> memref<1x384xf32, #tpu.memory_space<vmem>>
    %246 = tpu.memref_slice %arg5[%c1_i32_148] : memref<48x!tpu.dma_semaphore, #tpu.memory_space<semaphore_mem>> -> memref<1x!tpu.dma_semaphore, #tpu.memory_space<semaphore_mem>>
    %247 = tpu.memref_squeeze %246 : memref<1x!tpu.dma_semaphore, #tpu.memory_space<semaphore_mem>> -> memref<!tpu.dma_semaphore, #tpu.memory_space<semaphore_mem>>
    tpu.wait_dma2 semaphore(%247 : memref<!tpu.dma_semaphore, #tpu.memory_space<semaphore_mem>>) src(%244 : memref<1x384xf32, #tpu.memory_space<any>>) dst(%245 : memref<1x384xf32, #tpu.memory_space<vmem>>)
    %c2_i32_152 = arith.constant 2 : i32
    %c0_i32_153 = arith.constant 0 : i32
    %248 = tpu.memref_slice %arg2[%10, %c0_i32_153] : memref<512x384xf32, #tpu.memory_space<any>> -> memref<1x384xf32, #tpu.memory_space<any>>
    %c2_i32_154 = arith.constant 2 : i32
    %c0_i32_155 = arith.constant 0 : i32
    %249 = tpu.memref_slice %arg4[%c2_i32_154, %c0_i32_155] : memref<48x384xf32, #tpu.memory_space<vmem>> -> memref<1x384xf32, #tpu.memory_space<vmem>>
    %250 = tpu.memref_slice %arg5[%c2_i32_152] : memref<48x!tpu.dma_semaphore, #tpu.memory_space<semaphore_mem>> -> memref<1x!tpu.dma_semaphore, #tpu.memory_space<semaphore_mem>>
    %251 = tpu.memref_squeeze %250 : memref<1x!tpu.dma_semaphore, #tpu.memory_space<semaphore_mem>> -> memref<!tpu.dma_semaphore, #tpu.memory_space<semaphore_mem>>
    tpu.wait_dma2 semaphore(%251 : memref<!tpu.dma_semaphore, #tpu.memory_space<semaphore_mem>>) src(%248 : memref<1x384xf32, #tpu.memory_space<any>>) dst(%249 : memref<1x384xf32, #tpu.memory_space<vmem>>)
    %c3_i32_156 = arith.constant 3 : i32
    %c0_i32_157 = arith.constant 0 : i32
    %252 = tpu.memref_slice %arg2[%15, %c0_i32_157] : memref<512x384xf32, #tpu.memory_space<any>> -> memref<1x384xf32, #tpu.memory_space<any>>
    %c3_i32_158 = arith.constant 3 : i32
    %c0_i32_159 = arith.constant 0 : i32
    %253 = tpu.memref_slice %arg4[%c3_i32_158, %c0_i32_159] : memref<48x384xf32, #tpu.memory_space<vmem>> -> memref<1x384xf32, #tpu.memory_space<vmem>>
    %254 = tpu.memref_slice %arg5[%c3_i32_156] : memref<48x!tpu.dma_semaphore, #tpu.memory_space<semaphore_mem>> -> memref<1x!tpu.dma_semaphore, #tpu.memory_space<semaphore_mem>>
    %255 = tpu.memref_squeeze %254 : memref<1x!tpu.dma_semaphore, #tpu.memory_space<semaphore_mem>> -> memref<!tpu.dma_semaphore, #tpu.memory_space<semaphore_mem>>
    tpu.wait_dma2 semaphore(%255 : memref<!tpu.dma_semaphore, #tpu.memory_space<semaphore_mem>>) src(%252 : memref<1x384xf32, #tpu.memory_space<any>>) dst(%253 : memref<1x384xf32, #tpu.memory_space<vmem>>)
    %c4_i32_160 = arith.constant 4 : i32
    %c0_i32_161 = arith.constant 0 : i32
    %256 = tpu.memref_slice %arg2[%20, %c0_i32_161] : memref<512x384xf32, #tpu.memory_space<any>> -> memref<1x384xf32, #tpu.memory_space<any>>
    %c4_i32_162 = arith.constant 4 : i32
    %c0_i32_163 = arith.constant 0 : i32
    %257 = tpu.memref_slice %arg4[%c4_i32_162, %c0_i32_163] : memref<48x384xf32, #tpu.memory_space<vmem>> -> memref<1x384xf32, #tpu.memory_space<vmem>>
    %258 = tpu.memref_slice %arg5[%c4_i32_160] : memref<48x!tpu.dma_semaphore, #tpu.memory_space<semaphore_mem>> -> memref<1x!tpu.dma_semaphore, #tpu.memory_space<semaphore_mem>>
    %259 = tpu.memref_squeeze %258 : memref<1x!tpu.dma_semaphore, #tpu.memory_space<semaphore_mem>> -> memref<!tpu.dma_semaphore, #tpu.memory_space<semaphore_mem>>
    tpu.wait_dma2 semaphore(%259 : memref<!tpu.dma_semaphore, #tpu.memory_space<semaphore_mem>>) src(%256 : memref<1x384xf32, #tpu.memory_space<any>>) dst(%257 : memref<1x384xf32, #tpu.memory_space<vmem>>)
    %c5_i32_164 = arith.constant 5 : i32
    %c0_i32_165 = arith.constant 0 : i32
    %260 = tpu.memref_slice %arg2[%25, %c0_i32_165] : memref<512x384xf32, #tpu.memory_space<any>> -> memref<1x384xf32, #tpu.memory_space<any>>
    %c5_i32_166 = arith.constant 5 : i32
    %c0_i32_167 = arith.constant 0 : i32
    %261 = tpu.memref_slice %arg4[%c5_i32_166, %c0_i32_167] : memref<48x384xf32, #tpu.memory_space<vmem>> -> memref<1x384xf32, #tpu.memory_space<vmem>>
    %262 = tpu.memref_slice %arg5[%c5_i32_164] : memref<48x!tpu.dma_semaphore, #tpu.memory_space<semaphore_mem>> -> memref<1x!tpu.dma_semaphore, #tpu.memory_space<semaphore_mem>>
    %263 = tpu.memref_squeeze %262 : memref<1x!tpu.dma_semaphore, #tpu.memory_space<semaphore_mem>> -> memref<!tpu.dma_semaphore, #tpu.memory_space<semaphore_mem>>
    tpu.wait_dma2 semaphore(%263 : memref<!tpu.dma_semaphore, #tpu.memory_space<semaphore_mem>>) src(%260 : memref<1x384xf32, #tpu.memory_space<any>>) dst(%261 : memref<1x384xf32, #tpu.memory_space<vmem>>)
    %c6_i32_168 = arith.constant 6 : i32
    %c0_i32_169 = arith.constant 0 : i32
    %264 = tpu.memref_slice %arg2[%30, %c0_i32_169] : memref<512x384xf32, #tpu.memory_space<any>> -> memref<1x384xf32, #tpu.memory_space<any>>
    %c6_i32_170 = arith.constant 6 : i32
    %c0_i32_171 = arith.constant 0 : i32
    %265 = tpu.memref_slice %arg4[%c6_i32_170, %c0_i32_171] : memref<48x384xf32, #tpu.memory_space<vmem>> -> memref<1x384xf32, #tpu.memory_space<vmem>>
    %266 = tpu.memref_slice %arg5[%c6_i32_168] : memref<48x!tpu.dma_semaphore, #tpu.memory_space<semaphore_mem>> -> memref<1x!tpu.dma_semaphore, #tpu.memory_space<semaphore_mem>>
    %267 = tpu.memref_squeeze %266 : memref<1x!tpu.dma_semaphore, #tpu.memory_space<semaphore_mem>> -> memref<!tpu.dma_semaphore, #tpu.memory_space<semaphore_mem>>
    tpu.wait_dma2 semaphore(%267 : memref<!tpu.dma_semaphore, #tpu.memory_space<semaphore_mem>>) src(%264 : memref<1x384xf32, #tpu.memory_space<any>>) dst(%265 : memref<1x384xf32, #tpu.memory_space<vmem>>)
    %c7_i32_172 = arith.constant 7 : i32
    %c0_i32_173 = arith.constant 0 : i32
    %268 = tpu.memref_slice %arg2[%35, %c0_i32_173] : memref<512x384xf32, #tpu.memory_space<any>> -> memref<1x384xf32, #tpu.memory_space<any>>
    %c7_i32_174 = arith.constant 7 : i32
    %c0_i32_175 = arith.constant 0 : i32
    %269 = tpu.memref_slice %arg4[%c7_i32_174, %c0_i32_175] : memref<48x384xf32, #tpu.memory_space<vmem>> -> memref<1x384xf32, #tpu.memory_space<vmem>>
    %270 = tpu.memref_slice %arg5[%c7_i32_172] : memref<48x!tpu.dma_semaphore, #tpu.memory_space<semaphore_mem>> -> memref<1x!tpu.dma_semaphore, #tpu.memory_space<semaphore_mem>>
    %271 = tpu.memref_squeeze %270 : memref<1x!tpu.dma_semaphore, #tpu.memory_space<semaphore_mem>> -> memref<!tpu.dma_semaphore, #tpu.memory_space<semaphore_mem>>
    tpu.wait_dma2 semaphore(%271 : memref<!tpu.dma_semaphore, #tpu.memory_space<semaphore_mem>>) src(%268 : memref<1x384xf32, #tpu.memory_space<any>>) dst(%269 : memref<1x384xf32, #tpu.memory_space<vmem>>)
    %c8_i32_176 = arith.constant 8 : i32
    %c0_i32_177 = arith.constant 0 : i32
    %272 = tpu.memref_slice %arg2[%40, %c0_i32_177] : memref<512x384xf32, #tpu.memory_space<any>> -> memref<1x384xf32, #tpu.memory_space<any>>
    %c8_i32_178 = arith.constant 8 : i32
    %c0_i32_179 = arith.constant 0 : i32
    %273 = tpu.memref_slice %arg4[%c8_i32_178, %c0_i32_179] : memref<48x384xf32, #tpu.memory_space<vmem>> -> memref<1x384xf32, #tpu.memory_space<vmem>>
    %274 = tpu.memref_slice %arg5[%c8_i32_176] : memref<48x!tpu.dma_semaphore, #tpu.memory_space<semaphore_mem>> -> memref<1x!tpu.dma_semaphore, #tpu.memory_space<semaphore_mem>>
    %275 = tpu.memref_squeeze %274 : memref<1x!tpu.dma_semaphore, #tpu.memory_space<semaphore_mem>> -> memref<!tpu.dma_semaphore, #tpu.memory_space<semaphore_mem>>
    tpu.wait_dma2 semaphore(%275 : memref<!tpu.dma_semaphore, #tpu.memory_space<semaphore_mem>>) src(%272 : memref<1x384xf32, #tpu.memory_space<any>>) dst(%273 : memref<1x384xf32, #tpu.memory_space<vmem>>)
    %c9_i32_180 = arith.constant 9 : i32
    %c0_i32_181 = arith.constant 0 : i32
    %276 = tpu.memref_slice %arg2[%45, %c0_i32_181] : memref<512x384xf32, #tpu.memory_space<any>> -> memref<1x384xf32, #tpu.memory_space<any>>
    %c9_i32_182 = arith.constant 9 : i32
    %c0_i32_183 = arith.constant 0 : i32
    %277 = tpu.memref_slice %arg4[%c9_i32_182, %c0_i32_183] : memref<48x384xf32, #tpu.memory_space<vmem>> -> memref<1x384xf32, #tpu.memory_space<vmem>>
    %278 = tpu.memref_slice %arg5[%c9_i32_180] : memref<48x!tpu.dma_semaphore, #tpu.memory_space<semaphore_mem>> -> memref<1x!tpu.dma_semaphore, #tpu.memory_space<semaphore_mem>>
    %279 = tpu.memref_squeeze %278 : memref<1x!tpu.dma_semaphore, #tpu.memory_space<semaphore_mem>> -> memref<!tpu.dma_semaphore, #tpu.memory_space<semaphore_mem>>
    tpu.wait_dma2 semaphore(%279 : memref<!tpu.dma_semaphore, #tpu.memory_space<semaphore_mem>>) src(%276 : memref<1x384xf32, #tpu.memory_space<any>>) dst(%277 : memref<1x384xf32, #tpu.memory_space<vmem>>)
    %c10_i32_184 = arith.constant 10 : i32
    %c0_i32_185 = arith.constant 0 : i32
    %280 = tpu.memref_slice %arg2[%50, %c0_i32_185] : memref<512x384xf32, #tpu.memory_space<any>> -> memref<1x384xf32, #tpu.memory_space<any>>
    %c10_i32_186 = arith.constant 10 : i32
    %c0_i32_187 = arith.constant 0 : i32
    %281 = tpu.memref_slice %arg4[%c10_i32_186, %c0_i32_187] : memref<48x384xf32, #tpu.memory_space<vmem>> -> memref<1x384xf32, #tpu.memory_space<vmem>>
    %282 = tpu.memref_slice %arg5[%c10_i32_184] : memref<48x!tpu.dma_semaphore, #tpu.memory_space<semaphore_mem>> -> memref<1x!tpu.dma_semaphore, #tpu.memory_space<semaphore_mem>>
    %283 = tpu.memref_squeeze %282 : memref<1x!tpu.dma_semaphore, #tpu.memory_space<semaphore_mem>> -> memref<!tpu.dma_semaphore, #tpu.memory_space<semaphore_mem>>
    tpu.wait_dma2 semaphore(%283 : memref<!tpu.dma_semaphore, #tpu.memory_space<semaphore_mem>>) src(%280 : memref<1x384xf32, #tpu.memory_space<any>>) dst(%281 : memref<1x384xf32, #tpu.memory_space<vmem>>)
    %c11_i32_188 = arith.constant 11 : i32
    %c0_i32_189 = arith.constant 0 : i32
    %284 = tpu.memref_slice %arg2[%55, %c0_i32_189] : memref<512x384xf32, #tpu.memory_space<any>> -> memref<1x384xf32, #tpu.memory_space<any>>
    %c11_i32_190 = arith.constant 11 : i32
    %c0_i32_191 = arith.constant 0 : i32
    %285 = tpu.memref_slice %arg4[%c11_i32_190, %c0_i32_191] : memref<48x384xf32, #tpu.memory_space<vmem>> -> memref<1x384xf32, #tpu.memory_space<vmem>>
    %286 = tpu.memref_slice %arg5[%c11_i32_188] : memref<48x!tpu.dma_semaphore, #tpu.memory_space<semaphore_mem>> -> memref<1x!tpu.dma_semaphore, #tpu.memory_space<semaphore_mem>>
    %287 = tpu.memref_squeeze %286 : memref<1x!tpu.dma_semaphore, #tpu.memory_space<semaphore_mem>> -> memref<!tpu.dma_semaphore, #tpu.memory_space<semaphore_mem>>
    tpu.wait_dma2 semaphore(%287 : memref<!tpu.dma_semaphore, #tpu.memory_space<semaphore_mem>>) src(%284 : memref<1x384xf32, #tpu.memory_space<any>>) dst(%285 : memref<1x384xf32, #tpu.memory_space<vmem>>)
    %c12_i32_192 = arith.constant 12 : i32
    %c0_i32_193 = arith.constant 0 : i32
    %288 = tpu.memref_slice %arg2[%60, %c0_i32_193] : memref<512x384xf32, #tpu.memory_space<any>> -> memref<1x384xf32, #tpu.memory_space<any>>
    %c12_i32_194 = arith.constant 12 : i32
    %c0_i32_195 = arith.constant 0 : i32
    %289 = tpu.memref_slice %arg4[%c12_i32_194, %c0_i32_195] : memref<48x384xf32, #tpu.memory_space<vmem>> -> memref<1x384xf32, #tpu.memory_space<vmem>>
    %290 = tpu.memref_slice %arg5[%c12_i32_192] : memref<48x!tpu.dma_semaphore, #tpu.memory_space<semaphore_mem>> -> memref<1x!tpu.dma_semaphore, #tpu.memory_space<semaphore_mem>>
    %291 = tpu.memref_squeeze %290 : memref<1x!tpu.dma_semaphore, #tpu.memory_space<semaphore_mem>> -> memref<!tpu.dma_semaphore, #tpu.memory_space<semaphore_mem>>
    tpu.wait_dma2 semaphore(%291 : memref<!tpu.dma_semaphore, #tpu.memory_space<semaphore_mem>>) src(%288 : memref<1x384xf32, #tpu.memory_space<any>>) dst(%289 : memref<1x384xf32, #tpu.memory_space<vmem>>)
    %c13_i32_196 = arith.constant 13 : i32
    %c0_i32_197 = arith.constant 0 : i32
    %292 = tpu.memref_slice %arg2[%65, %c0_i32_197] : memref<512x384xf32, #tpu.memory_space<any>> -> memref<1x384xf32, #tpu.memory_space<any>>
    %c13_i32_198 = arith.constant 13 : i32
    %c0_i32_199 = arith.constant 0 : i32
    %293 = tpu.memref_slice %arg4[%c13_i32_198, %c0_i32_199] : memref<48x384xf32, #tpu.memory_space<vmem>> -> memref<1x384xf32, #tpu.memory_space<vmem>>
    %294 = tpu.memref_slice %arg5[%c13_i32_196] : memref<48x!tpu.dma_semaphore, #tpu.memory_space<semaphore_mem>> -> memref<1x!tpu.dma_semaphore, #tpu.memory_space<semaphore_mem>>
    %295 = tpu.memref_squeeze %294 : memref<1x!tpu.dma_semaphore, #tpu.memory_space<semaphore_mem>> -> memref<!tpu.dma_semaphore, #tpu.memory_space<semaphore_mem>>
    tpu.wait_dma2 semaphore(%295 : memref<!tpu.dma_semaphore, #tpu.memory_space<semaphore_mem>>) src(%292 : memref<1x384xf32, #tpu.memory_space<any>>) dst(%293 : memref<1x384xf32, #tpu.memory_space<vmem>>)
    %c14_i32_200 = arith.constant 14 : i32
    %c0_i32_201 = arith.constant 0 : i32
    %296 = tpu.memref_slice %arg2[%70, %c0_i32_201] : memref<512x384xf32, #tpu.memory_space<any>> -> memref<1x384xf32, #tpu.memory_space<any>>
    %c14_i32_202 = arith.constant 14 : i32
    %c0_i32_203 = arith.constant 0 : i32
    %297 = tpu.memref_slice %arg4[%c14_i32_202, %c0_i32_203] : memref<48x384xf32, #tpu.memory_space<vmem>> -> memref<1x384xf32, #tpu.memory_space<vmem>>
    %298 = tpu.memref_slice %arg5[%c14_i32_200] : memref<48x!tpu.dma_semaphore, #tpu.memory_space<semaphore_mem>> -> memref<1x!tpu.dma_semaphore, #tpu.memory_space<semaphore_mem>>
    %299 = tpu.memref_squeeze %298 : memref<1x!tpu.dma_semaphore, #tpu.memory_space<semaphore_mem>> -> memref<!tpu.dma_semaphore, #tpu.memory_space<semaphore_mem>>
    tpu.wait_dma2 semaphore(%299 : memref<!tpu.dma_semaphore, #tpu.memory_space<semaphore_mem>>) src(%296 : memref<1x384xf32, #tpu.memory_space<any>>) dst(%297 : memref<1x384xf32, #tpu.memory_space<vmem>>)
    %c15_i32_204 = arith.constant 15 : i32
    %c0_i32_205 = arith.constant 0 : i32
    %300 = tpu.memref_slice %arg2[%75, %c0_i32_205] : memref<512x384xf32, #tpu.memory_space<any>> -> memref<1x384xf32, #tpu.memory_space<any>>
    %c15_i32_206 = arith.constant 15 : i32
    %c0_i32_207 = arith.constant 0 : i32
    %301 = tpu.memref_slice %arg4[%c15_i32_206, %c0_i32_207] : memref<48x384xf32, #tpu.memory_space<vmem>> -> memref<1x384xf32, #tpu.memory_space<vmem>>
    %302 = tpu.memref_slice %arg5[%c15_i32_204] : memref<48x!tpu.dma_semaphore, #tpu.memory_space<semaphore_mem>> -> memref<1x!tpu.dma_semaphore, #tpu.memory_space<semaphore_mem>>
    %303 = tpu.memref_squeeze %302 : memref<1x!tpu.dma_semaphore, #tpu.memory_space<semaphore_mem>> -> memref<!tpu.dma_semaphore, #tpu.memory_space<semaphore_mem>>
    tpu.wait_dma2 semaphore(%303 : memref<!tpu.dma_semaphore, #tpu.memory_space<semaphore_mem>>) src(%300 : memref<1x384xf32, #tpu.memory_space<any>>) dst(%301 : memref<1x384xf32, #tpu.memory_space<vmem>>)
    %c16_i32_208 = arith.constant 16 : i32
    %c0_i32_209 = arith.constant 0 : i32
    %304 = tpu.memref_slice %arg2[%80, %c0_i32_209] : memref<512x384xf32, #tpu.memory_space<any>> -> memref<1x384xf32, #tpu.memory_space<any>>
    %c16_i32_210 = arith.constant 16 : i32
    %c0_i32_211 = arith.constant 0 : i32
    %305 = tpu.memref_slice %arg4[%c16_i32_210, %c0_i32_211] : memref<48x384xf32, #tpu.memory_space<vmem>> -> memref<1x384xf32, #tpu.memory_space<vmem>>
    %306 = tpu.memref_slice %arg5[%c16_i32_208] : memref<48x!tpu.dma_semaphore, #tpu.memory_space<semaphore_mem>> -> memref<1x!tpu.dma_semaphore, #tpu.memory_space<semaphore_mem>>
    %307 = tpu.memref_squeeze %306 : memref<1x!tpu.dma_semaphore, #tpu.memory_space<semaphore_mem>> -> memref<!tpu.dma_semaphore, #tpu.memory_space<semaphore_mem>>
    tpu.wait_dma2 semaphore(%307 : memref<!tpu.dma_semaphore, #tpu.memory_space<semaphore_mem>>) src(%304 : memref<1x384xf32, #tpu.memory_space<any>>) dst(%305 : memref<1x384xf32, #tpu.memory_space<vmem>>)
    %c17_i32_212 = arith.constant 17 : i32
    %c0_i32_213 = arith.constant 0 : i32
    %308 = tpu.memref_slice %arg2[%85, %c0_i32_213] : memref<512x384xf32, #tpu.memory_space<any>> -> memref<1x384xf32, #tpu.memory_space<any>>
    %c17_i32_214 = arith.constant 17 : i32
    %c0_i32_215 = arith.constant 0 : i32
    %309 = tpu.memref_slice %arg4[%c17_i32_214, %c0_i32_215] : memref<48x384xf32, #tpu.memory_space<vmem>> -> memref<1x384xf32, #tpu.memory_space<vmem>>
    %310 = tpu.memref_slice %arg5[%c17_i32_212] : memref<48x!tpu.dma_semaphore, #tpu.memory_space<semaphore_mem>> -> memref<1x!tpu.dma_semaphore, #tpu.memory_space<semaphore_mem>>
    %311 = tpu.memref_squeeze %310 : memref<1x!tpu.dma_semaphore, #tpu.memory_space<semaphore_mem>> -> memref<!tpu.dma_semaphore, #tpu.memory_space<semaphore_mem>>
    tpu.wait_dma2 semaphore(%311 : memref<!tpu.dma_semaphore, #tpu.memory_space<semaphore_mem>>) src(%308 : memref<1x384xf32, #tpu.memory_space<any>>) dst(%309 : memref<1x384xf32, #tpu.memory_space<vmem>>)
    %c18_i32_216 = arith.constant 18 : i32
    %c0_i32_217 = arith.constant 0 : i32
    %312 = tpu.memref_slice %arg2[%90, %c0_i32_217] : memref<512x384xf32, #tpu.memory_space<any>> -> memref<1x384xf32, #tpu.memory_space<any>>
    %c18_i32_218 = arith.constant 18 : i32
    %c0_i32_219 = arith.constant 0 : i32
    %313 = tpu.memref_slice %arg4[%c18_i32_218, %c0_i32_219] : memref<48x384xf32, #tpu.memory_space<vmem>> -> memref<1x384xf32, #tpu.memory_space<vmem>>
    %314 = tpu.memref_slice %arg5[%c18_i32_216] : memref<48x!tpu.dma_semaphore, #tpu.memory_space<semaphore_mem>> -> memref<1x!tpu.dma_semaphore, #tpu.memory_space<semaphore_mem>>
    %315 = tpu.memref_squeeze %314 : memref<1x!tpu.dma_semaphore, #tpu.memory_space<semaphore_mem>> -> memref<!tpu.dma_semaphore, #tpu.memory_space<semaphore_mem>>
    tpu.wait_dma2 semaphore(%315 : memref<!tpu.dma_semaphore, #tpu.memory_space<semaphore_mem>>) src(%312 : memref<1x384xf32, #tpu.memory_space<any>>) dst(%313 : memref<1x384xf32, #tpu.memory_space<vmem>>)
    %c19_i32_220 = arith.constant 19 : i32
    %c0_i32_221 = arith.constant 0 : i32
    %316 = tpu.memref_slice %arg2[%95, %c0_i32_221] : memref<512x384xf32, #tpu.memory_space<any>> -> memref<1x384xf32, #tpu.memory_space<any>>
    %c19_i32_222 = arith.constant 19 : i32
    %c0_i32_223 = arith.constant 0 : i32
    %317 = tpu.memref_slice %arg4[%c19_i32_222, %c0_i32_223] : memref<48x384xf32, #tpu.memory_space<vmem>> -> memref<1x384xf32, #tpu.memory_space<vmem>>
    %318 = tpu.memref_slice %arg5[%c19_i32_220] : memref<48x!tpu.dma_semaphore, #tpu.memory_space<semaphore_mem>> -> memref<1x!tpu.dma_semaphore, #tpu.memory_space<semaphore_mem>>
    %319 = tpu.memref_squeeze %318 : memref<1x!tpu.dma_semaphore, #tpu.memory_space<semaphore_mem>> -> memref<!tpu.dma_semaphore, #tpu.memory_space<semaphore_mem>>
    tpu.wait_dma2 semaphore(%319 : memref<!tpu.dma_semaphore, #tpu.memory_space<semaphore_mem>>) src(%316 : memref<1x384xf32, #tpu.memory_space<any>>) dst(%317 : memref<1x384xf32, #tpu.memory_space<vmem>>)
    %c20_i32_224 = arith.constant 20 : i32
    %c0_i32_225 = arith.constant 0 : i32
    %320 = tpu.memref_slice %arg2[%100, %c0_i32_225] : memref<512x384xf32, #tpu.memory_space<any>> -> memref<1x384xf32, #tpu.memory_space<any>>
    %c20_i32_226 = arith.constant 20 : i32
    %c0_i32_227 = arith.constant 0 : i32
    %321 = tpu.memref_slice %arg4[%c20_i32_226, %c0_i32_227] : memref<48x384xf32, #tpu.memory_space<vmem>> -> memref<1x384xf32, #tpu.memory_space<vmem>>
    %322 = tpu.memref_slice %arg5[%c20_i32_224] : memref<48x!tpu.dma_semaphore, #tpu.memory_space<semaphore_mem>> -> memref<1x!tpu.dma_semaphore, #tpu.memory_space<semaphore_mem>>
    %323 = tpu.memref_squeeze %322 : memref<1x!tpu.dma_semaphore, #tpu.memory_space<semaphore_mem>> -> memref<!tpu.dma_semaphore, #tpu.memory_space<semaphore_mem>>
    tpu.wait_dma2 semaphore(%323 : memref<!tpu.dma_semaphore, #tpu.memory_space<semaphore_mem>>) src(%320 : memref<1x384xf32, #tpu.memory_space<any>>) dst(%321 : memref<1x384xf32, #tpu.memory_space<vmem>>)
    %c21_i32_228 = arith.constant 21 : i32
    %c0_i32_229 = arith.constant 0 : i32
    %324 = tpu.memref_slice %arg2[%105, %c0_i32_229] : memref<512x384xf32, #tpu.memory_space<any>> -> memref<1x384xf32, #tpu.memory_space<any>>
    %c21_i32_230 = arith.constant 21 : i32
    %c0_i32_231 = arith.constant 0 : i32
    %325 = tpu.memref_slice %arg4[%c21_i32_230, %c0_i32_231] : memref<48x384xf32, #tpu.memory_space<vmem>> -> memref<1x384xf32, #tpu.memory_space<vmem>>
    %326 = tpu.memref_slice %arg5[%c21_i32_228] : memref<48x!tpu.dma_semaphore, #tpu.memory_space<semaphore_mem>> -> memref<1x!tpu.dma_semaphore, #tpu.memory_space<semaphore_mem>>
    %327 = tpu.memref_squeeze %326 : memref<1x!tpu.dma_semaphore, #tpu.memory_space<semaphore_mem>> -> memref<!tpu.dma_semaphore, #tpu.memory_space<semaphore_mem>>
    tpu.wait_dma2 semaphore(%327 : memref<!tpu.dma_semaphore, #tpu.memory_space<semaphore_mem>>) src(%324 : memref<1x384xf32, #tpu.memory_space<any>>) dst(%325 : memref<1x384xf32, #tpu.memory_space<vmem>>)
    %c22_i32_232 = arith.constant 22 : i32
    %c0_i32_233 = arith.constant 0 : i32
    %328 = tpu.memref_slice %arg2[%110, %c0_i32_233] : memref<512x384xf32, #tpu.memory_space<any>> -> memref<1x384xf32, #tpu.memory_space<any>>
    %c22_i32_234 = arith.constant 22 : i32
    %c0_i32_235 = arith.constant 0 : i32
    %329 = tpu.memref_slice %arg4[%c22_i32_234, %c0_i32_235] : memref<48x384xf32, #tpu.memory_space<vmem>> -> memref<1x384xf32, #tpu.memory_space<vmem>>
    %330 = tpu.memref_slice %arg5[%c22_i32_232] : memref<48x!tpu.dma_semaphore, #tpu.memory_space<semaphore_mem>> -> memref<1x!tpu.dma_semaphore, #tpu.memory_space<semaphore_mem>>
    %331 = tpu.memref_squeeze %330 : memref<1x!tpu.dma_semaphore, #tpu.memory_space<semaphore_mem>> -> memref<!tpu.dma_semaphore, #tpu.memory_space<semaphore_mem>>
    tpu.wait_dma2 semaphore(%331 : memref<!tpu.dma_semaphore, #tpu.memory_space<semaphore_mem>>) src(%328 : memref<1x384xf32, #tpu.memory_space<any>>) dst(%329 : memref<1x384xf32, #tpu.memory_space<vmem>>)
    %c23_i32_236 = arith.constant 23 : i32
    %c0_i32_237 = arith.constant 0 : i32
    %332 = tpu.memref_slice %arg2[%115, %c0_i32_237] : memref<512x384xf32, #tpu.memory_space<any>> -> memref<1x384xf32, #tpu.memory_space<any>>
    %c23_i32_238 = arith.constant 23 : i32
    %c0_i32_239 = arith.constant 0 : i32
    %333 = tpu.memref_slice %arg4[%c23_i32_238, %c0_i32_239] : memref<48x384xf32, #tpu.memory_space<vmem>> -> memref<1x384xf32, #tpu.memory_space<vmem>>
    %334 = tpu.memref_slice %arg5[%c23_i32_236] : memref<48x!tpu.dma_semaphore, #tpu.memory_space<semaphore_mem>> -> memref<1x!tpu.dma_semaphore, #tpu.memory_space<semaphore_mem>>
    %335 = tpu.memref_squeeze %334 : memref<1x!tpu.dma_semaphore, #tpu.memory_space<semaphore_mem>> -> memref<!tpu.dma_semaphore, #tpu.memory_space<semaphore_mem>>
    tpu.wait_dma2 semaphore(%335 : memref<!tpu.dma_semaphore, #tpu.memory_space<semaphore_mem>>) src(%332 : memref<1x384xf32, #tpu.memory_space<any>>) dst(%333 : memref<1x384xf32, #tpu.memory_space<vmem>>)
    %c24_i32_240 = arith.constant 24 : i32
    %c0_i32_241 = arith.constant 0 : i32
    %336 = tpu.memref_slice %arg2[%120, %c0_i32_241] : memref<512x384xf32, #tpu.memory_space<any>> -> memref<1x384xf32, #tpu.memory_space<any>>
    %c24_i32_242 = arith.constant 24 : i32
    %c0_i32_243 = arith.constant 0 : i32
    %337 = tpu.memref_slice %arg4[%c24_i32_242, %c0_i32_243] : memref<48x384xf32, #tpu.memory_space<vmem>> -> memref<1x384xf32, #tpu.memory_space<vmem>>
    %338 = tpu.memref_slice %arg5[%c24_i32_240] : memref<48x!tpu.dma_semaphore, #tpu.memory_space<semaphore_mem>> -> memref<1x!tpu.dma_semaphore, #tpu.memory_space<semaphore_mem>>
    %339 = tpu.memref_squeeze %338 : memref<1x!tpu.dma_semaphore, #tpu.memory_space<semaphore_mem>> -> memref<!tpu.dma_semaphore, #tpu.memory_space<semaphore_mem>>
    tpu.wait_dma2 semaphore(%339 : memref<!tpu.dma_semaphore, #tpu.memory_space<semaphore_mem>>) src(%336 : memref<1x384xf32, #tpu.memory_space<any>>) dst(%337 : memref<1x384xf32, #tpu.memory_space<vmem>>)
    %c25_i32_244 = arith.constant 25 : i32
    %c0_i32_245 = arith.constant 0 : i32
    %340 = tpu.memref_slice %arg2[%125, %c0_i32_245] : memref<512x384xf32, #tpu.memory_space<any>> -> memref<1x384xf32, #tpu.memory_space<any>>
    %c25_i32_246 = arith.constant 25 : i32
    %c0_i32_247 = arith.constant 0 : i32
    %341 = tpu.memref_slice %arg4[%c25_i32_246, %c0_i32_247] : memref<48x384xf32, #tpu.memory_space<vmem>> -> memref<1x384xf32, #tpu.memory_space<vmem>>
    %342 = tpu.memref_slice %arg5[%c25_i32_244] : memref<48x!tpu.dma_semaphore, #tpu.memory_space<semaphore_mem>> -> memref<1x!tpu.dma_semaphore, #tpu.memory_space<semaphore_mem>>
    %343 = tpu.memref_squeeze %342 : memref<1x!tpu.dma_semaphore, #tpu.memory_space<semaphore_mem>> -> memref<!tpu.dma_semaphore, #tpu.memory_space<semaphore_mem>>
    tpu.wait_dma2 semaphore(%343 : memref<!tpu.dma_semaphore, #tpu.memory_space<semaphore_mem>>) src(%340 : memref<1x384xf32, #tpu.memory_space<any>>) dst(%341 : memref<1x384xf32, #tpu.memory_space<vmem>>)
    %c26_i32_248 = arith.constant 26 : i32
    %c0_i32_249 = arith.constant 0 : i32
    %344 = tpu.memref_slice %arg2[%130, %c0_i32_249] : memref<512x384xf32, #tpu.memory_space<any>> -> memref<1x384xf32, #tpu.memory_space<any>>
    %c26_i32_250 = arith.constant 26 : i32
    %c0_i32_251 = arith.constant 0 : i32
    %345 = tpu.memref_slice %arg4[%c26_i32_250, %c0_i32_251] : memref<48x384xf32, #tpu.memory_space<vmem>> -> memref<1x384xf32, #tpu.memory_space<vmem>>
    %346 = tpu.memref_slice %arg5[%c26_i32_248] : memref<48x!tpu.dma_semaphore, #tpu.memory_space<semaphore_mem>> -> memref<1x!tpu.dma_semaphore, #tpu.memory_space<semaphore_mem>>
    %347 = tpu.memref_squeeze %346 : memref<1x!tpu.dma_semaphore, #tpu.memory_space<semaphore_mem>> -> memref<!tpu.dma_semaphore, #tpu.memory_space<semaphore_mem>>
    tpu.wait_dma2 semaphore(%347 : memref<!tpu.dma_semaphore, #tpu.memory_space<semaphore_mem>>) src(%344 : memref<1x384xf32, #tpu.memory_space<any>>) dst(%345 : memref<1x384xf32, #tpu.memory_space<vmem>>)
    %c27_i32_252 = arith.constant 27 : i32
    %c0_i32_253 = arith.constant 0 : i32
    %348 = tpu.memref_slice %arg2[%135, %c0_i32_253] : memref<512x384xf32, #tpu.memory_space<any>> -> memref<1x384xf32, #tpu.memory_space<any>>
    %c27_i32_254 = arith.constant 27 : i32
    %c0_i32_255 = arith.constant 0 : i32
    %349 = tpu.memref_slice %arg4[%c27_i32_254, %c0_i32_255] : memref<48x384xf32, #tpu.memory_space<vmem>> -> memref<1x384xf32, #tpu.memory_space<vmem>>
    %350 = tpu.memref_slice %arg5[%c27_i32_252] : memref<48x!tpu.dma_semaphore, #tpu.memory_space<semaphore_mem>> -> memref<1x!tpu.dma_semaphore, #tpu.memory_space<semaphore_mem>>
    %351 = tpu.memref_squeeze %350 : memref<1x!tpu.dma_semaphore, #tpu.memory_space<semaphore_mem>> -> memref<!tpu.dma_semaphore, #tpu.memory_space<semaphore_mem>>
    tpu.wait_dma2 semaphore(%351 : memref<!tpu.dma_semaphore, #tpu.memory_space<semaphore_mem>>) src(%348 : memref<1x384xf32, #tpu.memory_space<any>>) dst(%349 : memref<1x384xf32, #tpu.memory_space<vmem>>)
    %c28_i32_256 = arith.constant 28 : i32
    %c0_i32_257 = arith.constant 0 : i32
    %352 = tpu.memref_slice %arg2[%140, %c0_i32_257] : memref<512x384xf32, #tpu.memory_space<any>> -> memref<1x384xf32, #tpu.memory_space<any>>
    %c28_i32_258 = arith.constant 28 : i32
    %c0_i32_259 = arith.constant 0 : i32
    %353 = tpu.memref_slice %arg4[%c28_i32_258, %c0_i32_259] : memref<48x384xf32, #tpu.memory_space<vmem>> -> memref<1x384xf32, #tpu.memory_space<vmem>>
    %354 = tpu.memref_slice %arg5[%c28_i32_256] : memref<48x!tpu.dma_semaphore, #tpu.memory_space<semaphore_mem>> -> memref<1x!tpu.dma_semaphore, #tpu.memory_space<semaphore_mem>>
    %355 = tpu.memref_squeeze %354 : memref<1x!tpu.dma_semaphore, #tpu.memory_space<semaphore_mem>> -> memref<!tpu.dma_semaphore, #tpu.memory_space<semaphore_mem>>
    tpu.wait_dma2 semaphore(%355 : memref<!tpu.dma_semaphore, #tpu.memory_space<semaphore_mem>>) src(%352 : memref<1x384xf32, #tpu.memory_space<any>>) dst(%353 : memref<1x384xf32, #tpu.memory_space<vmem>>)
    %c29_i32_260 = arith.constant 29 : i32
    %c0_i32_261 = arith.constant 0 : i32
    %356 = tpu.memref_slice %arg2[%145, %c0_i32_261] : memref<512x384xf32, #tpu.memory_space<any>> -> memref<1x384xf32, #tpu.memory_space<any>>
    %c29_i32_262 = arith.constant 29 : i32
    %c0_i32_263 = arith.constant 0 : i32
    %357 = tpu.memref_slice %arg4[%c29_i32_262, %c0_i32_263] : memref<48x384xf32, #tpu.memory_space<vmem>> -> memref<1x384xf32, #tpu.memory_space<vmem>>
    %358 = tpu.memref_slice %arg5[%c29_i32_260] : memref<48x!tpu.dma_semaphore, #tpu.memory_space<semaphore_mem>> -> memref<1x!tpu.dma_semaphore, #tpu.memory_space<semaphore_mem>>
    %359 = tpu.memref_squeeze %358 : memref<1x!tpu.dma_semaphore, #tpu.memory_space<semaphore_mem>> -> memref<!tpu.dma_semaphore, #tpu.memory_space<semaphore_mem>>
    tpu.wait_dma2 semaphore(%359 : memref<!tpu.dma_semaphore, #tpu.memory_space<semaphore_mem>>) src(%356 : memref<1x384xf32, #tpu.memory_space<any>>) dst(%357 : memref<1x384xf32, #tpu.memory_space<vmem>>)
    %c30_i32_264 = arith.constant 30 : i32
    %c0_i32_265 = arith.constant 0 : i32
    %360 = tpu.memref_slice %arg2[%150, %c0_i32_265] : memref<512x384xf32, #tpu.memory_space<any>> -> memref<1x384xf32, #tpu.memory_space<any>>
    %c30_i32_266 = arith.constant 30 : i32
    %c0_i32_267 = arith.constant 0 : i32
    %361 = tpu.memref_slice %arg4[%c30_i32_266, %c0_i32_267] : memref<48x384xf32, #tpu.memory_space<vmem>> -> memref<1x384xf32, #tpu.memory_space<vmem>>
    %362 = tpu.memref_slice %arg5[%c30_i32_264] : memref<48x!tpu.dma_semaphore, #tpu.memory_space<semaphore_mem>> -> memref<1x!tpu.dma_semaphore, #tpu.memory_space<semaphore_mem>>
    %363 = tpu.memref_squeeze %362 : memref<1x!tpu.dma_semaphore, #tpu.memory_space<semaphore_mem>> -> memref<!tpu.dma_semaphore, #tpu.memory_space<semaphore_mem>>
    tpu.wait_dma2 semaphore(%363 : memref<!tpu.dma_semaphore, #tpu.memory_space<semaphore_mem>>) src(%360 : memref<1x384xf32, #tpu.memory_space<any>>) dst(%361 : memref<1x384xf32, #tpu.memory_space<vmem>>)
    %c31_i32_268 = arith.constant 31 : i32
    %c0_i32_269 = arith.constant 0 : i32
    %364 = tpu.memref_slice %arg2[%155, %c0_i32_269] : memref<512x384xf32, #tpu.memory_space<any>> -> memref<1x384xf32, #tpu.memory_space<any>>
    %c31_i32_270 = arith.constant 31 : i32
    %c0_i32_271 = arith.constant 0 : i32
    %365 = tpu.memref_slice %arg4[%c31_i32_270, %c0_i32_271] : memref<48x384xf32, #tpu.memory_space<vmem>> -> memref<1x384xf32, #tpu.memory_space<vmem>>
    %366 = tpu.memref_slice %arg5[%c31_i32_268] : memref<48x!tpu.dma_semaphore, #tpu.memory_space<semaphore_mem>> -> memref<1x!tpu.dma_semaphore, #tpu.memory_space<semaphore_mem>>
    %367 = tpu.memref_squeeze %366 : memref<1x!tpu.dma_semaphore, #tpu.memory_space<semaphore_mem>> -> memref<!tpu.dma_semaphore, #tpu.memory_space<semaphore_mem>>
    tpu.wait_dma2 semaphore(%367 : memref<!tpu.dma_semaphore, #tpu.memory_space<semaphore_mem>>) src(%364 : memref<1x384xf32, #tpu.memory_space<any>>) dst(%365 : memref<1x384xf32, #tpu.memory_space<vmem>>)
    %c32_i32_272 = arith.constant 32 : i32
    %c0_i32_273 = arith.constant 0 : i32
    %368 = tpu.memref_slice %arg2[%160, %c0_i32_273] : memref<512x384xf32, #tpu.memory_space<any>> -> memref<1x384xf32, #tpu.memory_space<any>>
    %c32_i32_274 = arith.constant 32 : i32
    %c0_i32_275 = arith.constant 0 : i32
    %369 = tpu.memref_slice %arg4[%c32_i32_274, %c0_i32_275] : memref<48x384xf32, #tpu.memory_space<vmem>> -> memref<1x384xf32, #tpu.memory_space<vmem>>
    %370 = tpu.memref_slice %arg5[%c32_i32_272] : memref<48x!tpu.dma_semaphore, #tpu.memory_space<semaphore_mem>> -> memref<1x!tpu.dma_semaphore, #tpu.memory_space<semaphore_mem>>
    %371 = tpu.memref_squeeze %370 : memref<1x!tpu.dma_semaphore, #tpu.memory_space<semaphore_mem>> -> memref<!tpu.dma_semaphore, #tpu.memory_space<semaphore_mem>>
    tpu.wait_dma2 semaphore(%371 : memref<!tpu.dma_semaphore, #tpu.memory_space<semaphore_mem>>) src(%368 : memref<1x384xf32, #tpu.memory_space<any>>) dst(%369 : memref<1x384xf32, #tpu.memory_space<vmem>>)
    %c33_i32_276 = arith.constant 33 : i32
    %c0_i32_277 = arith.constant 0 : i32
    %372 = tpu.memref_slice %arg2[%165, %c0_i32_277] : memref<512x384xf32, #tpu.memory_space<any>> -> memref<1x384xf32, #tpu.memory_space<any>>
    %c33_i32_278 = arith.constant 33 : i32
    %c0_i32_279 = arith.constant 0 : i32
    %373 = tpu.memref_slice %arg4[%c33_i32_278, %c0_i32_279] : memref<48x384xf32, #tpu.memory_space<vmem>> -> memref<1x384xf32, #tpu.memory_space<vmem>>
    %374 = tpu.memref_slice %arg5[%c33_i32_276] : memref<48x!tpu.dma_semaphore, #tpu.memory_space<semaphore_mem>> -> memref<1x!tpu.dma_semaphore, #tpu.memory_space<semaphore_mem>>
    %375 = tpu.memref_squeeze %374 : memref<1x!tpu.dma_semaphore, #tpu.memory_space<semaphore_mem>> -> memref<!tpu.dma_semaphore, #tpu.memory_space<semaphore_mem>>
    tpu.wait_dma2 semaphore(%375 : memref<!tpu.dma_semaphore, #tpu.memory_space<semaphore_mem>>) src(%372 : memref<1x384xf32, #tpu.memory_space<any>>) dst(%373 : memref<1x384xf32, #tpu.memory_space<vmem>>)
    %c34_i32_280 = arith.constant 34 : i32
    %c0_i32_281 = arith.constant 0 : i32
    %376 = tpu.memref_slice %arg2[%170, %c0_i32_281] : memref<512x384xf32, #tpu.memory_space<any>> -> memref<1x384xf32, #tpu.memory_space<any>>
    %c34_i32_282 = arith.constant 34 : i32
    %c0_i32_283 = arith.constant 0 : i32
    %377 = tpu.memref_slice %arg4[%c34_i32_282, %c0_i32_283] : memref<48x384xf32, #tpu.memory_space<vmem>> -> memref<1x384xf32, #tpu.memory_space<vmem>>
    %378 = tpu.memref_slice %arg5[%c34_i32_280] : memref<48x!tpu.dma_semaphore, #tpu.memory_space<semaphore_mem>> -> memref<1x!tpu.dma_semaphore, #tpu.memory_space<semaphore_mem>>
    %379 = tpu.memref_squeeze %378 : memref<1x!tpu.dma_semaphore, #tpu.memory_space<semaphore_mem>> -> memref<!tpu.dma_semaphore, #tpu.memory_space<semaphore_mem>>
    tpu.wait_dma2 semaphore(%379 : memref<!tpu.dma_semaphore, #tpu.memory_space<semaphore_mem>>) src(%376 : memref<1x384xf32, #tpu.memory_space<any>>) dst(%377 : memref<1x384xf32, #tpu.memory_space<vmem>>)
    %c35_i32_284 = arith.constant 35 : i32
    %c0_i32_285 = arith.constant 0 : i32
    %380 = tpu.memref_slice %arg2[%175, %c0_i32_285] : memref<512x384xf32, #tpu.memory_space<any>> -> memref<1x384xf32, #tpu.memory_space<any>>
    %c35_i32_286 = arith.constant 35 : i32
    %c0_i32_287 = arith.constant 0 : i32
    %381 = tpu.memref_slice %arg4[%c35_i32_286, %c0_i32_287] : memref<48x384xf32, #tpu.memory_space<vmem>> -> memref<1x384xf32, #tpu.memory_space<vmem>>
    %382 = tpu.memref_slice %arg5[%c35_i32_284] : memref<48x!tpu.dma_semaphore, #tpu.memory_space<semaphore_mem>> -> memref<1x!tpu.dma_semaphore, #tpu.memory_space<semaphore_mem>>
    %383 = tpu.memref_squeeze %382 : memref<1x!tpu.dma_semaphore, #tpu.memory_space<semaphore_mem>> -> memref<!tpu.dma_semaphore, #tpu.memory_space<semaphore_mem>>
    tpu.wait_dma2 semaphore(%383 : memref<!tpu.dma_semaphore, #tpu.memory_space<semaphore_mem>>) src(%380 : memref<1x384xf32, #tpu.memory_space<any>>) dst(%381 : memref<1x384xf32, #tpu.memory_space<vmem>>)
    %c36_i32_288 = arith.constant 36 : i32
    %c0_i32_289 = arith.constant 0 : i32
    %384 = tpu.memref_slice %arg2[%180, %c0_i32_289] : memref<512x384xf32, #tpu.memory_space<any>> -> memref<1x384xf32, #tpu.memory_space<any>>
    %c36_i32_290 = arith.constant 36 : i32
    %c0_i32_291 = arith.constant 0 : i32
    %385 = tpu.memref_slice %arg4[%c36_i32_290, %c0_i32_291] : memref<48x384xf32, #tpu.memory_space<vmem>> -> memref<1x384xf32, #tpu.memory_space<vmem>>
    %386 = tpu.memref_slice %arg5[%c36_i32_288] : memref<48x!tpu.dma_semaphore, #tpu.memory_space<semaphore_mem>> -> memref<1x!tpu.dma_semaphore, #tpu.memory_space<semaphore_mem>>
    %387 = tpu.memref_squeeze %386 : memref<1x!tpu.dma_semaphore, #tpu.memory_space<semaphore_mem>> -> memref<!tpu.dma_semaphore, #tpu.memory_space<semaphore_mem>>
    tpu.wait_dma2 semaphore(%387 : memref<!tpu.dma_semaphore, #tpu.memory_space<semaphore_mem>>) src(%384 : memref<1x384xf32, #tpu.memory_space<any>>) dst(%385 : memref<1x384xf32, #tpu.memory_space<vmem>>)
    %c37_i32_292 = arith.constant 37 : i32
    %c0_i32_293 = arith.constant 0 : i32
    %388 = tpu.memref_slice %arg2[%185, %c0_i32_293] : memref<512x384xf32, #tpu.memory_space<any>> -> memref<1x384xf32, #tpu.memory_space<any>>
    %c37_i32_294 = arith.constant 37 : i32
    %c0_i32_295 = arith.constant 0 : i32
    %389 = tpu.memref_slice %arg4[%c37_i32_294, %c0_i32_295] : memref<48x384xf32, #tpu.memory_space<vmem>> -> memref<1x384xf32, #tpu.memory_space<vmem>>
    %390 = tpu.memref_slice %arg5[%c37_i32_292] : memref<48x!tpu.dma_semaphore, #tpu.memory_space<semaphore_mem>> -> memref<1x!tpu.dma_semaphore, #tpu.memory_space<semaphore_mem>>
    %391 = tpu.memref_squeeze %390 : memref<1x!tpu.dma_semaphore, #tpu.memory_space<semaphore_mem>> -> memref<!tpu.dma_semaphore, #tpu.memory_space<semaphore_mem>>
    tpu.wait_dma2 semaphore(%391 : memref<!tpu.dma_semaphore, #tpu.memory_space<semaphore_mem>>) src(%388 : memref<1x384xf32, #tpu.memory_space<any>>) dst(%389 : memref<1x384xf32, #tpu.memory_space<vmem>>)
    %c38_i32_296 = arith.constant 38 : i32
    %c0_i32_297 = arith.constant 0 : i32
    %392 = tpu.memref_slice %arg2[%190, %c0_i32_297] : memref<512x384xf32, #tpu.memory_space<any>> -> memref<1x384xf32, #tpu.memory_space<any>>
    %c38_i32_298 = arith.constant 38 : i32
    %c0_i32_299 = arith.constant 0 : i32
    %393 = tpu.memref_slice %arg4[%c38_i32_298, %c0_i32_299] : memref<48x384xf32, #tpu.memory_space<vmem>> -> memref<1x384xf32, #tpu.memory_space<vmem>>
    %394 = tpu.memref_slice %arg5[%c38_i32_296] : memref<48x!tpu.dma_semaphore, #tpu.memory_space<semaphore_mem>> -> memref<1x!tpu.dma_semaphore, #tpu.memory_space<semaphore_mem>>
    %395 = tpu.memref_squeeze %394 : memref<1x!tpu.dma_semaphore, #tpu.memory_space<semaphore_mem>> -> memref<!tpu.dma_semaphore, #tpu.memory_space<semaphore_mem>>
    tpu.wait_dma2 semaphore(%395 : memref<!tpu.dma_semaphore, #tpu.memory_space<semaphore_mem>>) src(%392 : memref<1x384xf32, #tpu.memory_space<any>>) dst(%393 : memref<1x384xf32, #tpu.memory_space<vmem>>)
    %c39_i32_300 = arith.constant 39 : i32
    %c0_i32_301 = arith.constant 0 : i32
    %396 = tpu.memref_slice %arg2[%195, %c0_i32_301] : memref<512x384xf32, #tpu.memory_space<any>> -> memref<1x384xf32, #tpu.memory_space<any>>
    %c39_i32_302 = arith.constant 39 : i32
    %c0_i32_303 = arith.constant 0 : i32
    %397 = tpu.memref_slice %arg4[%c39_i32_302, %c0_i32_303] : memref<48x384xf32, #tpu.memory_space<vmem>> -> memref<1x384xf32, #tpu.memory_space<vmem>>
    %398 = tpu.memref_slice %arg5[%c39_i32_300] : memref<48x!tpu.dma_semaphore, #tpu.memory_space<semaphore_mem>> -> memref<1x!tpu.dma_semaphore, #tpu.memory_space<semaphore_mem>>
    %399 = tpu.memref_squeeze %398 : memref<1x!tpu.dma_semaphore, #tpu.memory_space<semaphore_mem>> -> memref<!tpu.dma_semaphore, #tpu.memory_space<semaphore_mem>>
    tpu.wait_dma2 semaphore(%399 : memref<!tpu.dma_semaphore, #tpu.memory_space<semaphore_mem>>) src(%396 : memref<1x384xf32, #tpu.memory_space<any>>) dst(%397 : memref<1x384xf32, #tpu.memory_space<vmem>>)
    %c40_i32_304 = arith.constant 40 : i32
    %c0_i32_305 = arith.constant 0 : i32
    %400 = tpu.memref_slice %arg2[%200, %c0_i32_305] : memref<512x384xf32, #tpu.memory_space<any>> -> memref<1x384xf32, #tpu.memory_space<any>>
    %c40_i32_306 = arith.constant 40 : i32
    %c0_i32_307 = arith.constant 0 : i32
    %401 = tpu.memref_slice %arg4[%c40_i32_306, %c0_i32_307] : memref<48x384xf32, #tpu.memory_space<vmem>> -> memref<1x384xf32, #tpu.memory_space<vmem>>
    %402 = tpu.memref_slice %arg5[%c40_i32_304] : memref<48x!tpu.dma_semaphore, #tpu.memory_space<semaphore_mem>> -> memref<1x!tpu.dma_semaphore, #tpu.memory_space<semaphore_mem>>
    %403 = tpu.memref_squeeze %402 : memref<1x!tpu.dma_semaphore, #tpu.memory_space<semaphore_mem>> -> memref<!tpu.dma_semaphore, #tpu.memory_space<semaphore_mem>>
    tpu.wait_dma2 semaphore(%403 : memref<!tpu.dma_semaphore, #tpu.memory_space<semaphore_mem>>) src(%400 : memref<1x384xf32, #tpu.memory_space<any>>) dst(%401 : memref<1x384xf32, #tpu.memory_space<vmem>>)
    %c41_i32_308 = arith.constant 41 : i32
    %c0_i32_309 = arith.constant 0 : i32
    %404 = tpu.memref_slice %arg2[%205, %c0_i32_309] : memref<512x384xf32, #tpu.memory_space<any>> -> memref<1x384xf32, #tpu.memory_space<any>>
    %c41_i32_310 = arith.constant 41 : i32
    %c0_i32_311 = arith.constant 0 : i32
    %405 = tpu.memref_slice %arg4[%c41_i32_310, %c0_i32_311] : memref<48x384xf32, #tpu.memory_space<vmem>> -> memref<1x384xf32, #tpu.memory_space<vmem>>
    %406 = tpu.memref_slice %arg5[%c41_i32_308] : memref<48x!tpu.dma_semaphore, #tpu.memory_space<semaphore_mem>> -> memref<1x!tpu.dma_semaphore, #tpu.memory_space<semaphore_mem>>
    %407 = tpu.memref_squeeze %406 : memref<1x!tpu.dma_semaphore, #tpu.memory_space<semaphore_mem>> -> memref<!tpu.dma_semaphore, #tpu.memory_space<semaphore_mem>>
    tpu.wait_dma2 semaphore(%407 : memref<!tpu.dma_semaphore, #tpu.memory_space<semaphore_mem>>) src(%404 : memref<1x384xf32, #tpu.memory_space<any>>) dst(%405 : memref<1x384xf32, #tpu.memory_space<vmem>>)
    %c42_i32_312 = arith.constant 42 : i32
    %c0_i32_313 = arith.constant 0 : i32
    %408 = tpu.memref_slice %arg2[%210, %c0_i32_313] : memref<512x384xf32, #tpu.memory_space<any>> -> memref<1x384xf32, #tpu.memory_space<any>>
    %c42_i32_314 = arith.constant 42 : i32
    %c0_i32_315 = arith.constant 0 : i32
    %409 = tpu.memref_slice %arg4[%c42_i32_314, %c0_i32_315] : memref<48x384xf32, #tpu.memory_space<vmem>> -> memref<1x384xf32, #tpu.memory_space<vmem>>
    %410 = tpu.memref_slice %arg5[%c42_i32_312] : memref<48x!tpu.dma_semaphore, #tpu.memory_space<semaphore_mem>> -> memref<1x!tpu.dma_semaphore, #tpu.memory_space<semaphore_mem>>
    %411 = tpu.memref_squeeze %410 : memref<1x!tpu.dma_semaphore, #tpu.memory_space<semaphore_mem>> -> memref<!tpu.dma_semaphore, #tpu.memory_space<semaphore_mem>>
    tpu.wait_dma2 semaphore(%411 : memref<!tpu.dma_semaphore, #tpu.memory_space<semaphore_mem>>) src(%408 : memref<1x384xf32, #tpu.memory_space<any>>) dst(%409 : memref<1x384xf32, #tpu.memory_space<vmem>>)
    %c43_i32_316 = arith.constant 43 : i32
    %c0_i32_317 = arith.constant 0 : i32
    %412 = tpu.memref_slice %arg2[%215, %c0_i32_317] : memref<512x384xf32, #tpu.memory_space<any>> -> memref<1x384xf32, #tpu.memory_space<any>>
    %c43_i32_318 = arith.constant 43 : i32
    %c0_i32_319 = arith.constant 0 : i32
    %413 = tpu.memref_slice %arg4[%c43_i32_318, %c0_i32_319] : memref<48x384xf32, #tpu.memory_space<vmem>> -> memref<1x384xf32, #tpu.memory_space<vmem>>
    %414 = tpu.memref_slice %arg5[%c43_i32_316] : memref<48x!tpu.dma_semaphore, #tpu.memory_space<semaphore_mem>> -> memref<1x!tpu.dma_semaphore, #tpu.memory_space<semaphore_mem>>
    %415 = tpu.memref_squeeze %414 : memref<1x!tpu.dma_semaphore, #tpu.memory_space<semaphore_mem>> -> memref<!tpu.dma_semaphore, #tpu.memory_space<semaphore_mem>>
    tpu.wait_dma2 semaphore(%415 : memref<!tpu.dma_semaphore, #tpu.memory_space<semaphore_mem>>) src(%412 : memref<1x384xf32, #tpu.memory_space<any>>) dst(%413 : memref<1x384xf32, #tpu.memory_space<vmem>>)
    %c44_i32_320 = arith.constant 44 : i32
    %c0_i32_321 = arith.constant 0 : i32
    %416 = tpu.memref_slice %arg2[%220, %c0_i32_321] : memref<512x384xf32, #tpu.memory_space<any>> -> memref<1x384xf32, #tpu.memory_space<any>>
    %c44_i32_322 = arith.constant 44 : i32
    %c0_i32_323 = arith.constant 0 : i32
    %417 = tpu.memref_slice %arg4[%c44_i32_322, %c0_i32_323] : memref<48x384xf32, #tpu.memory_space<vmem>> -> memref<1x384xf32, #tpu.memory_space<vmem>>
    %418 = tpu.memref_slice %arg5[%c44_i32_320] : memref<48x!tpu.dma_semaphore, #tpu.memory_space<semaphore_mem>> -> memref<1x!tpu.dma_semaphore, #tpu.memory_space<semaphore_mem>>
    %419 = tpu.memref_squeeze %418 : memref<1x!tpu.dma_semaphore, #tpu.memory_space<semaphore_mem>> -> memref<!tpu.dma_semaphore, #tpu.memory_space<semaphore_mem>>
    tpu.wait_dma2 semaphore(%419 : memref<!tpu.dma_semaphore, #tpu.memory_space<semaphore_mem>>) src(%416 : memref<1x384xf32, #tpu.memory_space<any>>) dst(%417 : memref<1x384xf32, #tpu.memory_space<vmem>>)
    %c45_i32_324 = arith.constant 45 : i32
    %c0_i32_325 = arith.constant 0 : i32
    %420 = tpu.memref_slice %arg2[%225, %c0_i32_325] : memref<512x384xf32, #tpu.memory_space<any>> -> memref<1x384xf32, #tpu.memory_space<any>>
    %c45_i32_326 = arith.constant 45 : i32
    %c0_i32_327 = arith.constant 0 : i32
    %421 = tpu.memref_slice %arg4[%c45_i32_326, %c0_i32_327] : memref<48x384xf32, #tpu.memory_space<vmem>> -> memref<1x384xf32, #tpu.memory_space<vmem>>
    %422 = tpu.memref_slice %arg5[%c45_i32_324] : memref<48x!tpu.dma_semaphore, #tpu.memory_space<semaphore_mem>> -> memref<1x!tpu.dma_semaphore, #tpu.memory_space<semaphore_mem>>
    %423 = tpu.memref_squeeze %422 : memref<1x!tpu.dma_semaphore, #tpu.memory_space<semaphore_mem>> -> memref<!tpu.dma_semaphore, #tpu.memory_space<semaphore_mem>>
    tpu.wait_dma2 semaphore(%423 : memref<!tpu.dma_semaphore, #tpu.memory_space<semaphore_mem>>) src(%420 : memref<1x384xf32, #tpu.memory_space<any>>) dst(%421 : memref<1x384xf32, #tpu.memory_space<vmem>>)
    %c46_i32_328 = arith.constant 46 : i32
    %c0_i32_329 = arith.constant 0 : i32
    %424 = tpu.memref_slice %arg2[%230, %c0_i32_329] : memref<512x384xf32, #tpu.memory_space<any>> -> memref<1x384xf32, #tpu.memory_space<any>>
    %c46_i32_330 = arith.constant 46 : i32
    %c0_i32_331 = arith.constant 0 : i32
    %425 = tpu.memref_slice %arg4[%c46_i32_330, %c0_i32_331] : memref<48x384xf32, #tpu.memory_space<vmem>> -> memref<1x384xf32, #tpu.memory_space<vmem>>
    %426 = tpu.memref_slice %arg5[%c46_i32_328] : memref<48x!tpu.dma_semaphore, #tpu.memory_space<semaphore_mem>> -> memref<1x!tpu.dma_semaphore, #tpu.memory_space<semaphore_mem>>
    %427 = tpu.memref_squeeze %426 : memref<1x!tpu.dma_semaphore, #tpu.memory_space<semaphore_mem>> -> memref<!tpu.dma_semaphore, #tpu.memory_space<semaphore_mem>>
    tpu.wait_dma2 semaphore(%427 : memref<!tpu.dma_semaphore, #tpu.memory_space<semaphore_mem>>) src(%424 : memref<1x384xf32, #tpu.memory_space<any>>) dst(%425 : memref<1x384xf32, #tpu.memory_space<vmem>>)
    %c47_i32_332 = arith.constant 47 : i32
    %c0_i32_333 = arith.constant 0 : i32
    %428 = tpu.memref_slice %arg2[%235, %c0_i32_333] : memref<512x384xf32, #tpu.memory_space<any>> -> memref<1x384xf32, #tpu.memory_space<any>>
    %c47_i32_334 = arith.constant 47 : i32
    %c0_i32_335 = arith.constant 0 : i32
    %429 = tpu.memref_slice %arg4[%c47_i32_334, %c0_i32_335] : memref<48x384xf32, #tpu.memory_space<vmem>> -> memref<1x384xf32, #tpu.memory_space<vmem>>
    %430 = tpu.memref_slice %arg5[%c47_i32_332] : memref<48x!tpu.dma_semaphore, #tpu.memory_space<semaphore_mem>> -> memref<1x!tpu.dma_semaphore, #tpu.memory_space<semaphore_mem>>
    %431 = tpu.memref_squeeze %430 : memref<1x!tpu.dma_semaphore, #tpu.memory_space<semaphore_mem>> -> memref<!tpu.dma_semaphore, #tpu.memory_space<semaphore_mem>>
    tpu.wait_dma2 semaphore(%431 : memref<!tpu.dma_semaphore, #tpu.memory_space<semaphore_mem>>) src(%428 : memref<1x384xf32, #tpu.memory_space<any>>) dst(%429 : memref<1x384xf32, #tpu.memory_space<vmem>>)
    %c0_336 = arith.constant 0 : index
    %c0_337 = arith.constant 0 : index
    %432 = vector.load %arg4[%c0_336, %c0_337] : memref<48x384xf32, #tpu.memory_space<vmem>>, vector<48x384xf32>
    %433 = arith.mulf %432, %432 : vector<48x384xf32>
    %cst = arith.constant dense<0.000000e+00> : vector<48xf32>
    %434 = vector.multi_reduction <add>, %433, %cst [1] : vector<48x384xf32> to vector<48xf32>
    %435 = vector.shape_cast %434 : vector<48xf32> to vector<48x1xf32>
    %436 = math.sqrt %435 : vector<48x1xf32>
    %cst_338 = arith.constant 1.000000e+00 : f32
    %437 = vector.broadcast %cst_338 : f32 to vector<48x1xf32>
    %438 = arith.cmpf ogt, %436, %437 : vector<48x1xf32>
    %cst_339 = arith.constant 1.000000e-07 : f32
    %439 = vector.broadcast %cst_339 : f32 to vector<48x1xf32>
    %440 = arith.addf %436, %439 : vector<48x1xf32>
    %cst_340 = arith.constant 1.000000e+00 : f32
    %441 = vector.broadcast %cst_340 : f32 to vector<48x1xf32>
    %442 = arith.divf %441, %440 : vector<48x1xf32>
    %cst_341 = arith.constant 1.000000e+00 : f32
    %443 = vector.broadcast %cst_341 : f32 to vector<48x1xf32>
    %444 = arith.select %438, %442, %443 : vector<48x1xi1>, vector<48x1xf32>
    %445 = vector.broadcast %444 : vector<48x1xf32> to vector<48x384xf32>
    %446 = arith.mulf %432, %445 : vector<48x384xf32>
    %447 = vector.extract_strided_slice %446 {offsets = [0, 0], sizes = [8, 384], strides = [1, 1]} : vector<48x384xf32> to vector<8x384xf32>
    %448 = vector.extract_strided_slice %446 {offsets = [8, 0], sizes = [8, 384], strides = [1, 1]} : vector<48x384xf32> to vector<8x384xf32>
    %449 = arith.addf %447, %448 : vector<8x384xf32>
    %450 = vector.extract_strided_slice %446 {offsets = [16, 0], sizes = [8, 384], strides = [1, 1]} : vector<48x384xf32> to vector<8x384xf32>
    %451 = arith.addf %449, %450 : vector<8x384xf32>
    %452 = vector.extract_strided_slice %446 {offsets = [24, 0], sizes = [8, 384], strides = [1, 1]} : vector<48x384xf32> to vector<8x384xf32>
    %453 = arith.addf %451, %452 : vector<8x384xf32>
    %454 = vector.extract_strided_slice %446 {offsets = [32, 0], sizes = [8, 384], strides = [1, 1]} : vector<48x384xf32> to vector<8x384xf32>
    %455 = arith.addf %453, %454 : vector<8x384xf32>
    %456 = vector.extract_strided_slice %446 {offsets = [40, 0], sizes = [8, 384], strides = [1, 1]} : vector<48x384xf32> to vector<8x384xf32>
    %457 = arith.addf %455, %456 : vector<8x384xf32>
    %cst_342 = arith.constant 0.166666672 : f32
    %458 = vector.broadcast %cst_342 : f32 to vector<8x384xf32>
    %459 = arith.mulf %457, %458 : vector<8x384xf32>
    %c0_343 = arith.constant 0 : index
    %c0_344 = arith.constant 0 : index
    %460 = vector.load %arg3[%c0_343, %c0_344] : memref<8x384xf32, #tpu.memory_space<vmem>>, vector<8x384xf32>
    tpu.vector_store %arg3[%c0_343, %c0_344], %459 {strides = array<i32>} : memref<8x384xf32, #tpu.memory_space<vmem>>, vector<8x384xf32>,
    return
  }
  func.func @transform_1(%arg0: i32, %arg1: memref<48xi32, #tpu.memory_space<smem>>) -> (i32, i32) {
    %c0_i32 = arith.constant 0 : i32
    %c0_i32_0 = arith.constant 0 : i32
    %c0_i32_1 = arith.constant 0 : i32
    return %c0_i32, %c0_i32_0 : i32, i32
  }
}

</mosaic_0001>

<llo_original>
// kernel: tpu_custom_call.1
$region0: #{tpu_custom_call.1}
  #allocation0 [shape = 'u32[]', space=smem, size = 0x4, offset = 0x4, fixed_abs, tag = 'smem constant byte address 0x4 - core index']
  #allocation1 [shape = 'u32[72,128]{1,0:T(1,128)}', space=vmem, size = 0x9000, scoped, tag = 'internal scratch']
  #allocation2 [shape = 'f32[48,384]{1,0:T(8,128)}', space=vmem, size = 0x12000, scoped, tag = 'scratch operand']
  #allocation3 [shape = 's32[48]{0}', space=sflag, size = 0xc0, scoped, tag = 'scratch operand']
  #allocation4 [shape = 's32[1]{0}', space=sflag, size = 0x4, scoped, tag = 'scoped memory for tpu_custom_call.1']
  #allocation5 [shape = 'u8[512]{0}', space=smem, size = 0x200, scoped, tag = 'prefetched SMEM operand 0']
  #allocation8 [shape = 's32[]', space=sflag, size = 0x4, offset = 0, fixed_abs, tag = 'sflag constant byte address 0x0 - dummy sync flag']
  #allocation9 [shape = 's32[]', space=sflag, size = 0x4, offset = 0, fixed_abs, tag = 'sflag constant byte address 0x0 - dummy sync flag']
  #allocation10 [shape = 's32[]', space=sflag, size = 0x4, offset = 0, fixed_abs, tag = 'sflag constant byte address 0x0 - dummy sync flag']
  #allocation11 [shape = 's32[]', space=sflag, size = 0x4, offset = 0, fixed_abs, tag = 'sflag constant byte address 0x0 - dummy sync flag']
  #allocation12 [shape = 's32[]', space=sflag, size = 0x4, offset = 0, fixed_abs, tag = 'sflag constant byte address 0x0 - dummy sync flag']
  #allocation13 [shape = 's32[]', space=sflag, size = 0x4, offset = 0, fixed_abs, tag = 'sflag constant byte address 0x0 - dummy sync flag']
  #allocation14 [shape = 's32[]', space=sflag, size = 0x4, offset = 0, fixed_abs, tag = 'sflag constant byte address 0x0 - dummy sync flag']
  #allocation15 [shape = 's32[]', space=sflag, size = 0x4, offset = 0, fixed_abs, tag = 'sflag constant byte address 0x0 - dummy sync flag']
  #allocation16 [shape = 's32[]', space=sflag, size = 0x4, offset = 0, fixed_abs, tag = 'sflag constant byte address 0x0 - dummy sync flag']
  #allocation17 [shape = 's32[]', space=sflag, size = 0x4, offset = 0, fixed_abs, tag = 'sflag constant byte address 0x0 - dummy sync flag']
  #allocation18 [shape = 's32[]', space=sflag, size = 0x4, offset = 0, fixed_abs, tag = 'sflag constant byte address 0x0 - dummy sync flag']
  #allocation19 [shape = 's32[]', space=sflag, size = 0x4, offset = 0, fixed_abs, tag = 'sflag constant byte address 0x0 - dummy sync flag']
  #allocation20 [shape = 's32[]', space=sflag, size = 0x4, offset = 0, fixed_abs, tag = 'sflag constant byte address 0x0 - dummy sync flag']
  #allocation21 [shape = 's32[]', space=sflag, size = 0x4, offset = 0, fixed_abs, tag = 'sflag constant byte address 0x0 - dummy sync flag']
  #allocation22 [shape = 's32[]', space=sflag, size = 0x4, offset = 0, fixed_abs, tag = 'sflag constant byte address 0x0 - dummy sync flag']
  #allocation23 [shape = 's32[]', space=sflag, size = 0x4, offset = 0, fixed_abs, tag = 'sflag constant byte address 0x0 - dummy sync flag']
  #allocation24 [shape = 's32[]', space=sflag, size = 0x4, offset = 0, fixed_abs, tag = 'sflag constant byte address 0x0 - dummy sync flag']
  #allocation25 [shape = 's32[]', space=sflag, size = 0x4, offset = 0, fixed_abs, tag = 'sflag constant byte address 0x0 - dummy sync flag']
  #allocation26 [shape = 's32[]', space=sflag, size = 0x4, offset = 0, fixed_abs, tag = 'sflag constant byte address 0x0 - dummy sync flag']
  #allocation27 [shape = 's32[]', space=sflag, size = 0x4, offset = 0, fixed_abs, tag = 'sflag constant byte address 0x0 - dummy sync flag']
  #allocation28 [shape = 's32[]', space=sflag, size = 0x4, offset = 0, fixed_abs, tag = 'sflag constant byte address 0x0 - dummy sync flag']
  #allocation29 [shape = 's32[]', space=sflag, size = 0x4, offset = 0, fixed_abs, tag = 'sflag constant byte address 0x0 - dummy sync flag']
  #allocation30 [shape = 's32[]', space=sflag, size = 0x4, offset = 0, fixed_abs, tag = 'sflag constant byte address 0x0 - dummy sync flag']
  #allocation31 [shape = 's32[]', space=sflag, size = 0x4, offset = 0, fixed_abs, tag = 'sflag constant byte address 0x0 - dummy sync flag']
  #allocation32 [shape = 's32[]', space=sflag, size = 0x4, offset = 0, fixed_abs, tag = 'sflag constant byte address 0x0 - dummy sync flag']
  #allocation33 [shape = 's32[]', space=sflag, size = 0x4, offset = 0, fixed_abs, tag = 'sflag constant byte address 0x0 - dummy sync flag']
  #allocation34 [shape = 's32[]', space=sflag, size = 0x4, offset = 0, fixed_abs, tag = 'sflag constant byte address 0x0 - dummy sync flag']
  #allocation35 [shape = 's32[]', space=sflag, size = 0x4, offset = 0, fixed_abs, tag = 'sflag constant byte address 0x0 - dummy sync flag']
  #allocation36 [shape = 's32[]', space=sflag, size = 0x4, offset = 0, fixed_abs, tag = 'sflag constant byte address 0x0 - dummy sync flag']
  #allocation37 [shape = 's32[]', space=sflag, size = 0x4, offset = 0, fixed_abs, tag = 'sflag constant byte address 0x0 - dummy sync flag']
  #allocation38 [shape = 's32[]', space=sflag, size = 0x4, offset = 0, fixed_abs, tag = 'sflag constant byte address 0x0 - dummy sync flag']
  #allocation39 [shape = 's32[]', space=sflag, size = 0x4, offset = 0, fixed_abs, tag = 'sflag constant byte address 0x0 - dummy sync flag']
  #allocation40 [shape = 's32[]', space=sflag, size = 0x4, offset = 0, fixed_abs, tag = 'sflag constant byte address 0x0 - dummy sync flag']
  #allocation41 [shape = 's32[]', space=sflag, size = 0x4, offset = 0, fixed_abs, tag = 'sflag constant byte address 0x0 - dummy sync flag']
  #allocation42 [shape = 's32[]', space=sflag, size = 0x4, offset = 0, fixed_abs, tag = 'sflag constant byte address 0x0 - dummy sync flag']
  #allocation43 [shape = 's32[]', space=sflag, size = 0x4, offset = 0, fixed_abs, tag = 'sflag constant byte address 0x0 - dummy sync flag']
  #allocation44 [shape = 's32[]', space=sflag, size = 0x4, offset = 0, fixed_abs, tag = 'sflag constant byte address 0x0 - dummy sync flag']
  #allocation45 [shape = 's32[]', space=sflag, size = 0x4, offset = 0, fixed_abs, tag = 'sflag constant byte address 0x0 - dummy sync flag']
  #allocation46 [shape = 's32[]', space=sflag, size = 0x4, offset = 0, fixed_abs, tag = 'sflag constant byte address 0x0 - dummy sync flag']
  #allocation47 [shape = 's32[]', space=sflag, size = 0x4, offset = 0, fixed_abs, tag = 'sflag constant byte address 0x0 - dummy sync flag']
  #allocation48 [shape = 's32[]', space=sflag, size = 0x4, offset = 0, fixed_abs, tag = 'sflag constant byte address 0x0 - dummy sync flag']
  #allocation49 [shape = 's32[]', space=sflag, size = 0x4, offset = 0, fixed_abs, tag = 'sflag constant byte address 0x0 - dummy sync flag']
  #allocation50 [shape = 's32[]', space=sflag, size = 0x4, offset = 0, fixed_abs, tag = 'sflag constant byte address 0x0 - dummy sync flag']
  #allocation51 [shape = 's32[]', space=sflag, size = 0x4, offset = 0, fixed_abs, tag = 'sflag constant byte address 0x0 - dummy sync flag']
  #allocation52 [shape = 's32[]', space=sflag, size = 0x4, offset = 0, fixed_abs, tag = 'sflag constant byte address 0x0 - dummy sync flag']
  #allocation53 [shape = 's32[]', space=sflag, size = 0x4, offset = 0, fixed_abs, tag = 'sflag constant byte address 0x0 - dummy sync flag']
  #allocation54 [shape = 's32[]', space=sflag, size = 0x4, offset = 0, fixed_abs, tag = 'sflag constant byte address 0x0 - dummy sync flag']
  #allocation55 [shape = 's32[]', space=sflag, size = 0x4, offset = 0, fixed_abs, tag = 'sflag constant byte address 0x0 - dummy sync flag']
  %s0 = inlined_call_operand.hbm [shape: s32[48], index: 0, kind: input, shape index: {}]
  %s1 = inlined_call_operand.hbm [shape: f32[512,384], index: 1, kind: input, shape index: {}]
  %s2 = inlined_call_operand.hbm [shape: f32[8,384], index: 2, kind: output, shape index: {}]
  %s3 = sld [smem:[#allocation0]]
  $region10: #{tpu_custom_call.1} parent=0
    _
  %s5 = ssub.s32 1, %s3
  %s6 = scalar_select 0, %s5, %s3
  %s8 = sshll.u32 %s0, 4
  %s9 = int_to_ptr.hbm [resolvable:$true] %s8
  %11 = dma.hbm_to_smem %s9, 16, [#allocation5], [#allocation4]
  %13 = dma.done [#allocation4], 16
  %14 = sfence
  $region1: #{tpu_custom_call.1} parent=0
    #allocation6 [shape = 'u8[12288]{0}', space=vmem, size = 0x3000, scoped, tag = 'output window, operand 0, single buffered']
    #allocation7 [shape = 's32[1]{0}', space=sflag, size = 0x4, scoped, tag = 'scoped memory for tpu_custom_call.1']
    %15 = vsyncpa [#allocation7], 0
    %s16 = sld [smem:[#allocation5]]
    %s17 = sshrl.u32 %s16, 3
    %s18 = sand.u32 %s16, 7
    %s19 = smul.u32 %s17, 24
    %s20 = sadd.s32 %s18, %s19
    %s21 = scalar_lea.hbm %s1, %s20
    %s22 = sshll.u32 %s21, 4
    %s23 = int_to_ptr.hbm [resolvable:$true] %s22
    %s24 = sshll.u32 [#allocation2], 4
    %s25 = int_to_ptr.vmem [resolvable:$true] %s24
    %29 = dma.hbm_to_vmem [thread:$0]  %s23, 48, %s25, [#allocation3], 128, 128, 1
    %s30 = sld [smem:[#allocation5 + $0x1]]
    %s31 = sshrl.u32 %s30, 3
    %s32 = sand.u32 %s30, 7
    %s33 = smul.u32 %s31, 24
    %s34 = sadd.s32 %s32, %s33
    %s35 = scalar_lea.hbm %s1, %s34
    %s36 = scalar_lea.vmem [#allocation2], 1
    %s37 = scalar_lea.sflag [#allocation3], 1
    %s38 = sshll.u32 %s35, 4
    %s39 = int_to_ptr.hbm [resolvable:$true] %s38
    %s40 = sshll.u32 %s36, 4
    %s41 = int_to_ptr.vmem [resolvable:$true] %s40
    %45 = dma.hbm_to_vmem [thread:$0]  %s39, 48, %s41, %s37, 128, 128, 1
    %s46 = sld [smem:[#allocation5 + $0x2]]
    %s47 = sshrl.u32 %s46, 3
    %s48 = sand.u32 %s46, 7
    %s49 = smul.u32 %s47, 24
    %s50 = sadd.s32 %s48, %s49
    %s51 = scalar_lea.hbm %s1, %s50
    %s52 = scalar_lea.vmem [#allocation2], 2
    %s53 = scalar_lea.sflag [#allocation3], 2
    %s54 = sshll.u32 %s51, 4
    %s55 = int_to_ptr.hbm [resolvable:$true] %s54
    %s56 = sshll.u32 %s52, 4
    %s57 = int_to_ptr.vmem [resolvable:$true] %s56
    %61 = dma.hbm_to_vmem [thread:$0]  %s55, 48, %s57, %s53, 128, 128, 1
    %s62 = sld [smem:[#allocation5 + $0x3]]
    %s63 = sshrl.u32 %s62, 3
    %s64 = sand.u32 %s62, 7
    %s65 = smul.u32 %s63, 24
    %s66 = sadd.s32 %s64, %s65
    %s67 = scalar_lea.hbm %s1, %s66
    %s68 = scalar_lea.vmem [#allocation2], 3
    %s69 = scalar_lea.sflag [#allocation3], 3
    %s70 = sshll.u32 %s67, 4
    %s71 = int_to_ptr.hbm [resolvable:$true] %s70
    %s72 = sshll.u32 %s68, 4
    %s73 = int_to_ptr.vmem [resolvable:$true] %s72
    %77 = dma.hbm_to_vmem [thread:$0]  %s71, 48, %s73, %s69, 128, 128, 1
    %s78 = sld [smem:[#allocation5 + $0x4]]
    %s79 = sshrl.u32 %s78, 3
    %s80 = sand.u32 %s78, 7
    %s81 = smul.u32 %s79, 24
    %s82 = sadd.s32 %s80, %s81
    %s83 = scalar_lea.hbm %s1, %s82
    %s84 = scalar_lea.vmem [#allocation2], 4
    %s85 = scalar_lea.sflag [#allocation3], 4
    %s86 = sshll.u32 %s83, 4
    %s87 = int_to_ptr.hbm [resolvable:$true] %s86
    %s88 = sshll.u32 %s84, 4
    %s89 = int_to_ptr.vmem [resolvable:$true] %s88
    %93 = dma.hbm_to_vmem [thread:$0]  %s87, 48, %s89, %s85, 128, 128, 1
    %s94 = sld [smem:[#allocation5 + $0x5]]
    %s95 = sshrl.u32 %s94, 3
    %s96 = sand.u32 %s94, 7
    %s97 = smul.u32 %s95, 24
    %s98 = sadd.s32 %s96, %s97
    %s99 = scalar_lea.hbm %s1, %s98
    %s100 = scalar_lea.vmem [#allocation2], 5
    %s101 = scalar_lea.sflag [#allocation3], 5
    %s102 = sshll.u32 %s99, 4
    %s103 = int_to_ptr.hbm [resolvable:$true] %s102
    %s104 = sshll.u32 %s100, 4
    %s105 = int_to_ptr.vmem [resolvable:$true] %s104
    %109 = dma.hbm_to_vmem [thread:$0]  %s103, 48, %s105, %s101, 128, 128, 1
    %s110 = sld [smem:[#allocation5 + $0x6]]
    %s111 = sshrl.u32 %s110, 3
    %s112 = sand.u32 %s110, 7
    %s113 = smul.u32 %s111, 24
    %s114 = sadd.s32 %s112, %s113
    %s115 = scalar_lea.hbm %s1, %s114
    %s116 = scalar_lea.vmem [#allocation2], 6
    %s117 = scalar_lea.sflag [#allocation3], 6
    %s118 = sshll.u32 %s115, 4
    %s119 = int_to_ptr.hbm [resolvable:$true] %s118
    %s120 = sshll.u32 %s116, 4
    %s121 = int_to_ptr.vmem [resolvable:$true] %s120
    %125 = dma.hbm_to_vmem [thread:$0]  %s119, 48, %s121, %s117, 128, 128, 1
    %s126 = sld [smem:[#allocation5 + $0x7]]
    %s127 = sshrl.u32 %s126, 3
    %s128 = sand.u32 %s126, 7
    %s129 = smul.u32 %s127, 24
    %s130 = sadd.s32 %s128, %s129
    %s131 = scalar_lea.hbm %s1, %s130
    %s132 = scalar_lea.vmem [#allocation2], 7
    %s133 = scalar_lea.sflag [#allocation3], 7
    %s134 = sshll.u32 %s131, 4
    %s135 = int_to_ptr.hbm [resolvable:$true] %s134
    %s136 = sshll.u32 %s132, 4
    %s137 = int_to_ptr.vmem [resolvable:$true] %s136
    %141 = dma.hbm_to_vmem [thread:$0]  %s135, 48, %s137, %s133, 128, 128, 1
    %s142 = sld [smem:[#allocation5 + $0x8]]
    %s143 = sshrl.u32 %s142, 3
    %s144 = sand.u32 %s142, 7
    %s145 = smul.u32 %s143, 24
    %s146 = sadd.s32 %s144, %s145
    %s147 = scalar_lea.hbm %s1, %s146
    %s148 = scalar_lea.vmem [#allocation2], 24
    %s149 = scalar_lea.sflag [#allocation3], 8
    %s150 = sshll.u32 %s147, 4
    %s151 = int_to_ptr.hbm [resolvable:$true] %s150
    %s152 = sshll.u32 %s148, 4
    %s153 = int_to_ptr.vmem [resolvable:$true] %s152
    %157 = dma.hbm_to_vmem [thread:$0]  %s151, 48, %s153, %s149, 128, 128, 1
    %s158 = sld [smem:[#allocation5 + $0x9]]
    %s159 = sshrl.u32 %s158, 3
    %s160 = sand.u32 %s158, 7
    %s161 = smul.u32 %s159, 24
    %s162 = sadd.s32 %s160, %s161
    %s163 = scalar_lea.hbm %s1, %s162
    %s164 = scalar_lea.vmem [#allocation2], 25
    %s165 = scalar_lea.sflag [#allocation3], 9
    %s166 = sshll.u32 %s163, 4
    %s167 = int_to_ptr.hbm [resolvable:$true] %s166
    %s168 = sshll.u32 %s164, 4
    %s169 = int_to_ptr.vmem [resolvable:$true] %s168
    %173 = dma.hbm_to_vmem [thread:$0]  %s167, 48, %s169, %s165, 128, 128, 1
    %s174 = sld [smem:[#allocation5 + $0xa]]
    %s175 = sshrl.u32 %s174, 3
    %s176 = sand.u32 %s174, 7
    %s177 = smul.u32 %s175, 24
    %s178 = sadd.s32 %s176, %s177
    %s179 = scalar_lea.hbm %s1, %s178
    %s180 = scalar_lea.vmem [#allocation2], 26
    %s181 = scalar_lea.sflag [#allocation3], 10
    %s182 = sshll.u32 %s179, 4
    %s183 = int_to_ptr.hbm [resolvable:$true] %s182
    %s184 = sshll.u32 %s180, 4
    %s185 = int_to_ptr.vmem [resolvable:$true] %s184
    %189 = dma.hbm_to_vmem [thread:$0]  %s183, 48, %s185, %s181, 128, 128, 1
    %s190 = sld [smem:[#allocation5 + $0xb]]
    %s191 = sshrl.u32 %s190, 3
    %s192 = sand.u32 %s190, 7
    %s193 = smul.u32 %s191, 24
    %s194 = sadd.s32 %s192, %s193
    %s195 = scalar_lea.hbm %s1, %s194
    %s196 = scalar_lea.vmem [#allocation2], 27
    %s197 = scalar_lea.sflag [#allocation3], 11
    %s198 = sshll.u32 %s195, 4
    %s199 = int_to_ptr.hbm [resolvable:$true] %s198
    %s200 = sshll.u32 %s196, 4
    %s201 = int_to_ptr.vmem [resolvable:$true] %s200
    %205 = dma.hbm_to_vmem [thread:$0]  %s199, 48, %s201, %s197, 128, 128, 1
    %s206 = sld [smem:[#allocation5 + $0xc]]
    %s207 = sshrl.u32 %s206, 3
    %s208 = sand.u32 %s206, 7
    %s209 = smul.u32 %s207, 24
    %s210 = sadd.s32 %s208, %s209
    %s211 = scalar_lea.hbm %s1, %s210
    %s212 = scalar_lea.vmem [#allocation2], 28
    %s213 = scalar_lea.sflag [#allocation3], 12
    %s214 = sshll.u32 %s211, 4
    %s215 = int_to_ptr.hbm [resolvable:$true] %s214
    %s216 = sshll.u32 %s212, 4
    %s217 = int_to_ptr.vmem [resolvable:$true] %s216
    %221 = dma.hbm_to_vmem [thread:$0]  %s215, 48, %s217, %s213, 128, 128, 1
    %s222 = sld [smem:[#allocation5 + $0xd]]
    %s223 = sshrl.u32 %s222, 3
    %s224 = sand.u32 %s222, 7
    %s225 = smul.u32 %s223, 24
    %s226 = sadd.s32 %s224, %s225
    %s227 = scalar_lea.hbm %s1, %s226
    %s228 = scalar_lea.vmem [#allocation2], 29
    %s229 = scalar_lea.sflag [#allocation3], 13
    %s230 = sshll.u32 %s227, 4
    %s231 = int_to_ptr.hbm [resolvable:$true] %s230
    %s232 = sshll.u32 %s228, 4
    %s233 = int_to_ptr.vmem [resolvable:$true] %s232
    %237 = dma.hbm_to_vmem [thread:$0]  %s231, 48, %s233, %s229, 128, 128, 1
    %s238 = sld [smem:[#allocation5 + $0xe]]
    %s239 = sshrl.u32 %s238, 3
    %s240 = sand.u32 %s238, 7
    %s241 = smul.u32 %s239, 24
    %s242 = sadd.s32 %s240, %s241
    %s243 = scalar_lea.hbm %s1, %s242
    %s244 = scalar_lea.vmem [#allocation2], 30
    %s245 = scalar_lea.sflag [#allocation3], 14
    %s246 = sshll.u32 %s243, 4
    %s247 = int_to_ptr.hbm [resolvable:$true] %s246
    %s248 = sshll.u32 %s244, 4
    %s249 = int_to_ptr.vmem [resolvable:$true] %s248
    %253 = dma.hbm_to_vmem [thread:$0]  %s247, 48, %s249, %s245, 128, 128, 1
    %s254 = sld [smem:[#allocation5 + $0xf]]
    %s255 = sshrl.u32 %s254, 3
    %s256 = sand.u32 %s254, 7
    %s257 = smul.u32 %s255, 24
    %s258 = sadd.s32 %s256, %s257
    %s259 = scalar_lea.hbm %s1, %s258
    %s260 = scalar_lea.vmem [#allocation2], 31
    %s261 = scalar_lea.sflag [#allocation3], 15
    %s262 = sshll.u32 %s259, 4
    %s263 = int_to_ptr.hbm [resolvable:$true] %s262
    %s264 = sshll.u32 %s260, 4
    %s265 = int_to_ptr.vmem [resolvable:$true] %s264
    %269 = dma.hbm_to_vmem [thread:$0]  %s263, 48, %s265, %s261, 128, 128, 1
    %s270 = sld [smem:[#allocation5 + $0x10]]
    %s271 = sshrl.u32 %s270, 3
    %s272 = sand.u32 %s270, 7
    %s273 = smul.u32 %s271, 24
    %s274 = sadd.s32 %s272, %s273
    %s275 = scalar_lea.hbm %s1, %s274
    %s276 = scalar_lea.vmem [#allocation2], 48
    %s277 = scalar_lea.sflag [#allocation3], 16
    %s278 = sshll.u32 %s275, 4
    %s279 = int_to_ptr.hbm [resolvable:$true] %s278
    %s280 = sshll.u32 %s276, 4
    %s281 = int_to_ptr.vmem [resolvable:$true] %s280
    %285 = dma.hbm_to_vmem [thread:$0]  %s279, 48, %s281, %s277, 128, 128, 1
    %s286 = sld [smem:[#allocation5 + $0x11]]
    %s287 = sshrl.u32 %s286, 3
    %s288 = sand.u32 %s286, 7
    %s289 = smul.u32 %s287, 24
    %s290 = sadd.s32 %s288, %s289
    %s291 = scalar_lea.hbm %s1, %s290
    %s292 = scalar_lea.vmem [#allocation2], 49
    %s293 = scalar_lea.sflag [#allocation3], 17
    %s294 = sshll.u32 %s291, 4
    %s295 = int_to_ptr.hbm [resolvable:$true] %s294
    %s296 = sshll.u32 %s292, 4
    %s297 = int_to_ptr.vmem [resolvable:$true] %s296
    %301 = dma.hbm_to_vmem [thread:$0]  %s295, 48, %s297, %s293, 128, 128, 1
    %s302 = sld [smem:[#allocation5 + $0x12]]
    %s303 = sshrl.u32 %s302, 3
    %s304 = sand.u32 %s302, 7
    %s305 = smul.u32 %s303, 24
    %s306 = sadd.s32 %s304, %s305
    %s307 = scalar_lea.hbm %s1, %s306
    %s308 = scalar_lea.vmem [#allocation2], 50
    %s309 = scalar_lea.sflag [#allocation3], 18
    %s310 = sshll.u32 %s307, 4
    %s311 = int_to_ptr.hbm [resolvable:$true] %s310
    %s312 = sshll.u32 %s308, 4
    %s313 = int_to_ptr.vmem [resolvable:$true] %s312
    %317 = dma.hbm_to_vmem [thread:$0]  %s311, 48, %s313, %s309, 128, 128, 1
    %s318 = sld [smem:[#allocation5 + $0x13]]
    %s319 = sshrl.u32 %s318, 3
    %s320 = sand.u32 %s318, 7
    %s321 = smul.u32 %s319, 24
    %s322 = sadd.s32 %s320, %s321
    %s323 = scalar_lea.hbm %s1, %s322
    %s324 = scalar_lea.vmem [#allocation2], 51
    %s325 = scalar_lea.sflag [#allocation3], 19
    %s326 = sshll.u32 %s323, 4
    %s327 = int_to_ptr.hbm [resolvable:$true] %s326
    %s328 = sshll.u32 %s324, 4
    %s329 = int_to_ptr.vmem [resolvable:$true] %s328
    %333 = dma.hbm_to_vmem [thread:$0]  %s327, 48, %s329, %s325, 128, 128, 1
    %s334 = sld [smem:[#allocation5 + $0x14]]
    %s335 = sshrl.u32 %s334, 3
    %s336 = sand.u32 %s334, 7
    %s337 = smul.u32 %s335, 24
    %s338 = sadd.s32 %s336, %s337
    %s339 = scalar_lea.hbm %s1, %s338
    %s340 = scalar_lea.vmem [#allocation2], 52
    %s341 = scalar_lea.sflag [#allocation3], 20
    %s342 = sshll.u32 %s339, 4
    %s343 = int_to_ptr.hbm [resolvable:$true] %s342
    %s344 = sshll.u32 %s340, 4
    %s345 = int_to_ptr.vmem [resolvable:$true] %s344
    %349 = dma.hbm_to_vmem [thread:$0]  %s343, 48, %s345, %s341, 128, 128, 1
    %s350 = sld [smem:[#allocation5 + $0x15]]
    %s351 = sshrl.u32 %s350, 3
    %s352 = sand.u32 %s350, 7
    %s353 = smul.u32 %s351, 24
    %s354 = sadd.s32 %s352, %s353
    %s355 = scalar_lea.hbm %s1, %s354
    %s356 = scalar_lea.vmem [#allocation2], 53
    %s357 = scalar_lea.sflag [#allocation3], 21
    %s358 = sshll.u32 %s355, 4
    %s359 = int_to_ptr.hbm [resolvable:$true] %s358
    %s360 = sshll.u32 %s356, 4
    %s361 = int_to_ptr.vmem [resolvable:$true] %s360
    %365 = dma.hbm_to_vmem [thread:$0]  %s359, 48, %s361, %s357, 128, 128, 1
    %s366 = sld [smem:[#allocation5 + $0x16]]
    %s367 = sshrl.u32 %s366, 3
    %s368 = sand.u32 %s366, 7
    %s369 = smul.u32 %s367, 24
    %s370 = sadd.s32 %s368, %s369
    %s371 = scalar_lea.hbm %s1, %s370
    %s372 = scalar_lea.vmem [#allocation2], 54
    %s373 = scalar_lea.sflag [#allocation3], 22
    %s374 = sshll.u32 %s371, 4
    %s375 = int_to_ptr.hbm [resolvable:$true] %s374
    %s376 = sshll.u32 %s372, 4
    %s377 = int_to_ptr.vmem [resolvable:$true] %s376
    %381 = dma.hbm_to_vmem [thread:$0]  %s375, 48, %s377, %s373, 128, 128, 1
    %s382 = sld [smem:[#allocation5 + $0x17]]
    %s383 = sshrl.u32 %s382, 3
    %s384 = sand.u32 %s382, 7
    %s385 = smul.u32 %s383, 24
    %s386 = sadd.s32 %s384, %s385
    %s387 = scalar_lea.hbm %s1, %s386
    %s388 = scalar_lea.vmem [#allocation2], 55
    %s389 = scalar_lea.sflag [#allocation3], 23
    %s390 = sshll.u32 %s387, 4
    %s391 = int_to_ptr.hbm [resolvable:$true] %s390
    %s392 = sshll.u32 %s388, 4
    %s393 = int_to_ptr.vmem [resolvable:$true] %s392
    %397 = dma.hbm_to_vmem [thread:$0]  %s391, 48, %s393, %s389, 128, 128, 1
    %s398 = sld [smem:[#allocation5 + $0x18]]
    %s399 = sshrl.u32 %s398, 3
    %s400 = sand.u32 %s398, 7
    %s401 = smul.u32 %s399, 24
    %s402 = sadd.s32 %s400, %s401
    %s403 = scalar_lea.hbm %s1, %s402
    %s404 = scalar_lea.vmem [#allocation2], 72
    %s405 = scalar_lea.sflag [#allocation3], 24
    %s406 = sshll.u32 %s403, 4
    %s407 = int_to_ptr.hbm [resolvable:$true] %s406
    %s408 = sshll.u32 %s404, 4
    %s409 = int_to_ptr.vmem [resolvable:$true] %s408
    %413 = dma.hbm_to_vmem [thread:$0]  %s407, 48, %s409, %s405, 128, 128, 1
    %s414 = sld [smem:[#allocation5 + $0x19]]
    %s415 = sshrl.u32 %s414, 3
    %s416 = sand.u32 %s414, 7
    %s417 = smul.u32 %s415, 24
    %s418 = sadd.s32 %s416, %s417
    %s419 = scalar_lea.hbm %s1, %s418
    %s420 = scalar_lea.vmem [#allocation2], 73
    %s421 = scalar_lea.sflag [#allocation3], 25
    %s422 = sshll.u32 %s419, 4
    %s423 = int_to_ptr.hbm [resolvable:$true] %s422
    %s424 = sshll.u32 %s420, 4
    %s425 = int_to_ptr.vmem [resolvable:$true] %s424
    %429 = dma.hbm_to_vmem [thread:$0]  %s423, 48, %s425, %s421, 128, 128, 1
    %s430 = sld [smem:[#allocation5 + $0x1a]]
    %s431 = sshrl.u32 %s430, 3
    %s432 = sand.u32 %s430, 7
    %s433 = smul.u32 %s431, 24
    %s434 = sadd.s32 %s432, %s433
    %s435 = scalar_lea.hbm %s1, %s434
    %s436 = scalar_lea.vmem [#allocation2], 74
    %s437 = scalar_lea.sflag [#allocation3], 26
    %s438 = sshll.u32 %s435, 4
    %s439 = int_to_ptr.hbm [resolvable:$true] %s438
    %s440 = sshll.u32 %s436, 4
    %s441 = int_to_ptr.vmem [resolvable:$true] %s440
    %445 = dma.hbm_to_vmem [thread:$0]  %s439, 48, %s441, %s437, 128, 128, 1
    %s446 = sld [smem:[#allocation5 + $0x1b]]
    %s447 = sshrl.u32 %s446, 3
    %s448 = sand.u32 %s446, 7
    %s449 = smul.u32 %s447, 24
    %s450 = sadd.s32 %s448, %s449
    %s451 = scalar_lea.hbm %s1, %s450
    %s452 = scalar_lea.vmem [#allocation2], 75
    %s453 = scalar_lea.sflag [#allocation3], 27
    %s454 = sshll.u32 %s451, 4
    %s455 = int_to_ptr.hbm [resolvable:$true] %s454
    %s456 = sshll.u32 %s452, 4
    %s457 = int_to_ptr.vmem [resolvable:$true] %s456
    %461 = dma.hbm_to_vmem [thread:$0]  %s455, 48, %s457, %s453, 128, 128, 1
    %s462 = sld [smem:[#allocation5 + $0x1c]]
    %s463 = sshrl.u32 %s462, 3
    %s464 = sand.u32 %s462, 7
    %s465 = smul.u32 %s463, 24
    %s466 = sadd.s32 %s464, %s465
    %s467 = scalar_lea.hbm %s1, %s466
    %s468 = scalar_lea.vmem [#allocation2], 76
    %s469 = scalar_lea.sflag [#allocation3], 28
    %s470 = sshll.u32 %s467, 4
    %s471 = int_to_ptr.hbm [resolvable:$true] %s470
    %s472 = sshll.u32 %s468, 4
    %s473 = int_to_ptr.vmem [resolvable:$true] %s472
    %477 = dma.hbm_to_vmem [thread:$0]  %s471, 48, %s473, %s469, 128, 128, 1
    %s478 = sld [smem:[#allocation5 + $0x1d]]
    %s479 = sshrl.u32 %s478, 3
    %s480 = sand.u32 %s478, 7
    %s481 = smul.u32 %s479, 24
    %s482 = sadd.s32 %s480, %s481
    %s483 = scalar_lea.hbm %s1, %s482
    %s484 = scalar_lea.vmem [#allocation2], 77
    %s485 = scalar_lea.sflag [#allocation3], 29
    %s486 = sshll.u32 %s483, 4
    %s487 = int_to_ptr.hbm [resolvable:$true] %s486
    %s488 = sshll.u32 %s484, 4
    %s489 = int_to_ptr.vmem [resolvable:$true] %s488
    %493 = dma.hbm_to_vmem [thread:$0]  %s487, 48, %s489, %s485, 128, 128, 1
    %s494 = sld [smem:[#allocation5 + $0x1e]]
    %s495 = sshrl.u32 %s494, 3
    %s496 = sand.u32 %s494, 7
    %s497 = smul.u32 %s495, 24
    %s498 = sadd.s32 %s496, %s497
    %s499 = scalar_lea.hbm %s1, %s498
    %s500 = scalar_lea.vmem [#allocation2], 78
    %s501 = scalar_lea.sflag [#allocation3], 30
    %s502 = sshll.u32 %s499, 4
    %s503 = int_to_ptr.hbm [resolvable:$true] %s502
    %s504 = sshll.u32 %s500, 4
    %s505 = int_to_ptr.vmem [resolvable:$true] %s504
    %509 = dma.hbm_to_vmem [thread:$0]  %s503, 48, %s505, %s501, 128, 128, 1
    %s510 = sld [smem:[#allocation5 + $0x1f]]
    %s511 = sshrl.u32 %s510, 3
    %s512 = sand.u32 %s510, 7
    %s513 = smul.u32 %s511, 24
    %s514 = sadd.s32 %s512, %s513
    %s515 = scalar_lea.hbm %s1, %s514
    %s516 = scalar_lea.vmem [#allocation2], 79
    %s517 = scalar_lea.sflag [#allocation3], 31
    %s518 = sshll.u32 %s515, 4
    %s519 = int_to_ptr.hbm [resolvable:$true] %s518
    %s520 = sshll.u32 %s516, 4
    %s521 = int_to_ptr.vmem [resolvable:$true] %s520
    %525 = dma.hbm_to_vmem [thread:$0]  %s519, 48, %s521, %s517, 128, 128, 1
    %s526 = sld [smem:[#allocation5 + $0x20]]
    %s527 = sshrl.u32 %s526, 3
    %s528 = sand.u32 %s526, 7
    %s529 = smul.u32 %s527, 24
    %s530 = sadd.s32 %s528, %s529
    %s531 = scalar_lea.hbm %s1, %s530
    %s532 = scalar_lea.vmem [#allocation2], 96
    %s533 = scalar_lea.sflag [#allocation3], 32
    %s534 = sshll.u32 %s531, 4
    %s535 = int_to_ptr.hbm [resolvable:$true] %s534
    %s536 = sshll.u32 %s532, 4
    %s537 = int_to_ptr.vmem [resolvable:$true] %s536
    %541 = dma.hbm_to_vmem [thread:$0]  %s535, 48, %s537, %s533, 128, 128, 1
    %s542 = sld [smem:[#allocation5 + $0x21]]
    %s543 = sshrl.u32 %s542, 3
    %s544 = sand.u32 %s542, 7
    %s545 = smul.u32 %s543, 24
    %s546 = sadd.s32 %s544, %s545
    %s547 = scalar_lea.hbm %s1, %s546
    %s548 = scalar_lea.vmem [#allocation2], 97
    %s549 = scalar_lea.sflag [#allocation3], 33
    %s550 = sshll.u32 %s547, 4
    %s551 = int_to_ptr.hbm [resolvable:$true] %s550
    %s552 = sshll.u32 %s548, 4
    %s553 = int_to_ptr.vmem [resolvable:$true] %s552
    %557 = dma.hbm_to_vmem [thread:$0]  %s551, 48, %s553, %s549, 128, 128, 1
    %s558 = sld [smem:[#allocation5 + $0x22]]
    %s559 = sshrl.u32 %s558, 3
    %s560 = sand.u32 %s558, 7
    %s561 = smul.u32 %s559, 24
    %s562 = sadd.s32 %s560, %s561
    %s563 = scalar_lea.hbm %s1, %s562
    %s564 = scalar_lea.vmem [#allocation2], 98
    %s565 = scalar_lea.sflag [#allocation3], 34
    %s566 = sshll.u32 %s563, 4
    %s567 = int_to_ptr.hbm [resolvable:$true] %s566
    %s568 = sshll.u32 %s564, 4
    %s569 = int_to_ptr.vmem [resolvable:$true] %s568
    %573 = dma.hbm_to_vmem [thread:$0]  %s567, 48, %s569, %s565, 128, 128, 1
    %s574 = sld [smem:[#allocation5 + $0x23]]
    %s575 = sshrl.u32 %s574, 3
    %s576 = sand.u32 %s574, 7
    %s577 = smul.u32 %s575, 24
    %s578 = sadd.s32 %s576, %s577
    %s579 = scalar_lea.hbm %s1, %s578
    %s580 = scalar_lea.vmem [#allocation2], 99
    %s581 = scalar_lea.sflag [#allocation3], 35
    %s582 = sshll.u32 %s579, 4
    %s583 = int_to_ptr.hbm [resolvable:$true] %s582
    %s584 = sshll.u32 %s580, 4
    %s585 = int_to_ptr.vmem [resolvable:$true] %s584
    %589 = dma.hbm_to_vmem [thread:$0]  %s583, 48, %s585, %s581, 128, 128, 1
    %s590 = sld [smem:[#allocation5 + $0x24]]
    %s591 = sshrl.u32 %s590, 3
    %s592 = sand.u32 %s590, 7
    %s593 = smul.u32 %s591, 24
    %s594 = sadd.s32 %s592, %s593
    %s595 = scalar_lea.hbm %s1, %s594
    %s596 = scalar_lea.vmem [#allocation2], 100
    %s597 = scalar_lea.sflag [#allocation3], 36
    %s598 = sshll.u32 %s595, 4
    %s599 = int_to_ptr.hbm [resolvable:$true] %s598
    %s600 = sshll.u32 %s596, 4
    %s601 = int_to_ptr.vmem [resolvable:$true] %s600
    %605 = dma.hbm_to_vmem [thread:$0]  %s599, 48, %s601, %s597, 128, 128, 1
    %s606 = sld [smem:[#allocation5 + $0x25]]
    %s607 = sshrl.u32 %s606, 3
    %s608 = sand.u32 %s606, 7
    %s609 = smul.u32 %s607, 24
    %s610 = sadd.s32 %s608, %s609
    %s611 = scalar_lea.hbm %s1, %s610
    %s612 = scalar_lea.vmem [#allocation2], 101
    %s613 = scalar_lea.sflag [#allocation3], 37
    %s614 = sshll.u32 %s611, 4
    %s615 = int_to_ptr.hbm [resolvable:$true] %s614
    %s616 = sshll.u32 %s612, 4
    %s617 = int_to_ptr.vmem [resolvable:$true] %s616
    %621 = dma.hbm_to_vmem [thread:$0]  %s615, 48, %s617, %s613, 128, 128, 1
    %s622 = sld [smem:[#allocation5 + $0x26]]
    %s623 = sshrl.u32 %s622, 3
    %s624 = sand.u32 %s622, 7
    %s625 = smul.u32 %s623, 24
    %s626 = sadd.s32 %s624, %s625
    %s627 = scalar_lea.hbm %s1, %s626
    %s628 = scalar_lea.vmem [#allocation2], 102
    %s629 = scalar_lea.sflag [#allocation3], 38
    %s630 = sshll.u32 %s627, 4
    %s631 = int_to_ptr.hbm [resolvable:$true] %s630
    %s632 = sshll.u32 %s628, 4
    %s633 = int_to_ptr.vmem [resolvable:$true] %s632
    %637 = dma.hbm_to_vmem [thread:$0]  %s631, 48, %s633, %s629, 128, 128, 1
    %s638 = sld [smem:[#allocation5 + $0x27]]
    %s639 = sshrl.u32 %s638, 3
    %s640 = sand.u32 %s638, 7
    %s641 = smul.u32 %s639, 24
    %s642 = sadd.s32 %s640, %s641
    %s643 = scalar_lea.hbm %s1, %s642
    %s644 = scalar_lea.vmem [#allocation2], 103
    %s645 = scalar_lea.sflag [#allocation3], 39
    %s646 = sshll.u32 %s643, 4
    %s647 = int_to_ptr.hbm [resolvable:$true] %s646
    %s648 = sshll.u32 %s644, 4
    %s649 = int_to_ptr.vmem [resolvable:$true] %s648
    %653 = dma.hbm_to_vmem [thread:$0]  %s647, 48, %s649, %s645, 128, 128, 1
    %s654 = sld [smem:[#allocation5 + $0x28]]
    %s655 = sshrl.u32 %s654, 3
    %s656 = sand.u32 %s654, 7
    %s657 = smul.u32 %s655, 24
    %s658 = sadd.s32 %s656, %s657
    %s659 = scalar_lea.hbm %s1, %s658
    %s660 = scalar_lea.vmem [#allocation2], 120
    %s661 = scalar_lea.sflag [#allocation3], 40
    %s662 = sshll.u32 %s659, 4
    %s663 = int_to_ptr.hbm [resolvable:$true] %s662
    %s664 = sshll.u32 %s660, 4
    %s665 = int_to_ptr.vmem [resolvable:$true] %s664
    %669 = dma.hbm_to_vmem [thread:$0]  %s663, 48, %s665, %s661, 128, 128, 1
    %s670 = sld [smem:[#allocation5 + $0x29]]
    %s671 = sshrl.u32 %s670, 3
    %s672 = sand.u32 %s670, 7
    %s673 = smul.u32 %s671, 24
    %s674 = sadd.s32 %s672, %s673
    %s675 = scalar_lea.hbm %s1, %s674
    %s676 = scalar_lea.vmem [#allocation2], 121
    %s677 = scalar_lea.sflag [#allocation3], 41
    %s678 = sshll.u32 %s675, 4
    %s679 = int_to_ptr.hbm [resolvable:$true] %s678
    %s680 = sshll.u32 %s676, 4
    %s681 = int_to_ptr.vmem [resolvable:$true] %s680
    %685 = dma.hbm_to_vmem [thread:$0]  %s679, 48, %s681, %s677, 128, 128, 1
    %s686 = sld [smem:[#allocation5 + $0x2a]]
    %s687 = sshrl.u32 %s686, 3
    %s688 = sand.u32 %s686, 7
    %s689 = smul.u32 %s687, 24
    %s690 = sadd.s32 %s688, %s689
    %s691 = scalar_lea.hbm %s1, %s690
    %s692 = scalar_lea.vmem [#allocation2], 122
    %s693 = scalar_lea.sflag [#allocation3], 42
    %s694 = sshll.u32 %s691, 4
    %s695 = int_to_ptr.hbm [resolvable:$true] %s694
    %s696 = sshll.u32 %s692, 4
    %s697 = int_to_ptr.vmem [resolvable:$true] %s696
    %701 = dma.hbm_to_vmem [thread:$0]  %s695, 48, %s697, %s693, 128, 128, 1
    %s702 = sld [smem:[#allocation5 + $0x2b]]
    %s703 = sshrl.u32 %s702, 3
    %s704 = sand.u32 %s702, 7
    %s705 = smul.u32 %s703, 24
    %s706 = sadd.s32 %s704, %s705
    %s707 = scalar_lea.hbm %s1, %s706
    %s708 = scalar_lea.vmem [#allocation2], 123
    %s709 = scalar_lea.sflag [#allocation3], 43
    %s710 = sshll.u32 %s707, 4
    %s711 = int_to_ptr.hbm [resolvable:$true] %s710
    %s712 = sshll.u32 %s708, 4
    %s713 = int_to_ptr.vmem [resolvable:$true] %s712
    %717 = dma.hbm_to_vmem [thread:$0]  %s711, 48, %s713, %s709, 128, 128, 1
    %s718 = sld [smem:[#allocation5 + $0x2c]]
    %s719 = sshrl.u32 %s718, 3
    %s720 = sand.u32 %s718, 7
    %s721 = smul.u32 %s719, 24
    %s722 = sadd.s32 %s720, %s721
    %s723 = scalar_lea.hbm %s1, %s722
    %s724 = scalar_lea.vmem [#allocation2], 124
    %s725 = scalar_lea.sflag [#allocation3], 44
    %s726 = sshll.u32 %s723, 4
    %s727 = int_to_ptr.hbm [resolvable:$true] %s726
    %s728 = sshll.u32 %s724, 4
    %s729 = int_to_ptr.vmem [resolvable:$true] %s728
    %733 = dma.hbm_to_vmem [thread:$0]  %s727, 48, %s729, %s725, 128, 128, 1
    %s734 = sld [smem:[#allocation5 + $0x2d]]
    %s735 = sshrl.u32 %s734, 3
    %s736 = sand.u32 %s734, 7
    %s737 = smul.u32 %s735, 24
    %s738 = sadd.s32 %s736, %s737
    %s739 = scalar_lea.hbm %s1, %s738
    %s740 = scalar_lea.vmem [#allocation2], 125
    %s741 = scalar_lea.sflag [#allocation3], 45
    %s742 = sshll.u32 %s739, 4
    %s743 = int_to_ptr.hbm [resolvable:$true] %s742
    %s744 = sshll.u32 %s740, 4
    %s745 = int_to_ptr.vmem [resolvable:$true] %s744
    %749 = dma.hbm_to_vmem [thread:$0]  %s743, 48, %s745, %s741, 128, 128, 1
    %s750 = sld [smem:[#allocation5 + $0x2e]]
    %s751 = sshrl.u32 %s750, 3
    %s752 = sand.u32 %s750, 7
    %s753 = smul.u32 %s751, 24
    %s754 = sadd.s32 %s752, %s753
    %s755 = scalar_lea.hbm %s1, %s754
    %s756 = scalar_lea.vmem [#allocation2], 126
    %s757 = scalar_lea.sflag [#allocation3], 46
    %s758 = sshll.u32 %s755, 4
    %s759 = int_to_ptr.hbm [resolvable:$true] %s758
    %s760 = sshll.u32 %s756, 4
    %s761 = int_to_ptr.vmem [resolvable:$true] %s760
    %765 = dma.hbm_to_vmem [thread:$0]  %s759, 48, %s761, %s757, 128, 128, 1
    %s766 = sld [smem:[#allocation5 + $0x2f]]
    %s767 = sshrl.u32 %s766, 3
    %s768 = sand.u32 %s766, 7
    %s769 = smul.u32 %s767, 24
    %s770 = sadd.s32 %s768, %s769
    %s771 = scalar_lea.hbm %s1, %s770
    %s772 = scalar_lea.vmem [#allocation2], 127
    %s773 = scalar_lea.sflag [#allocation3], 47
    %s774 = sshll.u32 %s771, 4
    %s775 = int_to_ptr.hbm [resolvable:$true] %s774
    %s776 = sshll.u32 %s772, 4
    %s777 = int_to_ptr.vmem [resolvable:$true] %s776
    %781 = dma.hbm_to_vmem [thread:$0]  %s775, 48, %s777, %s773, 128, 128, 1
    %s782 = smul.u32 1, 3
    %s783 = sshll.u32 %s782, 4
    %784 = dma.done [#allocation3], %s783
    %s785 = sshll.u32 %s782, 4
    %786 = dma.done %s37, %s785
    %s787 = sshll.u32 %s782, 4
    %788 = dma.done %s53, %s787
    %s789 = sshll.u32 %s782, 4
    %790 = dma.done %s69, %s789
    %s791 = sshll.u32 %s782, 4
    %792 = dma.done %s85, %s791
    %s793 = sshll.u32 %s782, 4
    %794 = dma.done %s101, %s793
    %s795 = sshll.u32 %s782, 4
    %796 = dma.done %s117, %s795
    %s797 = sshll.u32 %s782, 4
    %798 = dma.done %s133, %s797
    %s799 = sshll.u32 %s782, 4
    %800 = dma.done %s149, %s799
    %s801 = sshll.u32 %s782, 4
    %802 = dma.done %s165, %s801
    %s803 = sshll.u32 %s782, 4
    %804 = dma.done %s181, %s803
    %s805 = sshll.u32 %s782, 4
    %806 = dma.done %s197, %s805
    %s807 = sshll.u32 %s782, 4
    %808 = dma.done %s213, %s807
    %s809 = sshll.u32 %s782, 4
    %810 = dma.done %s229, %s809
    %s811 = sshll.u32 %s782, 4
    %812 = dma.done %s245, %s811
    %s813 = sshll.u32 %s782, 4
    %814 = dma.done %s261, %s813
    %s815 = sshll.u32 %s782, 4
    %816 = dma.done %s277, %s815
    %s817 = sshll.u32 %s782, 4
    %818 = dma.done %s293, %s817
    %s819 = sshll.u32 %s782, 4
    %820 = dma.done %s309, %s819
    %s821 = sshll.u32 %s782, 4
    %822 = dma.done %s325, %s821
    %s823 = sshll.u32 %s782, 4
    %824 = dma.done %s341, %s823
    %s825 = sshll.u32 %s782, 4
    %826 = dma.done %s357, %s825
    %s827 = sshll.u32 %s782, 4
    %828 = dma.done %s373, %s827
    %s829 = sshll.u32 %s782, 4
    %830 = dma.done %s389, %s829
    %s831 = sshll.u32 %s782, 4
    %832 = dma.done %s405, %s831
    %s833 = sshll.u32 %s782, 4
    %834 = dma.done %s421, %s833
    %s835 = sshll.u32 %s782, 4
    %836 = dma.done %s437, %s835
    %s837 = sshll.u32 %s782, 4
    %838 = dma.done %s453, %s837
    %s839 = sshll.u32 %s782, 4
    %840 = dma.done %s469, %s839
    %s841 = sshll.u32 %s782, 4
    %842 = dma.done %s485, %s841
    %s843 = sshll.u32 %s782, 4
    %844 = dma.done %s501, %s843
    %s845 = sshll.u32 %s782, 4
    %846 = dma.done %s517, %s845
    %s847 = sshll.u32 %s782, 4
    %848 = dma.done %s533, %s847
    %s849 = sshll.u32 %s782, 4
    %850 = dma.done %s549, %s849
    %s851 = sshll.u32 %s782, 4
    %852 = dma.done %s565, %s851
    %s853 = sshll.u32 %s782, 4
    %854 = dma.done %s581, %s853
    %s855 = sshll.u32 %s782, 4
    %856 = dma.done %s597, %s855
    %s857 = sshll.u32 %s782, 4
    %858 = dma.done %s613, %s857
    %s859 = sshll.u32 %s782, 4
    %860 = dma.done %s629, %s859
    %s861 = sshll.u32 %s782, 4
    %862 = dma.done %s645, %s861
    %s863 = sshll.u32 %s782, 4
    %864 = dma.done %s661, %s863
    %s865 = sshll.u32 %s782, 4
    %866 = dma.done %s677, %s865
    %s867 = sshll.u32 %s782, 4
    %868 = dma.done %s693, %s867
    %s869 = sshll.u32 %s782, 4
    %870 = dma.done %s709, %s869
    %s871 = sshll.u32 %s782, 4
    %872 = dma.done %s725, %s871
    %s873 = sshll.u32 %s782, 4
    %874 = dma.done %s741, %s873
    %s875 = sshll.u32 %s782, 4
    %876 = dma.done %s757, %s875
    %s877 = sshll.u32 %s782, 4
    %878 = dma.done %s773, %s877
    %v879 = vld [vmem:[#allocation2] sm:$0xff]
    %v880 = vld [vmem:[#allocation2 + $0x8] sm:$0xff]
    %v881 = vld [vmem:[#allocation2 + $0x10] sm:$0xff]
    %v882 = vld [vmem:[#allocation2 + $0x18] sm:$0xff]
    %v883 = vld [vmem:[#allocation2 + $0x20] sm:$0xff]
    %v884 = vld [vmem:[#allocation2 + $0x28] sm:$0xff]
    %v885 = vld [vmem:[#allocation2 + $0x30] sm:$0xff]
    %v886 = vld [vmem:[#allocation2 + $0x38] sm:$0xff]
    %v887 = vld [vmem:[#allocation2 + $0x40] sm:$0xff]
    %v888 = vld [vmem:[#allocation2 + $0x48] sm:$0xff]
    %v889 = vld [vmem:[#allocation2 + $0x50] sm:$0xff]
    %v890 = vld [vmem:[#allocation2 + $0x58] sm:$0xff]
    %v891 = vld [vmem:[#allocation2 + $0x60] sm:$0xff]
    %v892 = vld [vmem:[#allocation2 + $0x68] sm:$0xff]
    %v893 = vld [vmem:[#allocation2 + $0x70] sm:$0xff]
    %v894 = vld [vmem:[#allocation2 + $0x78] sm:$0xff]
    %v895 = vld [vmem:[#allocation2 + $0x80] sm:$0xff]
    %v896 = vld [vmem:[#allocation2 + $0x88] sm:$0xff]
    %v897 = vmul.f32 %v879, %v879
    %v898 = vmul.f32 %v880, %v880
    %v899 = vmul.f32 %v881, %v881
    %v900 = vmul.f32 %v882, %v882
    %v901 = vmul.f32 %v883, %v883
    %v902 = vmul.f32 %v884, %v884
    %v903 = vmul.f32 %v885, %v885
    %v904 = vmul.f32 %v886, %v886
    %v905 = vmul.f32 %v887, %v887
    %v906 = vmul.f32 %v888, %v888
    %v907 = vmul.f32 %v889, %v889
    %v908 = vmul.f32 %v890, %v890
    %v909 = vmul.f32 %v891, %v891
    %v910 = vmul.f32 %v892, %v892
    %v911 = vmul.f32 %v893, %v893
    %v912 = vmul.f32 %v894, %v894
    %v913 = vmul.f32 %v895, %v895
    %v914 = vmul.f32 %v896, %v896
    %v915 = vadd.f32 %v897, %v898
    %v916 = vadd.f32 %v915, %v899
    %917 = vadd.xlane.f32.xlu0 %v916
    %v918 = vpop.xlane.xlu0 %917
    %v919 = vadd.f32 %v900, %v901
    %v920 = vadd.f32 %v919, %v902
    %921 = vadd.xlane.f32.xlu0 %v920
    %v922 = vpop.xlane.xlu0 %921
    %v923 = vadd.f32 %v903, %v904
    %v924 = vadd.f32 %v923, %v905
    %925 = vadd.xlane.f32.xlu0 %v924
    %v926 = vpop.xlane.xlu0 %925
    %v927 = vadd.f32 %v906, %v907
    %v928 = vadd.f32 %v927, %v908
    %929 = vadd.xlane.f32.xlu0 %v928
    %v930 = vpop.xlane.xlu0 %929
    %v931 = vadd.f32 %v909, %v910
    %v932 = vadd.f32 %v931, %v911
    %933 = vadd.xlane.f32.xlu0 %v932
    %v934 = vpop.xlane.xlu0 %933
    %v935 = vadd.f32 %v912, %v913
    %v936 = vadd.f32 %v935, %v914
    %937 = vadd.xlane.f32.xlu0 %v936
    %v938 = vpop.xlane.xlu0 %937
    %v939 = vrsqrt.pop %v918
    %v940 = vmul.f32 %v939, %v918
    %v941 = vmul.f32 %v940, %v939
    %v942 = vmul.f32 0.5, %v941
    %v943 = vsub.f32 1.5, %v942
    %v944 = vmul.f32 %v939, %v943
    %v945 = vmul.f32 %v918, %v944
    %vm946 = vcmp.eq.f32.partialorder %v918, inf
    %v947 = vsel %vm946, %v918, %v945
    %vm948 = vcmp.eq.f32.partialorder %v918, 0.0
    %v949 = vand.u32 %v918, 2147483648
    %v950 = vsel %vm948, %v949, %v947
    %v951 = vrsqrt.pop %v922
    %v952 = vmul.f32 %v951, %v922
    %v953 = vmul.f32 %v952, %v951
    %v954 = vmul.f32 0.5, %v953
    %v955 = vsub.f32 1.5, %v954
    %v956 = vmul.f32 %v951, %v955
    %v957 = vmul.f32 %v922, %v956
    %vm958 = vcmp.eq.f32.partialorder %v922, inf
    %v959 = vsel %vm958, %v922, %v957
    %vm960 = vcmp.eq.f32.partialorder %v922, 0.0
    %v961 = vand.u32 %v922, 2147483648
    %v962 = vsel %vm960, %v961, %v959
    %v963 = vrsqrt.pop %v926
    %v964 = vmul.f32 %v963, %v926
    %v965 = vmul.f32 %v964, %v963
    %v966 = vmul.f32 0.5, %v965
    %v967 = vsub.f32 1.5, %v966
    %v968 = vmul.f32 %v963, %v967
    %v969 = vmul.f32 %v926, %v968
    %vm970 = vcmp.eq.f32.partialorder %v926, inf
    %v971 = vsel %vm970, %v926, %v969
    %vm972 = vcmp.eq.f32.partialorder %v926, 0.0
    %v973 = vand.u32 %v926, 2147483648
    %v974 = vsel %vm972, %v973, %v971
    %v975 = vrsqrt.pop %v930
    %v976 = vmul.f32 %v975, %v930
    %v977 = vmul.f32 %v976, %v975
    %v978 = vmul.f32 0.5, %v977
    %v979 = vsub.f32 1.5, %v978
    %v980 = vmul.f32 %v975, %v979
    %v981 = vmul.f32 %v930, %v980
    %vm982 = vcmp.eq.f32.partialorder %v930, inf
    %v983 = vsel %vm982, %v930, %v981
    %vm984 = vcmp.eq.f32.partialorder %v930, 0.0
    %v985 = vand.u32 %v930, 2147483648
    %v986 = vsel %vm984, %v985, %v983
    %v987 = vrsqrt.pop %v934
    %v988 = vmul.f32 %v987, %v934
    %v989 = vmul.f32 %v988, %v987
    %v990 = vmul.f32 0.5, %v989
    %v991 = vsub.f32 1.5, %v990
    %v992 = vmul.f32 %v987, %v991
    %v993 = vmul.f32 %v934, %v992
    %vm994 = vcmp.eq.f32.partialorder %v934, inf
    %v995 = vsel %vm994, %v934, %v993
    %vm996 = vcmp.eq.f32.partialorder %v934, 0.0
    %v997 = vand.u32 %v934, 2147483648
    %v998 = vsel %vm996, %v997, %v995
    %v999 = vrsqrt.pop %v938
    %v1000 = vmul.f32 %v999, %v938
    %v1001 = vmul.f32 %v1000, %v999
    %v1002 = vmul.f32 0.5, %v1001
    %v1003 = vsub.f32 1.5, %v1002
    %v1004 = vmul.f32 %v999, %v1003
    %v1005 = vmul.f32 %v938, %v1004
    %vm1006 = vcmp.eq.f32.partialorder %v938, inf
    %v1007 = vsel %vm1006, %v938, %v1005
    %vm1008 = vcmp.eq.f32.partialorder %v938, 0.0
    %v1009 = vand.u32 %v938, 2147483648
    %v1010 = vsel %vm1008, %v1009, %v1007
    %vm1011 = vcmp.gt.f32.partialorder %v950, 1.0
    %vm1012 = vcmp.gt.f32.partialorder %v962, 1.0
    %vm1013 = vcmp.gt.f32.partialorder %v974, 1.0
    %vm1014 = vcmp.gt.f32.partialorder %v986, 1.0
    %vm1015 = vcmp.gt.f32.partialorder %v998, 1.0
    %vm1016 = vcmp.gt.f32.partialorder %v1010, 1.0
    %v1017 = vadd.f32 %v950, 1e-07
    %v1018 = vadd.f32 %v962, 1e-07
    %v1019 = vadd.f32 %v974, 1e-07
    %v1020 = vadd.f32 %v986, 1e-07
    %v1021 = vadd.f32 %v998, 1e-07
    %v1022 = vadd.f32 %v1010, 1e-07
    %v1023 = vrcp.pop %v1017
    %v1024 = vmul.f32 %v1017, %v1023
    %v1025 = vsub.f32 1.0, %v1024
    %v1026 = vmul.f32 %v1023, %v1025
    %v1027 = vadd.f32 %v1023, %v1026
    %vm1028 = vweird.f32 %v1017
    %vm1029 = vweird.f32 %v1023
    %vm1030 = vmor %vm1028, %vm1029
    %v1031 = vsel %vm1030, %v1023, %v1027
    %v1032 = vand.u32 2147483647, %v1017
    %vm1033 = vcmp.eq.f32.partialorder %v1032, 8.507059e+37
    %v1034 = vand.u32 %v1017, 2147483648
    %v1035 = vor.u32 1.1754944e-38, %v1034
    %v1036 = vsel %vm1033, %v1035, %v1031
    %v1037 = vmul.f32 1.0, %v1036
    %v1038 = vrcp.pop %v1018
    %v1039 = vmul.f32 %v1018, %v1038
    %v1040 = vsub.f32 1.0, %v1039
    %v1041 = vmul.f32 %v1038, %v1040
    %v1042 = vadd.f32 %v1038, %v1041
    %vm1043 = vweird.f32 %v1018
    %vm1044 = vweird.f32 %v1038
    %vm1045 = vmor %vm1043, %vm1044
    %v1046 = vsel %vm1045, %v1038, %v1042
    %v1047 = vand.u32 2147483647, %v1018
    %vm1048 = vcmp.eq.f32.partialorder %v1047, 8.507059e+37
    %v1049 = vand.u32 %v1018, 2147483648
    %v1050 = vor.u32 1.1754944e-38, %v1049
    %v1051 = vsel %vm1048, %v1050, %v1046
    %v1052 = vmul.f32 1.0, %v1051
    %v1053 = vrcp.pop %v1019
    %v1054 = vmul.f32 %v1019, %v1053
    %v1055 = vsub.f32 1.0, %v1054
    %v1056 = vmul.f32 %v1053, %v1055
    %v1057 = vadd.f32 %v1053, %v1056
    %vm1058 = vweird.f32 %v1019
    %vm1059 = vweird.f32 %v1053
    %vm1060 = vmor %vm1058, %vm1059
    %v1061 = vsel %vm1060, %v1053, %v1057
    %v1062 = vand.u32 2147483647, %v1019
    %vm1063 = vcmp.eq.f32.partialorder %v1062, 8.507059e+37
    %v1064 = vand.u32 %v1019, 2147483648
    %v1065 = vor.u32 1.1754944e-38, %v1064
    %v1066 = vsel %vm1063, %v1065, %v1061
    %v1067 = vmul.f32 1.0, %v1066
    %v1068 = vrcp.pop %v1020
    %v1069 = vmul.f32 %v1020, %v1068
    %v1070 = vsub.f32 1.0, %v1069
    %v1071 = vmul.f32 %v1068, %v1070
    %v1072 = vadd.f32 %v1068, %v1071
    %vm1073 = vweird.f32 %v1020
    %vm1074 = vweird.f32 %v1068
    %vm1075 = vmor %vm1073, %vm1074
    %v1076 = vsel %vm1075, %v1068, %v1072
    %v1077 = vand.u32 2147483647, %v1020
    %vm1078 = vcmp.eq.f32.partialorder %v1077, 8.507059e+37
    %v1079 = vand.u32 %v1020, 2147483648
    %v1080 = vor.u32 1.1754944e-38, %v1079
    %v1081 = vsel %vm1078, %v1080, %v1076
    %v1082 = vmul.f32 1.0, %v1081
    %v1083 = vrcp.pop %v1021
    %v1084 = vmul.f32 %v1021, %v1083
    %v1085 = vsub.f32 1.0, %v1084
    %v1086 = vmul.f32 %v1083, %v1085
    %v1087 = vadd.f32 %v1083, %v1086
    %vm1088 = vweird.f32 %v1021
    %vm1089 = vweird.f32 %v1083
    %vm1090 = vmor %vm1088, %vm1089
    %v1091 = vsel %vm1090, %v1083, %v1087
    %v1092 = vand.u32 2147483647, %v1021
    %vm1093 = vcmp.eq.f32.partialorder %v1092, 8.507059e+37
    %v1094 = vand.u32 %v1021, 2147483648
    %v1095 = vor.u32 1.1754944e-38, %v1094
    %v1096 = vsel %vm1093, %v1095, %v1091
    %v1097 = vmul.f32 1.0, %v1096
    %v1098 = vrcp.pop %v1022
    %v1099 = vmul.f32 %v1022, %v1098
    %v1100 = vsub.f32 1.0, %v1099
    %v1101 = vmul.f32 %v1098, %v1100
    %v1102 = vadd.f32 %v1098, %v1101
    %vm1103 = vweird.f32 %v1022
    %vm1104 = vweird.f32 %v1098
    %vm1105 = vmor %vm1103, %vm1104
    %v1106 = vsel %vm1105, %v1098, %v1102
    %v1107 = vand.u32 2147483647, %v1022
    %vm1108 = vcmp.eq.f32.partialorder %v1107, 8.507059e+37
    %v1109 = vand.u32 %v1022, 2147483648
    %v1110 = vor.u32 1.1754944e-38, %v1109
    %v1111 = vsel %vm1108, %v1110, %v1106
    %v1112 = vmul.f32 1.0, %v1111
    %v1113 = vsel %vm1011, %v1037, 1.0
    %v1114 = vsel %vm1012, %v1052, 1.0
    %v1115 = vsel %vm1013, %v1067, 1.0
    %v1116 = vsel %vm1014, %v1082, 1.0
    %v1117 = vsel %vm1015, %v1097, 1.0
    %v1118 = vsel %vm1016, %v1112, 1.0
    %v1119 = vmul.f32 %v879, %v1113
    %v1120 = vmul.f32 %v880, %v1113
    %v1121 = vmul.f32 %v881, %v1113
    %v1122 = vmul.f32 %v882, %v1114
    %v1123 = vmul.f32 %v883, %v1114
    %v1124 = vmul.f32 %v884, %v1114
    %v1125 = vmul.f32 %v885, %v1115
    %v1126 = vmul.f32 %v886, %v1115
    %v1127 = vmul.f32 %v887, %v1115
    %v1128 = vmul.f32 %v888, %v1116
    %v1129 = vmul.f32 %v889, %v1116
    %v1130 = vmul.f32 %v890, %v1116
    %v1131 = vmul.f32 %v891, %v1117
    %v1132 = vmul.f32 %v892, %v1117
    %v1133 = vmul.f32 %v893, %v1117
    %v1134 = vmul.f32 %v894, %v1118
    %v1135 = vmul.f32 %v895, %v1118
    %v1136 = vmul.f32 %v896, %v1118
    %v1137 = vadd.f32 %v1119, %v1122
    %v1138 = vadd.f32 %v1120, %v1123
    %v1139 = vadd.f32 %v1121, %v1124
    %v1140 = vadd.f32 %v1137, %v1125
    %v1141 = vadd.f32 %v1138, %v1126
    %v1142 = vadd.f32 %v1139, %v1127
    %v1143 = vadd.f32 %v1140, %v1128
    %v1144 = vadd.f32 %v1141, %v1129
    %v1145 = vadd.f32 %v1142, %v1130
    %v1146 = vadd.f32 %v1143, %v1131
    %v1147 = vadd.f32 %v1144, %v1132
    %v1148 = vadd.f32 %v1145, %v1133
    %v1149 = vadd.f32 %v1146, %v1134
    %v1150 = vadd.f32 %v1147, %v1135
    %v1151 = vadd.f32 %v1148, %v1136
    %v1152 = vmul.f32 %v1149, 0.16666667
    %v1153 = vmul.f32 %v1150, 0.16666667
    %v1154 = vmul.f32 %v1151, 0.16666667
    %1155 = vst [vmem:[#allocation6] sm:$0xff] %v1152
    %1156 = vst [vmem:[#allocation6 + $0x8] sm:$0xff] %v1153
    %1157 = vst [vmem:[#allocation6 + $0x10] sm:$0xff] %v1154
    // Predicated region
    $region2: #{tpu_custom_call.1} parent=1 // pred_check
      _
    $region3: #{tpu_custom_call.1} parent=1 // pred_check_branch
      %1159 = sbr.rel (0) target = $region5
    $region4: #{tpu_custom_call.1} parent=1 // pred_region
      %1161 = vsyncadd [#allocation7], 0
      %s1163 = sshll.u32 [#allocation6], 4
      %s1164 = int_to_ptr.vmem [resolvable:$true] %s1163
      %s1165 = sshll.u32 %s2, 4
      %s1166 = int_to_ptr.hbm [resolvable:$true] %s1165
      %1168 = dma.vmem_to_hbm [thread:$0]  %s1164, 384, %s1166, [#allocation7]
    $region5: #{tpu_custom_call.1} parent=1 // pred_fallthru
      _
    // Predicated region
    $region6: #{tpu_custom_call.1} parent=1 // pred_check
      _
    $region7: #{tpu_custom_call.1} parent=1 // pred_check_branch
      %1170 = sbr.rel (0) target = $region9
    $region8: #{tpu_custom_call.1} parent=1 // pred_region
      %1172 = dma.done [#allocation7], 384
    $region9: #{tpu_custom_call.1} parent=1 // pred_fallthru
      _
    %1173 = vsyncpa [#allocation7], 1
  %1174 = vsyncmov [#allocation3]
  %s1175 = vpop.sfrf %1174
  %p1176 = scmp.eq.s32.totalorder %s1175, 0
  %p1177 = pneg %p1176
  %1179 = shalt.err (%p1177)
  %s1180 = scalar_lea.sflag [#allocation3], 1
  %1181 = vsyncmov %s1180
  %s1182 = vpop.sfrf %1181
  %p1183 = scmp.eq.s32.totalorder %s1182, 0
  %p1184 = pneg %p1183
  %1186 = shalt.err (%p1184)
  %s1187 = scalar_lea.sflag [#allocation3], 2
  %1188 = vsyncmov %s1187
  %s1189 = vpop.sfrf %1188
  %p1190 = scmp.eq.s32.totalorder %s1189, 0
  %p1191 = pneg %p1190
  %1193 = shalt.err (%p1191)
  %s1194 = scalar_lea.sflag [#allocation3], 3
  %1195 = vsyncmov %s1194
  %s1196 = vpop.sfrf %1195
  %p1197 = scmp.eq.s32.totalorder %s1196, 0
  %p1198 = pneg %p1197
  %1200 = shalt.err (%p1198)
  %s1201 = scalar_lea.sflag [#allocation3], 4
  %1202 = vsyncmov %s1201
  %s1203 = vpop.sfrf %1202
  %p1204 = scmp.eq.s32.totalorder %s1203, 0
  %p1205 = pneg %p1204
  %1207 = shalt.err (%p1205)
  %s1208 = scalar_lea.sflag [#allocation3], 5
  %1209 = vsyncmov %s1208
  %s1210 = vpop.sfrf %1209
  %p1211 = scmp.eq.s32.totalorder %s1210, 0
  %p1212 = pneg %p1211
  %1214 = shalt.err (%p1212)
  %s1215 = scalar_lea.sflag [#allocation3], 6
  %1216 = vsyncmov %s1215
  %s1217 = vpop.sfrf %1216
  %p1218 = scmp.eq.s32.totalorder %s1217, 0
  %p1219 = pneg %p1218
  %1221 = shalt.err (%p1219)
  %s1222 = scalar_lea.sflag [#allocation3], 7
  %1223 = vsyncmov %s1222
  %s1224 = vpop.sfrf %1223
  %p1225 = scmp.eq.s32.totalorder %s1224, 0
  %p1226 = pneg %p1225
  %1228 = shalt.err (%p1226)
  %s1229 = scalar_lea.sflag [#allocation3], 8
  %1230 = vsyncmov %s1229
  %s1231 = vpop.sfrf %1230
  %p1232 = scmp.eq.s32.totalorder %s1231, 0
  %p1233 = pneg %p1232
  %1235 = shalt.err (%p1233)
  %s1236 = scalar_lea.sflag [#allocation3], 9
  %1237 = vsyncmov %s1236
  %s1238 = vpop.sfrf %1237
  %p1239 = scmp.eq.s32.totalorder %s1238, 0
  %p1240 = pneg %p1239
  %1242 = shalt.err (%p1240)
  %s1243 = scalar_lea.sflag [#allocation3], 10
  %1244 = vsyncmov %s1243
  %s1245 = vpop.sfrf %1244
  %p1246 = scmp.eq.s32.totalorder %s1245, 0
  %p1247 = pneg %p1246
  %1249 = shalt.err (%p1247)
  %s1250 = scalar_lea.sflag [#allocation3], 11
  %1251 = vsyncmov %s1250
  %s1252 = vpop.sfrf %1251
  %p1253 = scmp.eq.s32.totalorder %s1252, 0
  %p1254 = pneg %p1253
  %1256 = shalt.err (%p1254)
  %s1257 = scalar_lea.sflag [#allocation3], 12
  %1258 = vsyncmov %s1257
  %s1259 = vpop.sfrf %1258
  %p1260 = scmp.eq.s32.totalorder %s1259, 0
  %p1261 = pneg %p1260
  %1263 = shalt.err (%p1261)
  %s1264 = scalar_lea.sflag [#allocation3], 13
  %1265 = vsyncmov %s1264
  %s1266 = vpop.sfrf %1265
  %p1267 = scmp.eq.s32.totalorder %s1266, 0
  %p1268 = pneg %p1267
  %1270 = shalt.err (%p1268)
  %s1271 = scalar_lea.sflag [#allocation3], 14
  %1272 = vsyncmov %s1271
  %s1273 = vpop.sfrf %1272
  %p1274 = scmp.eq.s32.totalorder %s1273, 0
  %p1275 = pneg %p1274
  %1277 = shalt.err (%p1275)
  %s1278 = scalar_lea.sflag [#allocation3], 15
  %1279 = vsyncmov %s1278
  %s1280 = vpop.sfrf %1279
  %p1281 = scmp.eq.s32.totalorder %s1280, 0
  %p1282 = pneg %p1281
  %1284 = shalt.err (%p1282)
  %s1285 = scalar_lea.sflag [#allocation3], 16
  %1286 = vsyncmov %s1285
  %s1287 = vpop.sfrf %1286
  %p1288 = scmp.eq.s32.totalorder %s1287, 0
  %p1289 = pneg %p1288
  %1291 = shalt.err (%p1289)
  %s1292 = scalar_lea.sflag [#allocation3], 17
  %1293 = vsyncmov %s1292
  %s1294 = vpop.sfrf %1293
  %p1295 = scmp.eq.s32.totalorder %s1294, 0
  %p1296 = pneg %p1295
  %1298 = shalt.err (%p1296)
  %s1299 = scalar_lea.sflag [#allocation3], 18
  %1300 = vsyncmov %s1299
  %s1301 = vpop.sfrf %1300
  %p1302 = scmp.eq.s32.totalorder %s1301, 0
  %p1303 = pneg %p1302
  %1305 = shalt.err (%p1303)
  %s1306 = scalar_lea.sflag [#allocation3], 19
  %1307 = vsyncmov %s1306
  %s1308 = vpop.sfrf %1307
  %p1309 = scmp.eq.s32.totalorder %s1308, 0
  %p1310 = pneg %p1309
  %1312 = shalt.err (%p1310)
  %s1313 = scalar_lea.sflag [#allocation3], 20
  %1314 = vsyncmov %s1313
  %s1315 = vpop.sfrf %1314
  %p1316 = scmp.eq.s32.totalorder %s1315, 0
  %p1317 = pneg %p1316
  %1319 = shalt.err (%p1317)
  %s1320 = scalar_lea.sflag [#allocation3], 21
  %1321 = vsyncmov %s1320
  %s1322 = vpop.sfrf %1321
  %p1323 = scmp.eq.s32.totalorder %s1322, 0
  %p1324 = pneg %p1323
  %1326 = shalt.err (%p1324)
  %s1327 = scalar_lea.sflag [#allocation3], 22
  %1328 = vsyncmov %s1327
  %s1329 = vpop.sfrf %1328
  %p1330 = scmp.eq.s32.totalorder %s1329, 0
  %p1331 = pneg %p1330
  %1333 = shalt.err (%p1331)
  %s1334 = scalar_lea.sflag [#allocation3], 23
  %1335 = vsyncmov %s1334
  %s1336 = vpop.sfrf %1335
  %p1337 = scmp.eq.s32.totalorder %s1336, 0
  %p1338 = pneg %p1337
  %1340 = shalt.err (%p1338)
  %s1341 = scalar_lea.sflag [#allocation3], 24
  %1342 = vsyncmov %s1341
  %s1343 = vpop.sfrf %1342
  %p1344 = scmp.eq.s32.totalorder %s1343, 0
  %p1345 = pneg %p1344
  %1347 = shalt.err (%p1345)
  %s1348 = scalar_lea.sflag [#allocation3], 25
  %1349 = vsyncmov %s1348
  %s1350 = vpop.sfrf %1349
  %p1351 = scmp.eq.s32.totalorder %s1350, 0
  %p1352 = pneg %p1351
  %1354 = shalt.err (%p1352)
  %s1355 = scalar_lea.sflag [#allocation3], 26
  %1356 = vsyncmov %s1355
  %s1357 = vpop.sfrf %1356
  %p1358 = scmp.eq.s32.totalorder %s1357, 0
  %p1359 = pneg %p1358
  %1361 = shalt.err (%p1359)
  %s1362 = scalar_lea.sflag [#allocation3], 27
  %1363 = vsyncmov %s1362
  %s1364 = vpop.sfrf %1363
  %p1365 = scmp.eq.s32.totalorder %s1364, 0
  %p1366 = pneg %p1365
  %1368 = shalt.err (%p1366)
  %s1369 = scalar_lea.sflag [#allocation3], 28
  %1370 = vsyncmov %s1369
  %s1371 = vpop.sfrf %1370
  %p1372 = scmp.eq.s32.totalorder %s1371, 0
  %p1373 = pneg %p1372
  %1375 = shalt.err (%p1373)
  %s1376 = scalar_lea.sflag [#allocation3], 29
  %1377 = vsyncmov %s1376
  %s1378 = vpop.sfrf %1377
  %p1379 = scmp.eq.s32.totalorder %s1378, 0
  %p1380 = pneg %p1379
  %1382 = shalt.err (%p1380)
  %s1383 = scalar_lea.sflag [#allocation3], 30
  %1384 = vsyncmov %s1383
  %s1385 = vpop.sfrf %1384
  %p1386 = scmp.eq.s32.totalorder %s1385, 0
  %p1387 = pneg %p1386
  %1389 = shalt.err (%p1387)
  %s1390 = scalar_lea.sflag [#allocation3], 31
  %1391 = vsyncmov %s1390
  %s1392 = vpop.sfrf %1391
  %p1393 = scmp.eq.s32.totalorder %s1392, 0
  %p1394 = pneg %p1393
  %1396 = shalt.err (%p1394)
  %s1397 = scalar_lea.sflag [#allocation3], 32
  %1398 = vsyncmov %s1397
  %s1399 = vpop.sfrf %1398
  %p1400 = scmp.eq.s32.totalorder %s1399, 0
  %p1401 = pneg %p1400
  %1403 = shalt.err (%p1401)
  %s1404 = scalar_lea.sflag [#allocation3], 33
  %1405 = vsyncmov %s1404
  %s1406 = vpop.sfrf %1405
  %p1407 = scmp.eq.s32.totalorder %s1406, 0
  %p1408 = pneg %p1407
  %1410 = shalt.err (%p1408)
  %s1411 = scalar_lea.sflag [#allocation3], 34
  %1412 = vsyncmov %s1411
  %s1413 = vpop.sfrf %1412
  %p1414 = scmp.eq.s32.totalorder %s1413, 0
  %p1415 = pneg %p1414
  %1417 = shalt.err (%p1415)
  %s1418 = scalar_lea.sflag [#allocation3], 35
  %1419 = vsyncmov %s1418
  %s1420 = vpop.sfrf %1419
  %p1421 = scmp.eq.s32.totalorder %s1420, 0
  %p1422 = pneg %p1421
  %1424 = shalt.err (%p1422)
  %s1425 = scalar_lea.sflag [#allocation3], 36
  %1426 = vsyncmov %s1425
  %s1427 = vpop.sfrf %1426
  %p1428 = scmp.eq.s32.totalorder %s1427, 0
  %p1429 = pneg %p1428
  %1431 = shalt.err (%p1429)
  %s1432 = scalar_lea.sflag [#allocation3], 37
  %1433 = vsyncmov %s1432
  %s1434 = vpop.sfrf %1433
  %p1435 = scmp.eq.s32.totalorder %s1434, 0
  %p1436 = pneg %p1435
  %1438 = shalt.err (%p1436)
  %s1439 = scalar_lea.sflag [#allocation3], 38
  %1440 = vsyncmov %s1439
  %s1441 = vpop.sfrf %1440
  %p1442 = scmp.eq.s32.totalorder %s1441, 0
  %p1443 = pneg %p1442
  %1445 = shalt.err (%p1443)
  %s1446 = scalar_lea.sflag [#allocation3], 39
  %1447 = vsyncmov %s1446
  %s1448 = vpop.sfrf %1447
  %p1449 = scmp.eq.s32.totalorder %s1448, 0
  %p1450 = pneg %p1449
  %1452 = shalt.err (%p1450)
  %s1453 = scalar_lea.sflag [#allocation3], 40
  %1454 = vsyncmov %s1453
  %s1455 = vpop.sfrf %1454
  %p1456 = scmp.eq.s32.totalorder %s1455, 0
  %p1457 = pneg %p1456
  %1459 = shalt.err (%p1457)
  %s1460 = scalar_lea.sflag [#allocation3], 41
  %1461 = vsyncmov %s1460
  %s1462 = vpop.sfrf %1461
  %p1463 = scmp.eq.s32.totalorder %s1462, 0
  %p1464 = pneg %p1463
  %1466 = shalt.err (%p1464)
  %s1467 = scalar_lea.sflag [#allocation3], 42
  %1468 = vsyncmov %s1467
  %s1469 = vpop.sfrf %1468
  %p1470 = scmp.eq.s32.totalorder %s1469, 0
  %p1471 = pneg %p1470
  %1473 = shalt.err (%p1471)
  %s1474 = scalar_lea.sflag [#allocation3], 43
  %1475 = vsyncmov %s1474
  %s1476 = vpop.sfrf %1475
  %p1477 = scmp.eq.s32.totalorder %s1476, 0
  %p1478 = pneg %p1477
  %1480 = shalt.err (%p1478)
  %s1481 = scalar_lea.sflag [#allocation3], 44
  %1482 = vsyncmov %s1481
  %s1483 = vpop.sfrf %1482
  %p1484 = scmp.eq.s32.totalorder %s1483, 0
  %p1485 = pneg %p1484
  %1487 = shalt.err (%p1485)
  %s1488 = scalar_lea.sflag [#allocation3], 45
  %1489 = vsyncmov %s1488
  %s1490 = vpop.sfrf %1489
  %p1491 = scmp.eq.s32.totalorder %s1490, 0
  %p1492 = pneg %p1491
  %1494 = shalt.err (%p1492)
  %s1495 = scalar_lea.sflag [#allocation3], 46
  %1496 = vsyncmov %s1495
  %s1497 = vpop.sfrf %1496
  %p1498 = scmp.eq.s32.totalorder %s1497, 0
  %p1499 = pneg %p1498
  %1501 = shalt.err (%p1499)
  %s1502 = scalar_lea.sflag [#allocation3], 47
  %1503 = vsyncmov %s1502
  %s1504 = vpop.sfrf %1503
  %p1505 = scmp.eq.s32.totalorder %s1504, 0
  %p1506 = pneg %p1505
  %1508 = shalt.err (%p1506)

</llo_original>
